<compile_context>
chip_gen: v7x
topology: tpu7x:2x2x1
jax: 0.10.0
libtpu: 0.0.40
codegen_flags: <defaults>
</compile_context>

<pallas_src>
import functools

import jax
import jax.numpy as jnp
from jax.experimental import pallas as pl
from jax.experimental.pallas import tpu as pltpu

EPS_STD = 1e-6     # matches the 1e-06 in perturb_feature_stats
EPS_NORM = 1e-8    # matches the 1e-08 on the gradient norms

_VMEM = pl.BlockSpec(memory_space=pltpu.MemorySpace.VMEM)
_SMEM = pl.BlockSpec(memory_space=pltpu.MemorySpace.SMEM)


def _bce_terms(z, y):
    """Numerically-stable BCEWithLogits elements AND sigmoid(z), sharing one exp(-|z|)."""
    e = jnp.exp(-jnp.abs(z))
    bce = jnp.maximum(z, 0.0) - z * y + jnp.log(1.0 + e)
    sig = jnp.where(z >= 0.0, 1.0 / (1.0 + e), e / (1.0 + e))
    return bce, sig


# ---------------------------------------------------------------------------
# Fused GradientRegularizedLoss kernel.
#   x_ref      : (C, B, L)  f32  VMEM   (per-channel (B, L) slabs)
#   logits_ref : (B, K)     f32  VMEM
#   labels_ref : (B, K)     f32  VMEM
#   w_cls_ref  : (C2, K, L) bf16 VMEM   (torch (K, C2*L) Linear weight, re-laid-out)
#   b_cls_ref  : (1, K)     f32  VMEM
#   w_deep_ref : (C2, C)    f32  SMEM   (1x1-conv weight, scalar reads)
#   b_deep_ref : (C2,)      f32  SMEM
#   out_ref    : (1, 1)     f32  VMEM   (total loss)
# ---------------------------------------------------------------------------
def _grl_kernel(x_ref, logits_ref, labels_ref, w_cls_ref, b_cls_ref,
                w_deep_ref, b_deep_ref, out_ref, *, r, alpha):
    C, B, L = x_ref.shape
    C2, K, _ = w_cls_ref.shape
    inv_n = 1.0 / L
    inv_nm1 = 1.0 / (L - 1)          # unbiased std (torch.std default)
    inv_bk = 1.0 / (B * K)

    # ---- unperturbed BCE loss and dL/dlogits (one shared exp) -------------
    logits = logits_ref[...]
    labels = labels_ref[...]
    bce0, sig = _bce_terms(logits, labels)
    loss0 = jnp.sum(bce0, keepdims=True) * inv_bk                       # (1, 1)
    dlogits_bf = ((sig - labels) * inv_bk).astype(jnp.bfloat16)         # (B, K)

    # ---- per-channel slabs and per-(b, c) stats (f32, VPU/XLU) ------------
    xc, mean_c, inv_std_c = [], [], []
    for c in range(C):
        x_c = x_ref[c]                                                  # (B, L)
        m = jnp.sum(x_c, axis=1, keepdims=True) * inv_n                 # (B, 1)
        d = x_c - m
        var = jnp.sum(d * d, axis=1, keepdims=True) * inv_nm1
        inv_std = 1.0 / (jnp.sqrt(var) + EPS_STD)
        xc.append(x_c)
        mean_c.append(m)
        inv_std_c.append(inv_std)

    # ---- pass 1: analytic dL/dfeat via classifier -> ReLU -> 1x1-conv bwd --
    # Classifier backward per C2-slice on the lane-dense (K, L) weight slab;
    # ReLU mask comes from the UNPERTURBED deep pre-activation; transposed-conv
    # backward is a scalar-broadcast accumulation (weights read from SMEM).
    dfeat = [None] * C
    for o in range(C2):
        w_slab = w_cls_ref[o]                                           # (K, L) bf16
        dflat_o = jnp.dot(dlogits_bf, w_slab,
                          preferred_element_type=jnp.float32)           # (B, L) f32
        w_oc = [w_deep_ref[o, c] for c in range(C)]                     # SMEM scalars
        pre_o = w_oc[0] * xc[0]
        for c in range(1, C):
            pre_o = pre_o + w_oc[c] * xc[c]
        pre_o = pre_o + b_deep_ref[o]
        dpre_o = jnp.where(pre_o > 0.0, dflat_o, 0.0)                   # ReLU backward
        for c in range(C):
            contrib = w_oc[c] * dpre_o
            dfeat[c] = contrib if dfeat[c] is None else dfeat[c] + contrib

    # ---- dL/dmean, dL/dstd and their global L2 norms -----------------------
    # loss depends on (mean, std) through feat = stop_grad(normed)*(std+eps)+mean
    # evaluated at the unperturbed point (feat == x):
    #   dL/dmean[b,c] = sum_l dL/dfeat[b,c,l]
    #   dL/dstd [b,c] = sum_l dL/dfeat[b,c,l] * (x - mean) / (std + eps)
    gm_c, gs_c = [], []
    gm_sq = jnp.zeros((1, 1), jnp.float32)
    gs_sq = jnp.zeros((1, 1), jnp.float32)
    for c in range(C):
        gm = jnp.sum(dfeat[c], axis=1, keepdims=True)                   # (B, 1)
        gx = jnp.sum(dfeat[c] * xc[c], axis=1, keepdims=True)           # (B, 1)
        gs = (gx - mean_c[c] * gm) * inv_std_c[c]                       # (B, 1)
        gm_sq = gm_sq + jnp.sum(gm * gm, keepdims=True)
        gs_sq = gs_sq + jnp.sum(gs * gs, keepdims=True)
        gm_c.append(gm)
        gs_c.append(gs)
    coef_mean = r / (jnp.sqrt(gm_sq) + EPS_NORM)                        # (1, 1)
    coef_std = r / (jnp.sqrt(gs_sq) + EPS_NORM)                         # (1, 1)

    # ---- pass 2: perturb (one FMA/elem) -> deep conv+ReLU -> classifier ----
    #   feat_p = x*scale + shift,  scale = 1 + delta_std/(std+eps),
    #   shift = delta_mean + mean*(1 - scale)
    featp = []
    for c in range(C):
        scale = 1.0 + (coef_std * gs_c[c]) * inv_std_c[c]               # (B, 1)
        shift = coef_mean * gm_c[c] + mean_c[c] * (1.0 - scale)         # (B, 1)
        featp.append(xc[c] * scale + shift)                             # (B, L)

    acc = None
    for o in range(C2):
        w_oc = [w_deep_ref[o, c] for c in range(C)]
        pre_p = w_oc[0] * featp[0]
        for c in range(1, C):
            pre_p = pre_p + w_oc[c] * featp[c]
        pre_p = pre_p + b_deep_ref[o]
        relu_bf = jnp.maximum(pre_p, 0.0).astype(jnp.bfloat16)          # (B, L)
        part = jax.lax.dot_general(                                     # contract L (depth 256)
            relu_bf, w_cls_ref[o],
            dimension_numbers=(((1,), (1,)), ((), ())),
            preferred_element_type=jnp.float32)                         # (B, K)
        acc = part if acc is None else acc + part
    logits_p = acc + b_cls_ref[...]
    bce_p, _ = _bce_terms(logits_p, labels)
    loss_p = jnp.sum(bce_p, keepdims=True) * inv_bk                     # (1, 1)

    out_ref[...] = (1.0 - alpha) * loss0 + alpha * loss_p


# ---------------------------------------------------------------------------
# Wrapper
# ---------------------------------------------------------------------------
def gradient_regularized_loss(shallow_feat, logits, labels, params, *, r, alpha):
    """GradientRegularizedLoss.forward fused into a single Pallas TPU kernel."""
    B, C, H, W = shallow_feat.shape
    L = H * W
    assert L > 1, "unbiased (torch-default) std needs H*W > 1"
    C2 = params["w_deep"].shape[0]
    K = params["w_cls"].shape[0]

    # Wrapper-side layout plumbing (one-time XLA ops; no in-kernel relayout):
    x_cbl = shallow_feat.astype(jnp.float32).reshape(B, C, L).transpose(1, 0, 2)   # (C, B, L)
    # torch nn.Linear weight (K, C2*L), NCHW flatten order -> (C2, K, L) bf16 slabs
    w_cls_r = (params["w_cls"].reshape(K, C2, L)
               .transpose(1, 0, 2).astype(jnp.bfloat16))
    b_cls = params["b_cls"].reshape(1, K).astype(jnp.float32)
    w_deep = params["w_deep"].astype(jnp.float32)                                  # (C2, C) -> SMEM
    b_deep = params["b_deep"].reshape(C2).astype(jnp.float32)                      # (C2,)   -> SMEM

    out = pl.pallas_call(
        functools.partial(_grl_kernel, r=float(r), alpha=float(alpha)),
        out_shape=jax.ShapeDtypeStruct((1, 1), jnp.float32),
        in_specs=[_VMEM,   # x (C, B, L)
                  _VMEM,   # logits
                  _VMEM,   # labels
                  _VMEM,   # w_cls_r (C2, K, L) bf16
                  _VMEM,   # b_cls (1, K)
                  _SMEM,   # w_deep (C2, C)
                  _SMEM],  # b_deep (C2,)
        out_specs=_VMEM,
        compiler_params=pltpu.CompilerParams(vmem_limit_bytes=32 * 1024 * 1024),
    )(x_cbl, logits.astype(jnp.float32), labels.astype(jnp.float32),
      w_cls_r, b_cls, w_deep, b_deep)
    return out[0, 0]


# ---------------------------------------------------------------------------
# Main
# ---------------------------------------------------------------------------
if __name__ == "__main__":
    B, C, H, W = 2, 4, 16, 16     # shallow feature map (NCHW)
    C2 = 8                        # deep channels (Conv2d(C, C2, kernel_size=1))
    K = 8                         # classes (BCEWithLogits -> multi-label)
    r, alpha = 0.5, 0.5
    L = H * W

    key = jax.random.PRNGKey(0)
    k_feat, k_lab, k_wd, k_bd, k_wc, k_bc = jax.random.split(key, 6)

    shallow_feat = jax.random.normal(k_feat, (B, C, H, W), dtype=jnp.float32)
    labels = jax.random.bernoulli(k_lab, 0.5, (B, K)).astype(jnp.float32)

    params = {
        # model.deep: Conv2d(C, C2, 1) weight (C2, C, 1, 1) stored as (C2, C)
        "w_deep": jax.random.normal(k_wd, (C2, C), dtype=jnp.float32) * 0.1,
        "b_deep": jax.random.normal(k_bd, (C2,), dtype=jnp.float32) * 0.01,
        # model.classifier: nn.Linear(C2*H*W, K) weight kept in torch (out, in) layout
        "w_cls": jax.random.normal(k_wc, (K, C2 * L), dtype=jnp.float32) * 0.02,
        "b_cls": jax.random.normal(k_bc, (K,), dtype=jnp.float32) * 0.01,
    }

    # Harness-only: synthesize the `logits` input with the same deep+classifier
    # model on the unperturbed features (plain XLA; the loss kernel itself runs
    # the perturbed deep/classifier path in Pallas).
    x3 = shallow_feat.reshape(B, C, L)
    pre = jnp.einsum("oc,bcl->bol", params["w_deep"], x3) + params["b_deep"][None, :, None]
    logits = (jnp.maximum(pre, 0.0).reshape(B, C2 * L) @ params["w_cls"].T
              + params["b_cls"][None, :])

    fwd = jax.jit(functools.partial(gradient_regularized_loss, r=r, alpha=alpha))
    total_loss = fwd(shallow_feat, logits, labels, params)
    jax.block_until_ready(total_loss)

    assert total_loss.shape == () and bool(jnp.isfinite(total_loss))
    print("KERNEL_OK")
</pallas_src>

<mosaic_0001>
module attributes {stable_mosaic.version = 11 : i64} {
  func.func @_grl_kernel(%arg0: memref<4x2x256xf32, #tpu.memory_space<vmem>>, %arg1: memref<2x8xf32, #tpu.memory_space<vmem>>, %arg2: memref<2x8xf32, #tpu.memory_space<vmem>>, %arg3: memref<8x8x256xbf16, #tpu.memory_space<vmem>>, %arg4: memref<1x8xf32, #tpu.memory_space<vmem>>, %arg5: memref<8x4xf32, #tpu.memory_space<smem>>, %arg6: memref<8xf32, #tpu.memory_space<smem>>, %arg7: memref<1x1xf32, #tpu.memory_space<vmem>>) attributes {dimension_semantics = [], scalar_prefetch = 0 : i64, scratch_operands = 0 : i64, tpu.core_type = #tpu.core_type<tc>} {
    %c0 = arith.constant 0 : index
    %c0_0 = arith.constant 0 : index
    %0 = vector.load %arg1[%c0, %c0_0] : memref<2x8xf32, #tpu.memory_space<vmem>>, vector<2x8xf32>
    %c0_1 = arith.constant 0 : index
    %c0_2 = arith.constant 0 : index
    %1 = vector.load %arg2[%c0_1, %c0_2] : memref<2x8xf32, #tpu.memory_space<vmem>>, vector<2x8xf32>
    %2 = math.absf %0 : vector<2x8xf32>
    %cst = arith.constant 0.000000e+00 : f32
    %3 = vector.broadcast %cst : f32 to vector<2x8xf32>
    %4 = arith.subf %3, %2 : vector<2x8xf32>
    %5 = math.exp %4 : vector<2x8xf32>
    %cst_3 = arith.constant 0.000000e+00 : f32
    %6 = vector.broadcast %cst_3 : f32 to vector<2x8xf32>
    %7 = arith.maximumf %0, %6 : vector<2x8xf32>
    %8 = arith.mulf %0, %1 : vector<2x8xf32>
    %9 = arith.subf %7, %8 : vector<2x8xf32>
    %cst_4 = arith.constant 1.000000e+00 : f32
    %10 = vector.broadcast %cst_4 : f32 to vector<2x8xf32>
    %11 = arith.addf %10, %5 : vector<2x8xf32>
    %12 = math.log %11 : vector<2x8xf32>
    %13 = arith.addf %9, %12 : vector<2x8xf32>
    %cst_5 = arith.constant 0.000000e+00 : f32
    %14 = vector.broadcast %cst_5 : f32 to vector<2x8xf32>
    %15 = arith.cmpf oge, %0, %14 : vector<2x8xf32>
    %cst_6 = arith.constant 1.000000e+00 : f32
    %16 = vector.broadcast %cst_6 : f32 to vector<2x8xf32>
    %17 = arith.addf %16, %5 : vector<2x8xf32>
    %cst_7 = arith.constant 1.000000e+00 : f32
    %18 = vector.broadcast %cst_7 : f32 to vector<2x8xf32>
    %19 = arith.divf %18, %17 : vector<2x8xf32>
    %cst_8 = arith.constant 1.000000e+00 : f32
    %20 = vector.broadcast %cst_8 : f32 to vector<2x8xf32>
    %21 = arith.addf %20, %5 : vector<2x8xf32>
    %22 = arith.divf %5, %21 : vector<2x8xf32>
    %23 = arith.select %15, %19, %22 : vector<2x8xi1>, vector<2x8xf32>
    %24 = vector.shape_cast %13 : vector<2x8xf32> to vector<1x2x8xf32>
    %cst_9 = arith.constant dense<0.000000e+00> : vector<1xf32>
    %25 = vector.multi_reduction <add>, %24, %cst_9 [1, 2] : vector<1x2x8xf32> to vector<1xf32>
    %26 = vector.shape_cast %25 : vector<1xf32> to vector<1x1x1xf32>
    %27 = vector.extract %26[0, 0, 0] : f32 from vector<1x1x1xf32>
    %28 = vector.broadcast %27 : f32 to vector<1x1xf32>
    %cst_10 = arith.constant 6.250000e-02 : f32
    %29 = vector.broadcast %cst_10 : f32 to vector<1x1xf32>
    %30 = arith.mulf %28, %29 : vector<1x1xf32>
    %31 = arith.subf %23, %1 : vector<2x8xf32>
    %cst_11 = arith.constant 6.250000e-02 : f32
    %32 = vector.broadcast %cst_11 : f32 to vector<2x8xf32>
    %33 = arith.mulf %31, %32 : vector<2x8xf32>
    %34 = arith.truncf %33 : vector<2x8xf32> to vector<2x8xbf16>
    %c0_12 = arith.constant 0 : index
    %c0_13 = arith.constant 0 : index
    %c0_14 = arith.constant 0 : index
    %35 = vector.load %arg0[%c0_12, %c0_13, %c0_14] : memref<4x2x256xf32, #tpu.memory_space<vmem>>, vector<1x2x256xf32>
    %36 = vector.shape_cast %35 : vector<1x2x256xf32> to vector<2x256xf32>
    %cst_15 = arith.constant dense<0.000000e+00> : vector<2xf32>
    %37 = vector.multi_reduction <add>, %36, %cst_15 [1] : vector<2x256xf32> to vector<2xf32>
    %38 = vector.shape_cast %37 : vector<2xf32> to vector<2x1xf32>
    %cst_16 = arith.constant 3.906250e-03 : f32
    %39 = vector.broadcast %cst_16 : f32 to vector<2x1xf32>
    %40 = arith.mulf %38, %39 : vector<2x1xf32>
    %41 = vector.broadcast %40 : vector<2x1xf32> to vector<2x256xf32>
    %42 = arith.subf %36, %41 : vector<2x256xf32>
    %43 = arith.mulf %42, %42 : vector<2x256xf32>
    %cst_17 = arith.constant dense<0.000000e+00> : vector<2xf32>
    %44 = vector.multi_reduction <add>, %43, %cst_17 [1] : vector<2x256xf32> to vector<2xf32>
    %45 = vector.shape_cast %44 : vector<2xf32> to vector<2x1xf32>
    %cst_18 = arith.constant 0.00392156886 : f32
    %46 = vector.broadcast %cst_18 : f32 to vector<2x1xf32>
    %47 = arith.mulf %45, %46 : vector<2x1xf32>
    %48 = math.sqrt %47 : vector<2x1xf32>
    %cst_19 = arith.constant 9.99999997E-7 : f32
    %49 = vector.broadcast %cst_19 : f32 to vector<2x1xf32>
    %50 = arith.addf %48, %49 : vector<2x1xf32>
    %cst_20 = arith.constant 1.000000e+00 : f32
    %51 = vector.broadcast %cst_20 : f32 to vector<2x1xf32>
    %52 = arith.divf %51, %50 : vector<2x1xf32>
    %c1 = arith.constant 1 : index
    %c0_21 = arith.constant 0 : index
    %c0_22 = arith.constant 0 : index
    %53 = vector.load %arg0[%c1, %c0_21, %c0_22] : memref<4x2x256xf32, #tpu.memory_space<vmem>>, vector<1x2x256xf32>
    %54 = vector.shape_cast %53 : vector<1x2x256xf32> to vector<2x256xf32>
    %cst_23 = arith.constant dense<0.000000e+00> : vector<2xf32>
    %55 = vector.multi_reduction <add>, %54, %cst_23 [1] : vector<2x256xf32> to vector<2xf32>
    %56 = vector.shape_cast %55 : vector<2xf32> to vector<2x1xf32>
    %cst_24 = arith.constant 3.906250e-03 : f32
    %57 = vector.broadcast %cst_24 : f32 to vector<2x1xf32>
    %58 = arith.mulf %56, %57 : vector<2x1xf32>
    %59 = vector.broadcast %58 : vector<2x1xf32> to vector<2x256xf32>
    %60 = arith.subf %54, %59 : vector<2x256xf32>
    %61 = arith.mulf %60, %60 : vector<2x256xf32>
    %cst_25 = arith.constant dense<0.000000e+00> : vector<2xf32>
    %62 = vector.multi_reduction <add>, %61, %cst_25 [1] : vector<2x256xf32> to vector<2xf32>
    %63 = vector.shape_cast %62 : vector<2xf32> to vector<2x1xf32>
    %cst_26 = arith.constant 0.00392156886 : f32
    %64 = vector.broadcast %cst_26 : f32 to vector<2x1xf32>
    %65 = arith.mulf %63, %64 : vector<2x1xf32>
    %66 = math.sqrt %65 : vector<2x1xf32>
    %cst_27 = arith.constant 9.99999997E-7 : f32
    %67 = vector.broadcast %cst_27 : f32 to vector<2x1xf32>
    %68 = arith.addf %66, %67 : vector<2x1xf32>
    %cst_28 = arith.constant 1.000000e+00 : f32
    %69 = vector.broadcast %cst_28 : f32 to vector<2x1xf32>
    %70 = arith.divf %69, %68 : vector<2x1xf32>
    %c2 = arith.constant 2 : index
    %c0_29 = arith.constant 0 : index
    %c0_30 = arith.constant 0 : index
    %71 = vector.load %arg0[%c2, %c0_29, %c0_30] : memref<4x2x256xf32, #tpu.memory_space<vmem>>, vector<1x2x256xf32>
    %72 = vector.shape_cast %71 : vector<1x2x256xf32> to vector<2x256xf32>
    %cst_31 = arith.constant dense<0.000000e+00> : vector<2xf32>
    %73 = vector.multi_reduction <add>, %72, %cst_31 [1] : vector<2x256xf32> to vector<2xf32>
    %74 = vector.shape_cast %73 : vector<2xf32> to vector<2x1xf32>
    %cst_32 = arith.constant 3.906250e-03 : f32
    %75 = vector.broadcast %cst_32 : f32 to vector<2x1xf32>
    %76 = arith.mulf %74, %75 : vector<2x1xf32>
    %77 = vector.broadcast %76 : vector<2x1xf32> to vector<2x256xf32>
    %78 = arith.subf %72, %77 : vector<2x256xf32>
    %79 = arith.mulf %78, %78 : vector<2x256xf32>
    %cst_33 = arith.constant dense<0.000000e+00> : vector<2xf32>
    %80 = vector.multi_reduction <add>, %79, %cst_33 [1] : vector<2x256xf32> to vector<2xf32>
    %81 = vector.shape_cast %80 : vector<2xf32> to vector<2x1xf32>
    %cst_34 = arith.constant 0.00392156886 : f32
    %82 = vector.broadcast %cst_34 : f32 to vector<2x1xf32>
    %83 = arith.mulf %81, %82 : vector<2x1xf32>
    %84 = math.sqrt %83 : vector<2x1xf32>
    %cst_35 = arith.constant 9.99999997E-7 : f32
    %85 = vector.broadcast %cst_35 : f32 to vector<2x1xf32>
    %86 = arith.addf %84, %85 : vector<2x1xf32>
    %cst_36 = arith.constant 1.000000e+00 : f32
    %87 = vector.broadcast %cst_36 : f32 to vector<2x1xf32>
    %88 = arith.divf %87, %86 : vector<2x1xf32>
    %c3 = arith.constant 3 : index
    %c0_37 = arith.constant 0 : index
    %c0_38 = arith.constant 0 : index
    %89 = vector.load %arg0[%c3, %c0_37, %c0_38] : memref<4x2x256xf32, #tpu.memory_space<vmem>>, vector<1x2x256xf32>
    %90 = vector.shape_cast %89 : vector<1x2x256xf32> to vector<2x256xf32>
    %cst_39 = arith.constant dense<0.000000e+00> : vector<2xf32>
    %91 = vector.multi_reduction <add>, %90, %cst_39 [1] : vector<2x256xf32> to vector<2xf32>
    %92 = vector.shape_cast %91 : vector<2xf32> to vector<2x1xf32>
    %cst_40 = arith.constant 3.906250e-03 : f32
    %93 = vector.broadcast %cst_40 : f32 to vector<2x1xf32>
    %94 = arith.mulf %92, %93 : vector<2x1xf32>
    %95 = vector.broadcast %94 : vector<2x1xf32> to vector<2x256xf32>
    %96 = arith.subf %90, %95 : vector<2x256xf32>
    %97 = arith.mulf %96, %96 : vector<2x256xf32>
    %cst_41 = arith.constant dense<0.000000e+00> : vector<2xf32>
    %98 = vector.multi_reduction <add>, %97, %cst_41 [1] : vector<2x256xf32> to vector<2xf32>
    %99 = vector.shape_cast %98 : vector<2xf32> to vector<2x1xf32>
    %cst_42 = arith.constant 0.00392156886 : f32
    %100 = vector.broadcast %cst_42 : f32 to vector<2x1xf32>
    %101 = arith.mulf %99, %100 : vector<2x1xf32>
    %102 = math.sqrt %101 : vector<2x1xf32>
    %cst_43 = arith.constant 9.99999997E-7 : f32
    %103 = vector.broadcast %cst_43 : f32 to vector<2x1xf32>
    %104 = arith.addf %102, %103 : vector<2x1xf32>
    %cst_44 = arith.constant 1.000000e+00 : f32
    %105 = vector.broadcast %cst_44 : f32 to vector<2x1xf32>
    %106 = arith.divf %105, %104 : vector<2x1xf32>
    %c0_45 = arith.constant 0 : index
    %c0_46 = arith.constant 0 : index
    %c0_47 = arith.constant 0 : index
    %107 = vector.load %arg3[%c0_45, %c0_46, %c0_47] : memref<8x8x256xbf16, #tpu.memory_space<vmem>>, vector<1x8x256xbf16>
    %108 = vector.shape_cast %107 : vector<1x8x256xbf16> to vector<8x256xbf16>
    %cst_48 = arith.constant dense<0.000000e+00> : vector<2x256xf32>
    %109 = tpu.matmul %34, %108, %cst_48 {dimension_numbers = #tpu.dot_dimension_numbers<[1], [0], [0], [1], [0, 0, 1, 1], [], []>} : vector<2x8xbf16>, vector<8x256xbf16>, vector<2x256xf32> -> vector<2x256xf32>
    %c0_49 = arith.constant 0 : index
    %c0_50 = arith.constant 0 : index
    %110 = memref.load %arg5[%c0_49, %c0_50] : memref<8x4xf32, #tpu.memory_space<smem>>
    %c0_51 = arith.constant 0 : index
    %c1_52 = arith.constant 1 : index
    %111 = memref.load %arg5[%c0_51, %c1_52] : memref<8x4xf32, #tpu.memory_space<smem>>
    %c0_53 = arith.constant 0 : index
    %c2_54 = arith.constant 2 : index
    %112 = memref.load %arg5[%c0_53, %c2_54] : memref<8x4xf32, #tpu.memory_space<smem>>
    %c0_55 = arith.constant 0 : index
    %c3_56 = arith.constant 3 : index
    %113 = memref.load %arg5[%c0_55, %c3_56] : memref<8x4xf32, #tpu.memory_space<smem>>
    %114 = vector.broadcast %110 : f32 to vector<2x256xf32>
    %115 = arith.mulf %114, %36 : vector<2x256xf32>
    %116 = vector.broadcast %111 : f32 to vector<2x256xf32>
    %117 = arith.mulf %116, %54 : vector<2x256xf32>
    %118 = arith.addf %115, %117 : vector<2x256xf32>
    %119 = vector.broadcast %112 : f32 to vector<2x256xf32>
    %120 = arith.mulf %119, %72 : vector<2x256xf32>
    %121 = arith.addf %118, %120 : vector<2x256xf32>
    %122 = vector.broadcast %113 : f32 to vector<2x256xf32>
    %123 = arith.mulf %122, %90 : vector<2x256xf32>
    %124 = arith.addf %121, %123 : vector<2x256xf32>
    %c0_57 = arith.constant 0 : index
    %125 = memref.load %arg6[%c0_57] : memref<8xf32, #tpu.memory_space<smem>>
    %126 = vector.broadcast %125 : f32 to vector<2x256xf32>
    %127 = arith.addf %124, %126 : vector<2x256xf32>
    %cst_58 = arith.constant 0.000000e+00 : f32
    %128 = vector.broadcast %cst_58 : f32 to vector<2x256xf32>
    %129 = arith.cmpf ogt, %127, %128 : vector<2x256xf32>
    %cst_59 = arith.constant 0.000000e+00 : f32
    %130 = vector.broadcast %cst_59 : f32 to vector<2x256xf32>
    %131 = arith.select %129, %109, %130 : vector<2x256xi1>, vector<2x256xf32>
    %132 = vector.broadcast %110 : f32 to vector<2x256xf32>
    %133 = arith.mulf %132, %131 : vector<2x256xf32>
    %134 = vector.broadcast %111 : f32 to vector<2x256xf32>
    %135 = arith.mulf %134, %131 : vector<2x256xf32>
    %136 = vector.broadcast %112 : f32 to vector<2x256xf32>
    %137 = arith.mulf %136, %131 : vector<2x256xf32>
    %138 = vector.broadcast %113 : f32 to vector<2x256xf32>
    %139 = arith.mulf %138, %131 : vector<2x256xf32>
    %c1_60 = arith.constant 1 : index
    %c0_61 = arith.constant 0 : index
    %c0_62 = arith.constant 0 : index
    %140 = vector.load %arg3[%c1_60, %c0_61, %c0_62] : memref<8x8x256xbf16, #tpu.memory_space<vmem>>, vector<1x8x256xbf16>
    %141 = vector.shape_cast %140 : vector<1x8x256xbf16> to vector<8x256xbf16>
    %cst_63 = arith.constant dense<0.000000e+00> : vector<2x256xf32>
    %142 = tpu.matmul %34, %141, %cst_63 {dimension_numbers = #tpu.dot_dimension_numbers<[1], [0], [0], [1], [0, 0, 1, 1], [], []>} : vector<2x8xbf16>, vector<8x256xbf16>, vector<2x256xf32> -> vector<2x256xf32>
    %c1_64 = arith.constant 1 : index
    %c0_65 = arith.constant 0 : index
    %143 = memref.load %arg5[%c1_64, %c0_65] : memref<8x4xf32, #tpu.memory_space<smem>>
    %c1_66 = arith.constant 1 : index
    %c1_67 = arith.constant 1 : index
    %144 = memref.load %arg5[%c1_66, %c1_67] : memref<8x4xf32, #tpu.memory_space<smem>>
    %c1_68 = arith.constant 1 : index
    %c2_69 = arith.constant 2 : index
    %145 = memref.load %arg5[%c1_68, %c2_69] : memref<8x4xf32, #tpu.memory_space<smem>>
    %c1_70 = arith.constant 1 : index
    %c3_71 = arith.constant 3 : index
    %146 = memref.load %arg5[%c1_70, %c3_71] : memref<8x4xf32, #tpu.memory_space<smem>>
    %147 = vector.broadcast %143 : f32 to vector<2x256xf32>
    %148 = arith.mulf %147, %36 : vector<2x256xf32>
    %149 = vector.broadcast %144 : f32 to vector<2x256xf32>
    %150 = arith.mulf %149, %54 : vector<2x256xf32>
    %151 = arith.addf %148, %150 : vector<2x256xf32>
    %152 = vector.broadcast %145 : f32 to vector<2x256xf32>
    %153 = arith.mulf %152, %72 : vector<2x256xf32>
    %154 = arith.addf %151, %153 : vector<2x256xf32>
    %155 = vector.broadcast %146 : f32 to vector<2x256xf32>
    %156 = arith.mulf %155, %90 : vector<2x256xf32>
    %157 = arith.addf %154, %156 : vector<2x256xf32>
    %c1_72 = arith.constant 1 : index
    %158 = memref.load %arg6[%c1_72] : memref<8xf32, #tpu.memory_space<smem>>
    %159 = vector.broadcast %158 : f32 to vector<2x256xf32>
    %160 = arith.addf %157, %159 : vector<2x256xf32>
    %cst_73 = arith.constant 0.000000e+00 : f32
    %161 = vector.broadcast %cst_73 : f32 to vector<2x256xf32>
    %162 = arith.cmpf ogt, %160, %161 : vector<2x256xf32>
    %cst_74 = arith.constant 0.000000e+00 : f32
    %163 = vector.broadcast %cst_74 : f32 to vector<2x256xf32>
    %164 = arith.select %162, %142, %163 : vector<2x256xi1>, vector<2x256xf32>
    %165 = vector.broadcast %143 : f32 to vector<2x256xf32>
    %166 = arith.mulf %165, %164 : vector<2x256xf32>
    %167 = arith.addf %133, %166 : vector<2x256xf32>
    %168 = vector.broadcast %144 : f32 to vector<2x256xf32>
    %169 = arith.mulf %168, %164 : vector<2x256xf32>
    %170 = arith.addf %135, %169 : vector<2x256xf32>
    %171 = vector.broadcast %145 : f32 to vector<2x256xf32>
    %172 = arith.mulf %171, %164 : vector<2x256xf32>
    %173 = arith.addf %137, %172 : vector<2x256xf32>
    %174 = vector.broadcast %146 : f32 to vector<2x256xf32>
    %175 = arith.mulf %174, %164 : vector<2x256xf32>
    %176 = arith.addf %139, %175 : vector<2x256xf32>
    %c2_75 = arith.constant 2 : index
    %c0_76 = arith.constant 0 : index
    %c0_77 = arith.constant 0 : index
    %177 = vector.load %arg3[%c2_75, %c0_76, %c0_77] : memref<8x8x256xbf16, #tpu.memory_space<vmem>>, vector<1x8x256xbf16>
    %178 = vector.shape_cast %177 : vector<1x8x256xbf16> to vector<8x256xbf16>
    %cst_78 = arith.constant dense<0.000000e+00> : vector<2x256xf32>
    %179 = tpu.matmul %34, %178, %cst_78 {dimension_numbers = #tpu.dot_dimension_numbers<[1], [0], [0], [1], [0, 0, 1, 1], [], []>} : vector<2x8xbf16>, vector<8x256xbf16>, vector<2x256xf32> -> vector<2x256xf32>
    %c2_79 = arith.constant 2 : index
    %c0_80 = arith.constant 0 : index
    %180 = memref.load %arg5[%c2_79, %c0_80] : memref<8x4xf32, #tpu.memory_space<smem>>
    %c2_81 = arith.constant 2 : index
    %c1_82 = arith.constant 1 : index
    %181 = memref.load %arg5[%c2_81, %c1_82] : memref<8x4xf32, #tpu.memory_space<smem>>
    %c2_83 = arith.constant 2 : index
    %c2_84 = arith.constant 2 : index
    %182 = memref.load %arg5[%c2_83, %c2_84] : memref<8x4xf32, #tpu.memory_space<smem>>
    %c2_85 = arith.constant 2 : index
    %c3_86 = arith.constant 3 : index
    %183 = memref.load %arg5[%c2_85, %c3_86] : memref<8x4xf32, #tpu.memory_space<smem>>
    %184 = vector.broadcast %180 : f32 to vector<2x256xf32>
    %185 = arith.mulf %184, %36 : vector<2x256xf32>
    %186 = vector.broadcast %181 : f32 to vector<2x256xf32>
    %187 = arith.mulf %186, %54 : vector<2x256xf32>
    %188 = arith.addf %185, %187 : vector<2x256xf32>
    %189 = vector.broadcast %182 : f32 to vector<2x256xf32>
    %190 = arith.mulf %189, %72 : vector<2x256xf32>
    %191 = arith.addf %188, %190 : vector<2x256xf32>
    %192 = vector.broadcast %183 : f32 to vector<2x256xf32>
    %193 = arith.mulf %192, %90 : vector<2x256xf32>
    %194 = arith.addf %191, %193 : vector<2x256xf32>
    %c2_87 = arith.constant 2 : index
    %195 = memref.load %arg6[%c2_87] : memref<8xf32, #tpu.memory_space<smem>>
    %196 = vector.broadcast %195 : f32 to vector<2x256xf32>
    %197 = arith.addf %194, %196 : vector<2x256xf32>
    %cst_88 = arith.constant 0.000000e+00 : f32
    %198 = vector.broadcast %cst_88 : f32 to vector<2x256xf32>
    %199 = arith.cmpf ogt, %197, %198 : vector<2x256xf32>
    %cst_89 = arith.constant 0.000000e+00 : f32
    %200 = vector.broadcast %cst_89 : f32 to vector<2x256xf32>
    %201 = arith.select %199, %179, %200 : vector<2x256xi1>, vector<2x256xf32>
    %202 = vector.broadcast %180 : f32 to vector<2x256xf32>
    %203 = arith.mulf %202, %201 : vector<2x256xf32>
    %204 = arith.addf %167, %203 : vector<2x256xf32>
    %205 = vector.broadcast %181 : f32 to vector<2x256xf32>
    %206 = arith.mulf %205, %201 : vector<2x256xf32>
    %207 = arith.addf %170, %206 : vector<2x256xf32>
    %208 = vector.broadcast %182 : f32 to vector<2x256xf32>
    %209 = arith.mulf %208, %201 : vector<2x256xf32>
    %210 = arith.addf %173, %209 : vector<2x256xf32>
    %211 = vector.broadcast %183 : f32 to vector<2x256xf32>
    %212 = arith.mulf %211, %201 : vector<2x256xf32>
    %213 = arith.addf %176, %212 : vector<2x256xf32>
    %c3_90 = arith.constant 3 : index
    %c0_91 = arith.constant 0 : index
    %c0_92 = arith.constant 0 : index
    %214 = vector.load %arg3[%c3_90, %c0_91, %c0_92] : memref<8x8x256xbf16, #tpu.memory_space<vmem>>, vector<1x8x256xbf16>
    %215 = vector.shape_cast %214 : vector<1x8x256xbf16> to vector<8x256xbf16>
    %cst_93 = arith.constant dense<0.000000e+00> : vector<2x256xf32>
    %216 = tpu.matmul %34, %215, %cst_93 {dimension_numbers = #tpu.dot_dimension_numbers<[1], [0], [0], [1], [0, 0, 1, 1], [], []>} : vector<2x8xbf16>, vector<8x256xbf16>, vector<2x256xf32> -> vector<2x256xf32>
    %c3_94 = arith.constant 3 : index
    %c0_95 = arith.constant 0 : index
    %217 = memref.load %arg5[%c3_94, %c0_95] : memref<8x4xf32, #tpu.memory_space<smem>>
    %c3_96 = arith.constant 3 : index
    %c1_97 = arith.constant 1 : index
    %218 = memref.load %arg5[%c3_96, %c1_97] : memref<8x4xf32, #tpu.memory_space<smem>>
    %c3_98 = arith.constant 3 : index
    %c2_99 = arith.constant 2 : index
    %219 = memref.load %arg5[%c3_98, %c2_99] : memref<8x4xf32, #tpu.memory_space<smem>>
    %c3_100 = arith.constant 3 : index
    %c3_101 = arith.constant 3 : index
    %220 = memref.load %arg5[%c3_100, %c3_101] : memref<8x4xf32, #tpu.memory_space<smem>>
    %221 = vector.broadcast %217 : f32 to vector<2x256xf32>
    %222 = arith.mulf %221, %36 : vector<2x256xf32>
    %223 = vector.broadcast %218 : f32 to vector<2x256xf32>
    %224 = arith.mulf %223, %54 : vector<2x256xf32>
    %225 = arith.addf %222, %224 : vector<2x256xf32>
    %226 = vector.broadcast %219 : f32 to vector<2x256xf32>
    %227 = arith.mulf %226, %72 : vector<2x256xf32>
    %228 = arith.addf %225, %227 : vector<2x256xf32>
    %229 = vector.broadcast %220 : f32 to vector<2x256xf32>
    %230 = arith.mulf %229, %90 : vector<2x256xf32>
    %231 = arith.addf %228, %230 : vector<2x256xf32>
    %c3_102 = arith.constant 3 : index
    %232 = memref.load %arg6[%c3_102] : memref<8xf32, #tpu.memory_space<smem>>
    %233 = vector.broadcast %232 : f32 to vector<2x256xf32>
    %234 = arith.addf %231, %233 : vector<2x256xf32>
    %cst_103 = arith.constant 0.000000e+00 : f32
    %235 = vector.broadcast %cst_103 : f32 to vector<2x256xf32>
    %236 = arith.cmpf ogt, %234, %235 : vector<2x256xf32>
    %cst_104 = arith.constant 0.000000e+00 : f32
    %237 = vector.broadcast %cst_104 : f32 to vector<2x256xf32>
    %238 = arith.select %236, %216, %237 : vector<2x256xi1>, vector<2x256xf32>
    %239 = vector.broadcast %217 : f32 to vector<2x256xf32>
    %240 = arith.mulf %239, %238 : vector<2x256xf32>
    %241 = arith.addf %204, %240 : vector<2x256xf32>
    %242 = vector.broadcast %218 : f32 to vector<2x256xf32>
    %243 = arith.mulf %242, %238 : vector<2x256xf32>
    %244 = arith.addf %207, %243 : vector<2x256xf32>
    %245 = vector.broadcast %219 : f32 to vector<2x256xf32>
    %246 = arith.mulf %245, %238 : vector<2x256xf32>
    %247 = arith.addf %210, %246 : vector<2x256xf32>
    %248 = vector.broadcast %220 : f32 to vector<2x256xf32>
    %249 = arith.mulf %248, %238 : vector<2x256xf32>
    %250 = arith.addf %213, %249 : vector<2x256xf32>
    %c4 = arith.constant 4 : index
    %c0_105 = arith.constant 0 : index
    %c0_106 = arith.constant 0 : index
    %251 = vector.load %arg3[%c4, %c0_105, %c0_106] : memref<8x8x256xbf16, #tpu.memory_space<vmem>>, vector<1x8x256xbf16>
    %252 = vector.shape_cast %251 : vector<1x8x256xbf16> to vector<8x256xbf16>
    %cst_107 = arith.constant dense<0.000000e+00> : vector<2x256xf32>
    %253 = tpu.matmul %34, %252, %cst_107 {dimension_numbers = #tpu.dot_dimension_numbers<[1], [0], [0], [1], [0, 0, 1, 1], [], []>} : vector<2x8xbf16>, vector<8x256xbf16>, vector<2x256xf32> -> vector<2x256xf32>
    %c4_108 = arith.constant 4 : index
    %c0_109 = arith.constant 0 : index
    %254 = memref.load %arg5[%c4_108, %c0_109] : memref<8x4xf32, #tpu.memory_space<smem>>
    %c4_110 = arith.constant 4 : index
    %c1_111 = arith.constant 1 : index
    %255 = memref.load %arg5[%c4_110, %c1_111] : memref<8x4xf32, #tpu.memory_space<smem>>
    %c4_112 = arith.constant 4 : index
    %c2_113 = arith.constant 2 : index
    %256 = memref.load %arg5[%c4_112, %c2_113] : memref<8x4xf32, #tpu.memory_space<smem>>
    %c4_114 = arith.constant 4 : index
    %c3_115 = arith.constant 3 : index
    %257 = memref.load %arg5[%c4_114, %c3_115] : memref<8x4xf32, #tpu.memory_space<smem>>
    %258 = vector.broadcast %254 : f32 to vector<2x256xf32>
    %259 = arith.mulf %258, %36 : vector<2x256xf32>
    %260 = vector.broadcast %255 : f32 to vector<2x256xf32>
    %261 = arith.mulf %260, %54 : vector<2x256xf32>
    %262 = arith.addf %259, %261 : vector<2x256xf32>
    %263 = vector.broadcast %256 : f32 to vector<2x256xf32>
    %264 = arith.mulf %263, %72 : vector<2x256xf32>
    %265 = arith.addf %262, %264 : vector<2x256xf32>
    %266 = vector.broadcast %257 : f32 to vector<2x256xf32>
    %267 = arith.mulf %266, %90 : vector<2x256xf32>
    %268 = arith.addf %265, %267 : vector<2x256xf32>
    %c4_116 = arith.constant 4 : index
    %269 = memref.load %arg6[%c4_116] : memref<8xf32, #tpu.memory_space<smem>>
    %270 = vector.broadcast %269 : f32 to vector<2x256xf32>
    %271 = arith.addf %268, %270 : vector<2x256xf32>
    %cst_117 = arith.constant 0.000000e+00 : f32
    %272 = vector.broadcast %cst_117 : f32 to vector<2x256xf32>
    %273 = arith.cmpf ogt, %271, %272 : vector<2x256xf32>
    %cst_118 = arith.constant 0.000000e+00 : f32
    %274 = vector.broadcast %cst_118 : f32 to vector<2x256xf32>
    %275 = arith.select %273, %253, %274 : vector<2x256xi1>, vector<2x256xf32>
    %276 = vector.broadcast %254 : f32 to vector<2x256xf32>
    %277 = arith.mulf %276, %275 : vector<2x256xf32>
    %278 = arith.addf %241, %277 : vector<2x256xf32>
    %279 = vector.broadcast %255 : f32 to vector<2x256xf32>
    %280 = arith.mulf %279, %275 : vector<2x256xf32>
    %281 = arith.addf %244, %280 : vector<2x256xf32>
    %282 = vector.broadcast %256 : f32 to vector<2x256xf32>
    %283 = arith.mulf %282, %275 : vector<2x256xf32>
    %284 = arith.addf %247, %283 : vector<2x256xf32>
    %285 = vector.broadcast %257 : f32 to vector<2x256xf32>
    %286 = arith.mulf %285, %275 : vector<2x256xf32>
    %287 = arith.addf %250, %286 : vector<2x256xf32>
    %c5 = arith.constant 5 : index
    %c0_119 = arith.constant 0 : index
    %c0_120 = arith.constant 0 : index
    %288 = vector.load %arg3[%c5, %c0_119, %c0_120] : memref<8x8x256xbf16, #tpu.memory_space<vmem>>, vector<1x8x256xbf16>
    %289 = vector.shape_cast %288 : vector<1x8x256xbf16> to vector<8x256xbf16>
    %cst_121 = arith.constant dense<0.000000e+00> : vector<2x256xf32>
    %290 = tpu.matmul %34, %289, %cst_121 {dimension_numbers = #tpu.dot_dimension_numbers<[1], [0], [0], [1], [0, 0, 1, 1], [], []>} : vector<2x8xbf16>, vector<8x256xbf16>, vector<2x256xf32> -> vector<2x256xf32>
    %c5_122 = arith.constant 5 : index
    %c0_123 = arith.constant 0 : index
    %291 = memref.load %arg5[%c5_122, %c0_123] : memref<8x4xf32, #tpu.memory_space<smem>>
    %c5_124 = arith.constant 5 : index
    %c1_125 = arith.constant 1 : index
    %292 = memref.load %arg5[%c5_124, %c1_125] : memref<8x4xf32, #tpu.memory_space<smem>>
    %c5_126 = arith.constant 5 : index
    %c2_127 = arith.constant 2 : index
    %293 = memref.load %arg5[%c5_126, %c2_127] : memref<8x4xf32, #tpu.memory_space<smem>>
    %c5_128 = arith.constant 5 : index
    %c3_129 = arith.constant 3 : index
    %294 = memref.load %arg5[%c5_128, %c3_129] : memref<8x4xf32, #tpu.memory_space<smem>>
    %295 = vector.broadcast %291 : f32 to vector<2x256xf32>
    %296 = arith.mulf %295, %36 : vector<2x256xf32>
    %297 = vector.broadcast %292 : f32 to vector<2x256xf32>
    %298 = arith.mulf %297, %54 : vector<2x256xf32>
    %299 = arith.addf %296, %298 : vector<2x256xf32>
    %300 = vector.broadcast %293 : f32 to vector<2x256xf32>
    %301 = arith.mulf %300, %72 : vector<2x256xf32>
    %302 = arith.addf %299, %301 : vector<2x256xf32>
    %303 = vector.broadcast %294 : f32 to vector<2x256xf32>
    %304 = arith.mulf %303, %90 : vector<2x256xf32>
    %305 = arith.addf %302, %304 : vector<2x256xf32>
    %c5_130 = arith.constant 5 : index
    %306 = memref.load %arg6[%c5_130] : memref<8xf32, #tpu.memory_space<smem>>
    %307 = vector.broadcast %306 : f32 to vector<2x256xf32>
    %308 = arith.addf %305, %307 : vector<2x256xf32>
    %cst_131 = arith.constant 0.000000e+00 : f32
    %309 = vector.broadcast %cst_131 : f32 to vector<2x256xf32>
    %310 = arith.cmpf ogt, %308, %309 : vector<2x256xf32>
    %cst_132 = arith.constant 0.000000e+00 : f32
    %311 = vector.broadcast %cst_132 : f32 to vector<2x256xf32>
    %312 = arith.select %310, %290, %311 : vector<2x256xi1>, vector<2x256xf32>
    %313 = vector.broadcast %291 : f32 to vector<2x256xf32>
    %314 = arith.mulf %313, %312 : vector<2x256xf32>
    %315 = arith.addf %278, %314 : vector<2x256xf32>
    %316 = vector.broadcast %292 : f32 to vector<2x256xf32>
    %317 = arith.mulf %316, %312 : vector<2x256xf32>
    %318 = arith.addf %281, %317 : vector<2x256xf32>
    %319 = vector.broadcast %293 : f32 to vector<2x256xf32>
    %320 = arith.mulf %319, %312 : vector<2x256xf32>
    %321 = arith.addf %284, %320 : vector<2x256xf32>
    %322 = vector.broadcast %294 : f32 to vector<2x256xf32>
    %323 = arith.mulf %322, %312 : vector<2x256xf32>
    %324 = arith.addf %287, %323 : vector<2x256xf32>
    %c6 = arith.constant 6 : index
    %c0_133 = arith.constant 0 : index
    %c0_134 = arith.constant 0 : index
    %325 = vector.load %arg3[%c6, %c0_133, %c0_134] : memref<8x8x256xbf16, #tpu.memory_space<vmem>>, vector<1x8x256xbf16>
    %326 = vector.shape_cast %325 : vector<1x8x256xbf16> to vector<8x256xbf16>
    %cst_135 = arith.constant dense<0.000000e+00> : vector<2x256xf32>
    %327 = tpu.matmul %34, %326, %cst_135 {dimension_numbers = #tpu.dot_dimension_numbers<[1], [0], [0], [1], [0, 0, 1, 1], [], []>} : vector<2x8xbf16>, vector<8x256xbf16>, vector<2x256xf32> -> vector<2x256xf32>
    %c6_136 = arith.constant 6 : index
    %c0_137 = arith.constant 0 : index
    %328 = memref.load %arg5[%c6_136, %c0_137] : memref<8x4xf32, #tpu.memory_space<smem>>
    %c6_138 = arith.constant 6 : index
    %c1_139 = arith.constant 1 : index
    %329 = memref.load %arg5[%c6_138, %c1_139] : memref<8x4xf32, #tpu.memory_space<smem>>
    %c6_140 = arith.constant 6 : index
    %c2_141 = arith.constant 2 : index
    %330 = memref.load %arg5[%c6_140, %c2_141] : memref<8x4xf32, #tpu.memory_space<smem>>
    %c6_142 = arith.constant 6 : index
    %c3_143 = arith.constant 3 : index
    %331 = memref.load %arg5[%c6_142, %c3_143] : memref<8x4xf32, #tpu.memory_space<smem>>
    %332 = vector.broadcast %328 : f32 to vector<2x256xf32>
    %333 = arith.mulf %332, %36 : vector<2x256xf32>
    %334 = vector.broadcast %329 : f32 to vector<2x256xf32>
    %335 = arith.mulf %334, %54 : vector<2x256xf32>
    %336 = arith.addf %333, %335 : vector<2x256xf32>
    %337 = vector.broadcast %330 : f32 to vector<2x256xf32>
    %338 = arith.mulf %337, %72 : vector<2x256xf32>
    %339 = arith.addf %336, %338 : vector<2x256xf32>
    %340 = vector.broadcast %331 : f32 to vector<2x256xf32>
    %341 = arith.mulf %340, %90 : vector<2x256xf32>
    %342 = arith.addf %339, %341 : vector<2x256xf32>
    %c6_144 = arith.constant 6 : index
    %343 = memref.load %arg6[%c6_144] : memref<8xf32, #tpu.memory_space<smem>>
    %344 = vector.broadcast %343 : f32 to vector<2x256xf32>
    %345 = arith.addf %342, %344 : vector<2x256xf32>
    %cst_145 = arith.constant 0.000000e+00 : f32
    %346 = vector.broadcast %cst_145 : f32 to vector<2x256xf32>
    %347 = arith.cmpf ogt, %345, %346 : vector<2x256xf32>
    %cst_146 = arith.constant 0.000000e+00 : f32
    %348 = vector.broadcast %cst_146 : f32 to vector<2x256xf32>
    %349 = arith.select %347, %327, %348 : vector<2x256xi1>, vector<2x256xf32>
    %350 = vector.broadcast %328 : f32 to vector<2x256xf32>
    %351 = arith.mulf %350, %349 : vector<2x256xf32>
    %352 = arith.addf %315, %351 : vector<2x256xf32>
    %353 = vector.broadcast %329 : f32 to vector<2x256xf32>
    %354 = arith.mulf %353, %349 : vector<2x256xf32>
    %355 = arith.addf %318, %354 : vector<2x256xf32>
    %356 = vector.broadcast %330 : f32 to vector<2x256xf32>
    %357 = arith.mulf %356, %349 : vector<2x256xf32>
    %358 = arith.addf %321, %357 : vector<2x256xf32>
    %359 = vector.broadcast %331 : f32 to vector<2x256xf32>
    %360 = arith.mulf %359, %349 : vector<2x256xf32>
    %361 = arith.addf %324, %360 : vector<2x256xf32>
    %c7 = arith.constant 7 : index
    %c0_147 = arith.constant 0 : index
    %c0_148 = arith.constant 0 : index
    %362 = vector.load %arg3[%c7, %c0_147, %c0_148] : memref<8x8x256xbf16, #tpu.memory_space<vmem>>, vector<1x8x256xbf16>
    %363 = vector.shape_cast %362 : vector<1x8x256xbf16> to vector<8x256xbf16>
    %cst_149 = arith.constant dense<0.000000e+00> : vector<2x256xf32>
    %364 = tpu.matmul %34, %363, %cst_149 {dimension_numbers = #tpu.dot_dimension_numbers<[1], [0], [0], [1], [0, 0, 1, 1], [], []>} : vector<2x8xbf16>, vector<8x256xbf16>, vector<2x256xf32> -> vector<2x256xf32>
    %c7_150 = arith.constant 7 : index
    %c0_151 = arith.constant 0 : index
    %365 = memref.load %arg5[%c7_150, %c0_151] : memref<8x4xf32, #tpu.memory_space<smem>>
    %c7_152 = arith.constant 7 : index
    %c1_153 = arith.constant 1 : index
    %366 = memref.load %arg5[%c7_152, %c1_153] : memref<8x4xf32, #tpu.memory_space<smem>>
    %c7_154 = arith.constant 7 : index
    %c2_155 = arith.constant 2 : index
    %367 = memref.load %arg5[%c7_154, %c2_155] : memref<8x4xf32, #tpu.memory_space<smem>>
    %c7_156 = arith.constant 7 : index
    %c3_157 = arith.constant 3 : index
    %368 = memref.load %arg5[%c7_156, %c3_157] : memref<8x4xf32, #tpu.memory_space<smem>>
    %369 = vector.broadcast %365 : f32 to vector<2x256xf32>
    %370 = arith.mulf %369, %36 : vector<2x256xf32>
    %371 = vector.broadcast %366 : f32 to vector<2x256xf32>
    %372 = arith.mulf %371, %54 : vector<2x256xf32>
    %373 = arith.addf %370, %372 : vector<2x256xf32>
    %374 = vector.broadcast %367 : f32 to vector<2x256xf32>
    %375 = arith.mulf %374, %72 : vector<2x256xf32>
    %376 = arith.addf %373, %375 : vector<2x256xf32>
    %377 = vector.broadcast %368 : f32 to vector<2x256xf32>
    %378 = arith.mulf %377, %90 : vector<2x256xf32>
    %379 = arith.addf %376, %378 : vector<2x256xf32>
    %c7_158 = arith.constant 7 : index
    %380 = memref.load %arg6[%c7_158] : memref<8xf32, #tpu.memory_space<smem>>
    %381 = vector.broadcast %380 : f32 to vector<2x256xf32>
    %382 = arith.addf %379, %381 : vector<2x256xf32>
    %cst_159 = arith.constant 0.000000e+00 : f32
    %383 = vector.broadcast %cst_159 : f32 to vector<2x256xf32>
    %384 = arith.cmpf ogt, %382, %383 : vector<2x256xf32>
    %cst_160 = arith.constant 0.000000e+00 : f32
    %385 = vector.broadcast %cst_160 : f32 to vector<2x256xf32>
    %386 = arith.select %384, %364, %385 : vector<2x256xi1>, vector<2x256xf32>
    %387 = vector.broadcast %365 : f32 to vector<2x256xf32>
    %388 = arith.mulf %387, %386 : vector<2x256xf32>
    %389 = arith.addf %352, %388 : vector<2x256xf32>
    %390 = vector.broadcast %366 : f32 to vector<2x256xf32>
    %391 = arith.mulf %390, %386 : vector<2x256xf32>
    %392 = arith.addf %355, %391 : vector<2x256xf32>
    %393 = vector.broadcast %367 : f32 to vector<2x256xf32>
    %394 = arith.mulf %393, %386 : vector<2x256xf32>
    %395 = arith.addf %358, %394 : vector<2x256xf32>
    %396 = vector.broadcast %368 : f32 to vector<2x256xf32>
    %397 = arith.mulf %396, %386 : vector<2x256xf32>
    %398 = arith.addf %361, %397 : vector<2x256xf32>
    %cst_161 = arith.constant 0.000000e+00 : f32
    %399 = vector.broadcast %cst_161 : f32 to vector<1x1xf32>
    %cst_162 = arith.constant 0.000000e+00 : f32
    %400 = vector.broadcast %cst_162 : f32 to vector<1x1xf32>
    %cst_163 = arith.constant dense<0.000000e+00> : vector<2xf32>
    %401 = vector.multi_reduction <add>, %389, %cst_163 [1] : vector<2x256xf32> to vector<2xf32>
    %402 = vector.shape_cast %401 : vector<2xf32> to vector<2x1xf32>
    %403 = arith.mulf %389, %36 : vector<2x256xf32>
    %cst_164 = arith.constant dense<0.000000e+00> : vector<2xf32>
    %404 = vector.multi_reduction <add>, %403, %cst_164 [1] : vector<2x256xf32> to vector<2xf32>
    %405 = vector.shape_cast %404 : vector<2xf32> to vector<2x1xf32>
    %406 = arith.mulf %40, %402 : vector<2x1xf32>
    %407 = arith.subf %405, %406 : vector<2x1xf32>
    %408 = arith.mulf %407, %52 : vector<2x1xf32>
    %409 = arith.mulf %402, %402 : vector<2x1xf32>
    %410 = vector.shape_cast %409 : vector<2x1xf32> to vector<1x2x1xf32>
    %cst_165 = arith.constant dense<0.000000e+00> : vector<1xf32>
    %411 = vector.multi_reduction <add>, %410, %cst_165 [1, 2] : vector<1x2x1xf32> to vector<1xf32>
    %412 = vector.shape_cast %411 : vector<1xf32> to vector<1x1x1xf32>
    %413 = vector.extract %412[0, 0, 0] : f32 from vector<1x1x1xf32>
    %414 = vector.broadcast %413 : f32 to vector<1x1xf32>
    %415 = arith.addf %399, %414 : vector<1x1xf32>
    %416 = arith.mulf %408, %408 : vector<2x1xf32>
    %417 = vector.shape_cast %416 : vector<2x1xf32> to vector<1x2x1xf32>
    %cst_166 = arith.constant dense<0.000000e+00> : vector<1xf32>
    %418 = vector.multi_reduction <add>, %417, %cst_166 [1, 2] : vector<1x2x1xf32> to vector<1xf32>
    %419 = vector.shape_cast %418 : vector<1xf32> to vector<1x1x1xf32>
    %420 = vector.extract %419[0, 0, 0] : f32 from vector<1x1x1xf32>
    %421 = vector.broadcast %420 : f32 to vector<1x1xf32>
    %422 = arith.addf %400, %421 : vector<1x1xf32>
    %cst_167 = arith.constant dense<0.000000e+00> : vector<2xf32>
    %423 = vector.multi_reduction <add>, %392, %cst_167 [1] : vector<2x256xf32> to vector<2xf32>
    %424 = vector.shape_cast %423 : vector<2xf32> to vector<2x1xf32>
    %425 = arith.mulf %392, %54 : vector<2x256xf32>
    %cst_168 = arith.constant dense<0.000000e+00> : vector<2xf32>
    %426 = vector.multi_reduction <add>, %425, %cst_168 [1] : vector<2x256xf32> to vector<2xf32>
    %427 = vector.shape_cast %426 : vector<2xf32> to vector<2x1xf32>
    %428 = arith.mulf %58, %424 : vector<2x1xf32>
    %429 = arith.subf %427, %428 : vector<2x1xf32>
    %430 = arith.mulf %429, %70 : vector<2x1xf32>
    %431 = arith.mulf %424, %424 : vector<2x1xf32>
    %432 = vector.shape_cast %431 : vector<2x1xf32> to vector<1x2x1xf32>
    %cst_169 = arith.constant dense<0.000000e+00> : vector<1xf32>
    %433 = vector.multi_reduction <add>, %432, %cst_169 [1, 2] : vector<1x2x1xf32> to vector<1xf32>
    %434 = vector.shape_cast %433 : vector<1xf32> to vector<1x1x1xf32>
    %435 = vector.extract %434[0, 0, 0] : f32 from vector<1x1x1xf32>
    %436 = vector.broadcast %435 : f32 to vector<1x1xf32>
    %437 = arith.addf %415, %436 : vector<1x1xf32>
    %438 = arith.mulf %430, %430 : vector<2x1xf32>
    %439 = vector.shape_cast %438 : vector<2x1xf32> to vector<1x2x1xf32>
    %cst_170 = arith.constant dense<0.000000e+00> : vector<1xf32>
    %440 = vector.multi_reduction <add>, %439, %cst_170 [1, 2] : vector<1x2x1xf32> to vector<1xf32>
    %441 = vector.shape_cast %440 : vector<1xf32> to vector<1x1x1xf32>
    %442 = vector.extract %441[0, 0, 0] : f32 from vector<1x1x1xf32>
    %443 = vector.broadcast %442 : f32 to vector<1x1xf32>
    %444 = arith.addf %422, %443 : vector<1x1xf32>
    %cst_171 = arith.constant dense<0.000000e+00> : vector<2xf32>
    %445 = vector.multi_reduction <add>, %395, %cst_171 [1] : vector<2x256xf32> to vector<2xf32>
    %446 = vector.shape_cast %445 : vector<2xf32> to vector<2x1xf32>
    %447 = arith.mulf %395, %72 : vector<2x256xf32>
    %cst_172 = arith.constant dense<0.000000e+00> : vector<2xf32>
    %448 = vector.multi_reduction <add>, %447, %cst_172 [1] : vector<2x256xf32> to vector<2xf32>
    %449 = vector.shape_cast %448 : vector<2xf32> to vector<2x1xf32>
    %450 = arith.mulf %76, %446 : vector<2x1xf32>
    %451 = arith.subf %449, %450 : vector<2x1xf32>
    %452 = arith.mulf %451, %88 : vector<2x1xf32>
    %453 = arith.mulf %446, %446 : vector<2x1xf32>
    %454 = vector.shape_cast %453 : vector<2x1xf32> to vector<1x2x1xf32>
    %cst_173 = arith.constant dense<0.000000e+00> : vector<1xf32>
    %455 = vector.multi_reduction <add>, %454, %cst_173 [1, 2] : vector<1x2x1xf32> to vector<1xf32>
    %456 = vector.shape_cast %455 : vector<1xf32> to vector<1x1x1xf32>
    %457 = vector.extract %456[0, 0, 0] : f32 from vector<1x1x1xf32>
    %458 = vector.broadcast %457 : f32 to vector<1x1xf32>
    %459 = arith.addf %437, %458 : vector<1x1xf32>
    %460 = arith.mulf %452, %452 : vector<2x1xf32>
    %461 = vector.shape_cast %460 : vector<2x1xf32> to vector<1x2x1xf32>
    %cst_174 = arith.constant dense<0.000000e+00> : vector<1xf32>
    %462 = vector.multi_reduction <add>, %461, %cst_174 [1, 2] : vector<1x2x1xf32> to vector<1xf32>
    %463 = vector.shape_cast %462 : vector<1xf32> to vector<1x1x1xf32>
    %464 = vector.extract %463[0, 0, 0] : f32 from vector<1x1x1xf32>
    %465 = vector.broadcast %464 : f32 to vector<1x1xf32>
    %466 = arith.addf %444, %465 : vector<1x1xf32>
    %cst_175 = arith.constant dense<0.000000e+00> : vector<2xf32>
    %467 = vector.multi_reduction <add>, %398, %cst_175 [1] : vector<2x256xf32> to vector<2xf32>
    %468 = vector.shape_cast %467 : vector<2xf32> to vector<2x1xf32>
    %469 = arith.mulf %398, %90 : vector<2x256xf32>
    %cst_176 = arith.constant dense<0.000000e+00> : vector<2xf32>
    %470 = vector.multi_reduction <add>, %469, %cst_176 [1] : vector<2x256xf32> to vector<2xf32>
    %471 = vector.shape_cast %470 : vector<2xf32> to vector<2x1xf32>
    %472 = arith.mulf %94, %468 : vector<2x1xf32>
    %473 = arith.subf %471, %472 : vector<2x1xf32>
    %474 = arith.mulf %473, %106 : vector<2x1xf32>
    %475 = arith.mulf %468, %468 : vector<2x1xf32>
    %476 = vector.shape_cast %475 : vector<2x1xf32> to vector<1x2x1xf32>
    %cst_177 = arith.constant dense<0.000000e+00> : vector<1xf32>
    %477 = vector.multi_reduction <add>, %476, %cst_177 [1, 2] : vector<1x2x1xf32> to vector<1xf32>
    %478 = vector.shape_cast %477 : vector<1xf32> to vector<1x1x1xf32>
    %479 = vector.extract %478[0, 0, 0] : f32 from vector<1x1x1xf32>
    %480 = vector.broadcast %479 : f32 to vector<1x1xf32>
    %481 = arith.addf %459, %480 : vector<1x1xf32>
    %482 = arith.mulf %474, %474 : vector<2x1xf32>
    %483 = vector.shape_cast %482 : vector<2x1xf32> to vector<1x2x1xf32>
    %cst_178 = arith.constant dense<0.000000e+00> : vector<1xf32>
    %484 = vector.multi_reduction <add>, %483, %cst_178 [1, 2] : vector<1x2x1xf32> to vector<1xf32>
    %485 = vector.shape_cast %484 : vector<1xf32> to vector<1x1x1xf32>
    %486 = vector.extract %485[0, 0, 0] : f32 from vector<1x1x1xf32>
    %487 = vector.broadcast %486 : f32 to vector<1x1xf32>
    %488 = arith.addf %466, %487 : vector<1x1xf32>
    %489 = math.sqrt %481 : vector<1x1xf32>
    %cst_179 = arith.constant 9.99999993E-9 : f32
    %490 = vector.broadcast %cst_179 : f32 to vector<1x1xf32>
    %491 = arith.addf %489, %490 : vector<1x1xf32>
    %cst_180 = arith.constant 5.000000e-01 : f32
    %492 = vector.broadcast %cst_180 : f32 to vector<1x1xf32>
    %493 = arith.divf %492, %491 : vector<1x1xf32>
    %494 = math.sqrt %488 : vector<1x1xf32>
    %cst_181 = arith.constant 9.99999993E-9 : f32
    %495 = vector.broadcast %cst_181 : f32 to vector<1x1xf32>
    %496 = arith.addf %494, %495 : vector<1x1xf32>
    %cst_182 = arith.constant 5.000000e-01 : f32
    %497 = vector.broadcast %cst_182 : f32 to vector<1x1xf32>
    %498 = arith.divf %497, %496 : vector<1x1xf32>
    %499 = vector.broadcast %498 : vector<1x1xf32> to vector<2x1xf32>
    %500 = arith.mulf %499, %408 : vector<2x1xf32>
    %501 = arith.mulf %500, %52 : vector<2x1xf32>
    %cst_183 = arith.constant 1.000000e+00 : f32
    %502 = vector.broadcast %cst_183 : f32 to vector<2x1xf32>
    %503 = arith.addf %502, %501 : vector<2x1xf32>
    %504 = vector.broadcast %493 : vector<1x1xf32> to vector<2x1xf32>
    %505 = arith.mulf %504, %402 : vector<2x1xf32>
    %cst_184 = arith.constant 1.000000e+00 : f32
    %506 = vector.broadcast %cst_184 : f32 to vector<2x1xf32>
    %507 = arith.subf %506, %503 : vector<2x1xf32>
    %508 = arith.mulf %40, %507 : vector<2x1xf32>
    %509 = arith.addf %505, %508 : vector<2x1xf32>
    %510 = vector.broadcast %503 : vector<2x1xf32> to vector<2x256xf32>
    %511 = arith.mulf %36, %510 : vector<2x256xf32>
    %512 = vector.broadcast %509 : vector<2x1xf32> to vector<2x256xf32>
    %513 = arith.addf %511, %512 : vector<2x256xf32>
    %514 = vector.broadcast %498 : vector<1x1xf32> to vector<2x1xf32>
    %515 = arith.mulf %514, %430 : vector<2x1xf32>
    %516 = arith.mulf %515, %70 : vector<2x1xf32>
    %cst_185 = arith.constant 1.000000e+00 : f32
    %517 = vector.broadcast %cst_185 : f32 to vector<2x1xf32>
    %518 = arith.addf %517, %516 : vector<2x1xf32>
    %519 = vector.broadcast %493 : vector<1x1xf32> to vector<2x1xf32>
    %520 = arith.mulf %519, %424 : vector<2x1xf32>
    %cst_186 = arith.constant 1.000000e+00 : f32
    %521 = vector.broadcast %cst_186 : f32 to vector<2x1xf32>
    %522 = arith.subf %521, %518 : vector<2x1xf32>
    %523 = arith.mulf %58, %522 : vector<2x1xf32>
    %524 = arith.addf %520, %523 : vector<2x1xf32>
    %525 = vector.broadcast %518 : vector<2x1xf32> to vector<2x256xf32>
    %526 = arith.mulf %54, %525 : vector<2x256xf32>
    %527 = vector.broadcast %524 : vector<2x1xf32> to vector<2x256xf32>
    %528 = arith.addf %526, %527 : vector<2x256xf32>
    %529 = vector.broadcast %498 : vector<1x1xf32> to vector<2x1xf32>
    %530 = arith.mulf %529, %452 : vector<2x1xf32>
    %531 = arith.mulf %530, %88 : vector<2x1xf32>
    %cst_187 = arith.constant 1.000000e+00 : f32
    %532 = vector.broadcast %cst_187 : f32 to vector<2x1xf32>
    %533 = arith.addf %532, %531 : vector<2x1xf32>
    %534 = vector.broadcast %493 : vector<1x1xf32> to vector<2x1xf32>
    %535 = arith.mulf %534, %446 : vector<2x1xf32>
    %cst_188 = arith.constant 1.000000e+00 : f32
    %536 = vector.broadcast %cst_188 : f32 to vector<2x1xf32>
    %537 = arith.subf %536, %533 : vector<2x1xf32>
    %538 = arith.mulf %76, %537 : vector<2x1xf32>
    %539 = arith.addf %535, %538 : vector<2x1xf32>
    %540 = vector.broadcast %533 : vector<2x1xf32> to vector<2x256xf32>
    %541 = arith.mulf %72, %540 : vector<2x256xf32>
    %542 = vector.broadcast %539 : vector<2x1xf32> to vector<2x256xf32>
    %543 = arith.addf %541, %542 : vector<2x256xf32>
    %544 = vector.broadcast %498 : vector<1x1xf32> to vector<2x1xf32>
    %545 = arith.mulf %544, %474 : vector<2x1xf32>
    %546 = arith.mulf %545, %106 : vector<2x1xf32>
    %cst_189 = arith.constant 1.000000e+00 : f32
    %547 = vector.broadcast %cst_189 : f32 to vector<2x1xf32>
    %548 = arith.addf %547, %546 : vector<2x1xf32>
    %549 = vector.broadcast %493 : vector<1x1xf32> to vector<2x1xf32>
    %550 = arith.mulf %549, %468 : vector<2x1xf32>
    %cst_190 = arith.constant 1.000000e+00 : f32
    %551 = vector.broadcast %cst_190 : f32 to vector<2x1xf32>
    %552 = arith.subf %551, %548 : vector<2x1xf32>
    %553 = arith.mulf %94, %552 : vector<2x1xf32>
    %554 = arith.addf %550, %553 : vector<2x1xf32>
    %555 = vector.broadcast %548 : vector<2x1xf32> to vector<2x256xf32>
    %556 = arith.mulf %90, %555 : vector<2x256xf32>
    %557 = vector.broadcast %554 : vector<2x1xf32> to vector<2x256xf32>
    %558 = arith.addf %556, %557 : vector<2x256xf32>
    %c0_191 = arith.constant 0 : index
    %c0_192 = arith.constant 0 : index
    %559 = memref.load %arg5[%c0_191, %c0_192] : memref<8x4xf32, #tpu.memory_space<smem>>
    %c0_193 = arith.constant 0 : index
    %c1_194 = arith.constant 1 : index
    %560 = memref.load %arg5[%c0_193, %c1_194] : memref<8x4xf32, #tpu.memory_space<smem>>
    %c0_195 = arith.constant 0 : index
    %c2_196 = arith.constant 2 : index
    %561 = memref.load %arg5[%c0_195, %c2_196] : memref<8x4xf32, #tpu.memory_space<smem>>
    %c0_197 = arith.constant 0 : index
    %c3_198 = arith.constant 3 : index
    %562 = memref.load %arg5[%c0_197, %c3_198] : memref<8x4xf32, #tpu.memory_space<smem>>
    %563 = vector.broadcast %559 : f32 to vector<2x256xf32>
    %564 = arith.mulf %563, %513 : vector<2x256xf32>
    %565 = vector.broadcast %560 : f32 to vector<2x256xf32>
    %566 = arith.mulf %565, %528 : vector<2x256xf32>
    %567 = arith.addf %564, %566 : vector<2x256xf32>
    %568 = vector.broadcast %561 : f32 to vector<2x256xf32>
    %569 = arith.mulf %568, %543 : vector<2x256xf32>
    %570 = arith.addf %567, %569 : vector<2x256xf32>
    %571 = vector.broadcast %562 : f32 to vector<2x256xf32>
    %572 = arith.mulf %571, %558 : vector<2x256xf32>
    %573 = arith.addf %570, %572 : vector<2x256xf32>
    %c0_199 = arith.constant 0 : index
    %574 = memref.load %arg6[%c0_199] : memref<8xf32, #tpu.memory_space<smem>>
    %575 = vector.broadcast %574 : f32 to vector<2x256xf32>
    %576 = arith.addf %573, %575 : vector<2x256xf32>
    %cst_200 = arith.constant 0.000000e+00 : f32
    %577 = vector.broadcast %cst_200 : f32 to vector<2x256xf32>
    %578 = arith.maximumf %576, %577 : vector<2x256xf32>
    %579 = arith.truncf %578 : vector<2x256xf32> to vector<2x256xbf16>
    %c0_201 = arith.constant 0 : index
    %c0_202 = arith.constant 0 : index
    %c0_203 = arith.constant 0 : index
    %580 = vector.load %arg3[%c0_201, %c0_202, %c0_203] : memref<8x8x256xbf16, #tpu.memory_space<vmem>>, vector<1x8x256xbf16>
    %581 = vector.shape_cast %580 : vector<1x8x256xbf16> to vector<8x256xbf16>
    %cst_204 = arith.constant dense<0.000000e+00> : vector<2x8xf32>
    %582 = tpu.matmul %579, %581, %cst_204 {dimension_numbers = #tpu.dot_dimension_numbers<[1], [1], [0], [0], [0, 0, 1, 0], [], []>} : vector<2x256xbf16>, vector<8x256xbf16>, vector<2x8xf32> -> vector<2x8xf32>
    %c1_205 = arith.constant 1 : index
    %c0_206 = arith.constant 0 : index
    %583 = memref.load %arg5[%c1_205, %c0_206] : memref<8x4xf32, #tpu.memory_space<smem>>
    %c1_207 = arith.constant 1 : index
    %c1_208 = arith.constant 1 : index
    %584 = memref.load %arg5[%c1_207, %c1_208] : memref<8x4xf32, #tpu.memory_space<smem>>
    %c1_209 = arith.constant 1 : index
    %c2_210 = arith.constant 2 : index
    %585 = memref.load %arg5[%c1_209, %c2_210] : memref<8x4xf32, #tpu.memory_space<smem>>
    %c1_211 = arith.constant 1 : index
    %c3_212 = arith.constant 3 : index
    %586 = memref.load %arg5[%c1_211, %c3_212] : memref<8x4xf32, #tpu.memory_space<smem>>
    %587 = vector.broadcast %583 : f32 to vector<2x256xf32>
    %588 = arith.mulf %587, %513 : vector<2x256xf32>
    %589 = vector.broadcast %584 : f32 to vector<2x256xf32>
    %590 = arith.mulf %589, %528 : vector<2x256xf32>
    %591 = arith.addf %588, %590 : vector<2x256xf32>
    %592 = vector.broadcast %585 : f32 to vector<2x256xf32>
    %593 = arith.mulf %592, %543 : vector<2x256xf32>
    %594 = arith.addf %591, %593 : vector<2x256xf32>
    %595 = vector.broadcast %586 : f32 to vector<2x256xf32>
    %596 = arith.mulf %595, %558 : vector<2x256xf32>
    %597 = arith.addf %594, %596 : vector<2x256xf32>
    %c1_213 = arith.constant 1 : index
    %598 = memref.load %arg6[%c1_213] : memref<8xf32, #tpu.memory_space<smem>>
    %599 = vector.broadcast %598 : f32 to vector<2x256xf32>
    %600 = arith.addf %597, %599 : vector<2x256xf32>
    %cst_214 = arith.constant 0.000000e+00 : f32
    %601 = vector.broadcast %cst_214 : f32 to vector<2x256xf32>
    %602 = arith.maximumf %600, %601 : vector<2x256xf32>
    %603 = arith.truncf %602 : vector<2x256xf32> to vector<2x256xbf16>
    %c1_215 = arith.constant 1 : index
    %c0_216 = arith.constant 0 : index
    %c0_217 = arith.constant 0 : index
    %604 = vector.load %arg3[%c1_215, %c0_216, %c0_217] : memref<8x8x256xbf16, #tpu.memory_space<vmem>>, vector<1x8x256xbf16>
    %605 = vector.shape_cast %604 : vector<1x8x256xbf16> to vector<8x256xbf16>
    %cst_218 = arith.constant dense<0.000000e+00> : vector<2x8xf32>
    %606 = tpu.matmul %603, %605, %cst_218 {dimension_numbers = #tpu.dot_dimension_numbers<[1], [1], [0], [0], [0, 0, 1, 0], [], []>} : vector<2x256xbf16>, vector<8x256xbf16>, vector<2x8xf32> -> vector<2x8xf32>
    %607 = arith.addf %582, %606 : vector<2x8xf32>
    %c2_219 = arith.constant 2 : index
    %c0_220 = arith.constant 0 : index
    %608 = memref.load %arg5[%c2_219, %c0_220] : memref<8x4xf32, #tpu.memory_space<smem>>
    %c2_221 = arith.constant 2 : index
    %c1_222 = arith.constant 1 : index
    %609 = memref.load %arg5[%c2_221, %c1_222] : memref<8x4xf32, #tpu.memory_space<smem>>
    %c2_223 = arith.constant 2 : index
    %c2_224 = arith.constant 2 : index
    %610 = memref.load %arg5[%c2_223, %c2_224] : memref<8x4xf32, #tpu.memory_space<smem>>
    %c2_225 = arith.constant 2 : index
    %c3_226 = arith.constant 3 : index
    %611 = memref.load %arg5[%c2_225, %c3_226] : memref<8x4xf32, #tpu.memory_space<smem>>
    %612 = vector.broadcast %608 : f32 to vector<2x256xf32>
    %613 = arith.mulf %612, %513 : vector<2x256xf32>
    %614 = vector.broadcast %609 : f32 to vector<2x256xf32>
    %615 = arith.mulf %614, %528 : vector<2x256xf32>
    %616 = arith.addf %613, %615 : vector<2x256xf32>
    %617 = vector.broadcast %610 : f32 to vector<2x256xf32>
    %618 = arith.mulf %617, %543 : vector<2x256xf32>
    %619 = arith.addf %616, %618 : vector<2x256xf32>
    %620 = vector.broadcast %611 : f32 to vector<2x256xf32>
    %621 = arith.mulf %620, %558 : vector<2x256xf32>
    %622 = arith.addf %619, %621 : vector<2x256xf32>
    %c2_227 = arith.constant 2 : index
    %623 = memref.load %arg6[%c2_227] : memref<8xf32, #tpu.memory_space<smem>>
    %624 = vector.broadcast %623 : f32 to vector<2x256xf32>
    %625 = arith.addf %622, %624 : vector<2x256xf32>
    %cst_228 = arith.constant 0.000000e+00 : f32
    %626 = vector.broadcast %cst_228 : f32 to vector<2x256xf32>
    %627 = arith.maximumf %625, %626 : vector<2x256xf32>
    %628 = arith.truncf %627 : vector<2x256xf32> to vector<2x256xbf16>
    %c2_229 = arith.constant 2 : index
    %c0_230 = arith.constant 0 : index
    %c0_231 = arith.constant 0 : index
    %629 = vector.load %arg3[%c2_229, %c0_230, %c0_231] : memref<8x8x256xbf16, #tpu.memory_space<vmem>>, vector<1x8x256xbf16>
    %630 = vector.shape_cast %629 : vector<1x8x256xbf16> to vector<8x256xbf16>
    %cst_232 = arith.constant dense<0.000000e+00> : vector<2x8xf32>
    %631 = tpu.matmul %628, %630, %cst_232 {dimension_numbers = #tpu.dot_dimension_numbers<[1], [1], [0], [0], [0, 0, 1, 0], [], []>} : vector<2x256xbf16>, vector<8x256xbf16>, vector<2x8xf32> -> vector<2x8xf32>
    %632 = arith.addf %607, %631 : vector<2x8xf32>
    %c3_233 = arith.constant 3 : index
    %c0_234 = arith.constant 0 : index
    %633 = memref.load %arg5[%c3_233, %c0_234] : memref<8x4xf32, #tpu.memory_space<smem>>
    %c3_235 = arith.constant 3 : index
    %c1_236 = arith.constant 1 : index
    %634 = memref.load %arg5[%c3_235, %c1_236] : memref<8x4xf32, #tpu.memory_space<smem>>
    %c3_237 = arith.constant 3 : index
    %c2_238 = arith.constant 2 : index
    %635 = memref.load %arg5[%c3_237, %c2_238] : memref<8x4xf32, #tpu.memory_space<smem>>
    %c3_239 = arith.constant 3 : index
    %c3_240 = arith.constant 3 : index
    %636 = memref.load %arg5[%c3_239, %c3_240] : memref<8x4xf32, #tpu.memory_space<smem>>
    %637 = vector.broadcast %633 : f32 to vector<2x256xf32>
    %638 = arith.mulf %637, %513 : vector<2x256xf32>
    %639 = vector.broadcast %634 : f32 to vector<2x256xf32>
    %640 = arith.mulf %639, %528 : vector<2x256xf32>
    %641 = arith.addf %638, %640 : vector<2x256xf32>
    %642 = vector.broadcast %635 : f32 to vector<2x256xf32>
    %643 = arith.mulf %642, %543 : vector<2x256xf32>
    %644 = arith.addf %641, %643 : vector<2x256xf32>
    %645 = vector.broadcast %636 : f32 to vector<2x256xf32>
    %646 = arith.mulf %645, %558 : vector<2x256xf32>
    %647 = arith.addf %644, %646 : vector<2x256xf32>
    %c3_241 = arith.constant 3 : index
    %648 = memref.load %arg6[%c3_241] : memref<8xf32, #tpu.memory_space<smem>>
    %649 = vector.broadcast %648 : f32 to vector<2x256xf32>
    %650 = arith.addf %647, %649 : vector<2x256xf32>
    %cst_242 = arith.constant 0.000000e+00 : f32
    %651 = vector.broadcast %cst_242 : f32 to vector<2x256xf32>
    %652 = arith.maximumf %650, %651 : vector<2x256xf32>
    %653 = arith.truncf %652 : vector<2x256xf32> to vector<2x256xbf16>
    %c3_243 = arith.constant 3 : index
    %c0_244 = arith.constant 0 : index
    %c0_245 = arith.constant 0 : index
    %654 = vector.load %arg3[%c3_243, %c0_244, %c0_245] : memref<8x8x256xbf16, #tpu.memory_space<vmem>>, vector<1x8x256xbf16>
    %655 = vector.shape_cast %654 : vector<1x8x256xbf16> to vector<8x256xbf16>
    %cst_246 = arith.constant dense<0.000000e+00> : vector<2x8xf32>
    %656 = tpu.matmul %653, %655, %cst_246 {dimension_numbers = #tpu.dot_dimension_numbers<[1], [1], [0], [0], [0, 0, 1, 0], [], []>} : vector<2x256xbf16>, vector<8x256xbf16>, vector<2x8xf32> -> vector<2x8xf32>
    %657 = arith.addf %632, %656 : vector<2x8xf32>
    %c4_247 = arith.constant 4 : index
    %c0_248 = arith.constant 0 : index
    %658 = memref.load %arg5[%c4_247, %c0_248] : memref<8x4xf32, #tpu.memory_space<smem>>
    %c4_249 = arith.constant 4 : index
    %c1_250 = arith.constant 1 : index
    %659 = memref.load %arg5[%c4_249, %c1_250] : memref<8x4xf32, #tpu.memory_space<smem>>
    %c4_251 = arith.constant 4 : index
    %c2_252 = arith.constant 2 : index
    %660 = memref.load %arg5[%c4_251, %c2_252] : memref<8x4xf32, #tpu.memory_space<smem>>
    %c4_253 = arith.constant 4 : index
    %c3_254 = arith.constant 3 : index
    %661 = memref.load %arg5[%c4_253, %c3_254] : memref<8x4xf32, #tpu.memory_space<smem>>
    %662 = vector.broadcast %658 : f32 to vector<2x256xf32>
    %663 = arith.mulf %662, %513 : vector<2x256xf32>
    %664 = vector.broadcast %659 : f32 to vector<2x256xf32>
    %665 = arith.mulf %664, %528 : vector<2x256xf32>
    %666 = arith.addf %663, %665 : vector<2x256xf32>
    %667 = vector.broadcast %660 : f32 to vector<2x256xf32>
    %668 = arith.mulf %667, %543 : vector<2x256xf32>
    %669 = arith.addf %666, %668 : vector<2x256xf32>
    %670 = vector.broadcast %661 : f32 to vector<2x256xf32>
    %671 = arith.mulf %670, %558 : vector<2x256xf32>
    %672 = arith.addf %669, %671 : vector<2x256xf32>
    %c4_255 = arith.constant 4 : index
    %673 = memref.load %arg6[%c4_255] : memref<8xf32, #tpu.memory_space<smem>>
    %674 = vector.broadcast %673 : f32 to vector<2x256xf32>
    %675 = arith.addf %672, %674 : vector<2x256xf32>
    %cst_256 = arith.constant 0.000000e+00 : f32
    %676 = vector.broadcast %cst_256 : f32 to vector<2x256xf32>
    %677 = arith.maximumf %675, %676 : vector<2x256xf32>
    %678 = arith.truncf %677 : vector<2x256xf32> to vector<2x256xbf16>
    %c4_257 = arith.constant 4 : index
    %c0_258 = arith.constant 0 : index
    %c0_259 = arith.constant 0 : index
    %679 = vector.load %arg3[%c4_257, %c0_258, %c0_259] : memref<8x8x256xbf16, #tpu.memory_space<vmem>>, vector<1x8x256xbf16>
    %680 = vector.shape_cast %679 : vector<1x8x256xbf16> to vector<8x256xbf16>
    %cst_260 = arith.constant dense<0.000000e+00> : vector<2x8xf32>
    %681 = tpu.matmul %678, %680, %cst_260 {dimension_numbers = #tpu.dot_dimension_numbers<[1], [1], [0], [0], [0, 0, 1, 0], [], []>} : vector<2x256xbf16>, vector<8x256xbf16>, vector<2x8xf32> -> vector<2x8xf32>
    %682 = arith.addf %657, %681 : vector<2x8xf32>
    %c5_261 = arith.constant 5 : index
    %c0_262 = arith.constant 0 : index
    %683 = memref.load %arg5[%c5_261, %c0_262] : memref<8x4xf32, #tpu.memory_space<smem>>
    %c5_263 = arith.constant 5 : index
    %c1_264 = arith.constant 1 : index
    %684 = memref.load %arg5[%c5_263, %c1_264] : memref<8x4xf32, #tpu.memory_space<smem>>
    %c5_265 = arith.constant 5 : index
    %c2_266 = arith.constant 2 : index
    %685 = memref.load %arg5[%c5_265, %c2_266] : memref<8x4xf32, #tpu.memory_space<smem>>
    %c5_267 = arith.constant 5 : index
    %c3_268 = arith.constant 3 : index
    %686 = memref.load %arg5[%c5_267, %c3_268] : memref<8x4xf32, #tpu.memory_space<smem>>
    %687 = vector.broadcast %683 : f32 to vector<2x256xf32>
    %688 = arith.mulf %687, %513 : vector<2x256xf32>
    %689 = vector.broadcast %684 : f32 to vector<2x256xf32>
    %690 = arith.mulf %689, %528 : vector<2x256xf32>
    %691 = arith.addf %688, %690 : vector<2x256xf32>
    %692 = vector.broadcast %685 : f32 to vector<2x256xf32>
    %693 = arith.mulf %692, %543 : vector<2x256xf32>
    %694 = arith.addf %691, %693 : vector<2x256xf32>
    %695 = vector.broadcast %686 : f32 to vector<2x256xf32>
    %696 = arith.mulf %695, %558 : vector<2x256xf32>
    %697 = arith.addf %694, %696 : vector<2x256xf32>
    %c5_269 = arith.constant 5 : index
    %698 = memref.load %arg6[%c5_269] : memref<8xf32, #tpu.memory_space<smem>>
    %699 = vector.broadcast %698 : f32 to vector<2x256xf32>
    %700 = arith.addf %697, %699 : vector<2x256xf32>
    %cst_270 = arith.constant 0.000000e+00 : f32
    %701 = vector.broadcast %cst_270 : f32 to vector<2x256xf32>
    %702 = arith.maximumf %700, %701 : vector<2x256xf32>
    %703 = arith.truncf %702 : vector<2x256xf32> to vector<2x256xbf16>
    %c5_271 = arith.constant 5 : index
    %c0_272 = arith.constant 0 : index
    %c0_273 = arith.constant 0 : index
    %704 = vector.load %arg3[%c5_271, %c0_272, %c0_273] : memref<8x8x256xbf16, #tpu.memory_space<vmem>>, vector<1x8x256xbf16>
    %705 = vector.shape_cast %704 : vector<1x8x256xbf16> to vector<8x256xbf16>
    %cst_274 = arith.constant dense<0.000000e+00> : vector<2x8xf32>
    %706 = tpu.matmul %703, %705, %cst_274 {dimension_numbers = #tpu.dot_dimension_numbers<[1], [1], [0], [0], [0, 0, 1, 0], [], []>} : vector<2x256xbf16>, vector<8x256xbf16>, vector<2x8xf32> -> vector<2x8xf32>
    %707 = arith.addf %682, %706 : vector<2x8xf32>
    %c6_275 = arith.constant 6 : index
    %c0_276 = arith.constant 0 : index
    %708 = memref.load %arg5[%c6_275, %c0_276] : memref<8x4xf32, #tpu.memory_space<smem>>
    %c6_277 = arith.constant 6 : index
    %c1_278 = arith.constant 1 : index
    %709 = memref.load %arg5[%c6_277, %c1_278] : memref<8x4xf32, #tpu.memory_space<smem>>
    %c6_279 = arith.constant 6 : index
    %c2_280 = arith.constant 2 : index
    %710 = memref.load %arg5[%c6_279, %c2_280] : memref<8x4xf32, #tpu.memory_space<smem>>
    %c6_281 = arith.constant 6 : index
    %c3_282 = arith.constant 3 : index
    %711 = memref.load %arg5[%c6_281, %c3_282] : memref<8x4xf32, #tpu.memory_space<smem>>
    %712 = vector.broadcast %708 : f32 to vector<2x256xf32>
    %713 = arith.mulf %712, %513 : vector<2x256xf32>
    %714 = vector.broadcast %709 : f32 to vector<2x256xf32>
    %715 = arith.mulf %714, %528 : vector<2x256xf32>
    %716 = arith.addf %713, %715 : vector<2x256xf32>
    %717 = vector.broadcast %710 : f32 to vector<2x256xf32>
    %718 = arith.mulf %717, %543 : vector<2x256xf32>
    %719 = arith.addf %716, %718 : vector<2x256xf32>
    %720 = vector.broadcast %711 : f32 to vector<2x256xf32>
    %721 = arith.mulf %720, %558 : vector<2x256xf32>
    %722 = arith.addf %719, %721 : vector<2x256xf32>
    %c6_283 = arith.constant 6 : index
    %723 = memref.load %arg6[%c6_283] : memref<8xf32, #tpu.memory_space<smem>>
    %724 = vector.broadcast %723 : f32 to vector<2x256xf32>
    %725 = arith.addf %722, %724 : vector<2x256xf32>
    %cst_284 = arith.constant 0.000000e+00 : f32
    %726 = vector.broadcast %cst_284 : f32 to vector<2x256xf32>
    %727 = arith.maximumf %725, %726 : vector<2x256xf32>
    %728 = arith.truncf %727 : vector<2x256xf32> to vector<2x256xbf16>
    %c6_285 = arith.constant 6 : index
    %c0_286 = arith.constant 0 : index
    %c0_287 = arith.constant 0 : index
    %729 = vector.load %arg3[%c6_285, %c0_286, %c0_287] : memref<8x8x256xbf16, #tpu.memory_space<vmem>>, vector<1x8x256xbf16>
    %730 = vector.shape_cast %729 : vector<1x8x256xbf16> to vector<8x256xbf16>
    %cst_288 = arith.constant dense<0.000000e+00> : vector<2x8xf32>
    %731 = tpu.matmul %728, %730, %cst_288 {dimension_numbers = #tpu.dot_dimension_numbers<[1], [1], [0], [0], [0, 0, 1, 0], [], []>} : vector<2x256xbf16>, vector<8x256xbf16>, vector<2x8xf32> -> vector<2x8xf32>
    %732 = arith.addf %707, %731 : vector<2x8xf32>
    %c7_289 = arith.constant 7 : index
    %c0_290 = arith.constant 0 : index
    %733 = memref.load %arg5[%c7_289, %c0_290] : memref<8x4xf32, #tpu.memory_space<smem>>
    %c7_291 = arith.constant 7 : index
    %c1_292 = arith.constant 1 : index
    %734 = memref.load %arg5[%c7_291, %c1_292] : memref<8x4xf32, #tpu.memory_space<smem>>
    %c7_293 = arith.constant 7 : index
    %c2_294 = arith.constant 2 : index
    %735 = memref.load %arg5[%c7_293, %c2_294] : memref<8x4xf32, #tpu.memory_space<smem>>
    %c7_295 = arith.constant 7 : index
    %c3_296 = arith.constant 3 : index
    %736 = memref.load %arg5[%c7_295, %c3_296] : memref<8x4xf32, #tpu.memory_space<smem>>
    %737 = vector.broadcast %733 : f32 to vector<2x256xf32>
    %738 = arith.mulf %737, %513 : vector<2x256xf32>
    %739 = vector.broadcast %734 : f32 to vector<2x256xf32>
    %740 = arith.mulf %739, %528 : vector<2x256xf32>
    %741 = arith.addf %738, %740 : vector<2x256xf32>
    %742 = vector.broadcast %735 : f32 to vector<2x256xf32>
    %743 = arith.mulf %742, %543 : vector<2x256xf32>
    %744 = arith.addf %741, %743 : vector<2x256xf32>
    %745 = vector.broadcast %736 : f32 to vector<2x256xf32>
    %746 = arith.mulf %745, %558 : vector<2x256xf32>
    %747 = arith.addf %744, %746 : vector<2x256xf32>
    %c7_297 = arith.constant 7 : index
    %748 = memref.load %arg6[%c7_297] : memref<8xf32, #tpu.memory_space<smem>>
    %749 = vector.broadcast %748 : f32 to vector<2x256xf32>
    %750 = arith.addf %747, %749 : vector<2x256xf32>
    %cst_298 = arith.constant 0.000000e+00 : f32
    %751 = vector.broadcast %cst_298 : f32 to vector<2x256xf32>
    %752 = arith.maximumf %750, %751 : vector<2x256xf32>
    %753 = arith.truncf %752 : vector<2x256xf32> to vector<2x256xbf16>
    %c7_299 = arith.constant 7 : index
    %c0_300 = arith.constant 0 : index
    %c0_301 = arith.constant 0 : index
    %754 = vector.load %arg3[%c7_299, %c0_300, %c0_301] : memref<8x8x256xbf16, #tpu.memory_space<vmem>>, vector<1x8x256xbf16>
    %755 = vector.shape_cast %754 : vector<1x8x256xbf16> to vector<8x256xbf16>
    %cst_302 = arith.constant dense<0.000000e+00> : vector<2x8xf32>
    %756 = tpu.matmul %753, %755, %cst_302 {dimension_numbers = #tpu.dot_dimension_numbers<[1], [1], [0], [0], [0, 0, 1, 0], [], []>} : vector<2x256xbf16>, vector<8x256xbf16>, vector<2x8xf32> -> vector<2x8xf32>
    %757 = arith.addf %732, %756 : vector<2x8xf32>
    %c0_303 = arith.constant 0 : index
    %c0_304 = arith.constant 0 : index
    %758 = vector.load %arg4[%c0_303, %c0_304] : memref<1x8xf32, #tpu.memory_space<vmem>>, vector<1x8xf32>
    %759 = vector.broadcast %758 : vector<1x8xf32> to vector<2x8xf32>
    %760 = arith.addf %757, %759 : vector<2x8xf32>
    %761 = math.absf %760 : vector<2x8xf32>
    %cst_305 = arith.constant 0.000000e+00 : f32
    %762 = vector.broadcast %cst_305 : f32 to vector<2x8xf32>
    %763 = arith.subf %762, %761 : vector<2x8xf32>
    %764 = math.exp %763 : vector<2x8xf32>
    %cst_306 = arith.constant 0.000000e+00 : f32
    %765 = vector.broadcast %cst_306 : f32 to vector<2x8xf32>
    %766 = arith.maximumf %760, %765 : vector<2x8xf32>
    %767 = arith.mulf %760, %1 : vector<2x8xf32>
    %768 = arith.subf %766, %767 : vector<2x8xf32>
    %cst_307 = arith.constant 1.000000e+00 : f32
    %769 = vector.broadcast %cst_307 : f32 to vector<2x8xf32>
    %770 = arith.addf %769, %764 : vector<2x8xf32>
    %771 = math.log %770 : vector<2x8xf32>
    %772 = arith.addf %768, %771 : vector<2x8xf32>
    %773 = vector.shape_cast %772 : vector<2x8xf32> to vector<1x2x8xf32>
    %cst_308 = arith.constant dense<0.000000e+00> : vector<1xf32>
    %774 = vector.multi_reduction <add>, %773, %cst_308 [1, 2] : vector<1x2x8xf32> to vector<1xf32>
    %775 = vector.shape_cast %774 : vector<1xf32> to vector<1x1x1xf32>
    %776 = vector.extract %775[0, 0, 0] : f32 from vector<1x1x1xf32>
    %777 = vector.broadcast %776 : f32 to vector<1x1xf32>
    %cst_309 = arith.constant 6.250000e-02 : f32
    %778 = vector.broadcast %cst_309 : f32 to vector<1x1xf32>
    %779 = arith.mulf %777, %778 : vector<1x1xf32>
    %cst_310 = arith.constant 5.000000e-01 : f32
    %780 = vector.broadcast %cst_310 : f32 to vector<1x1xf32>
    %781 = arith.mulf %780, %30 : vector<1x1xf32>
    %cst_311 = arith.constant 5.000000e-01 : f32
    %782 = vector.broadcast %cst_311 : f32 to vector<1x1xf32>
    %783 = arith.mulf %782, %779 : vector<1x1xf32>
    %784 = arith.addf %781, %783 : vector<1x1xf32>
    %c0_312 = arith.constant 0 : index
    %c0_313 = arith.constant 0 : index
    %785 = vector.load %arg7[%c0_312, %c0_313] : memref<1x1xf32, #tpu.memory_space<vmem>>, vector<1x1xf32>
    tpu.vector_store %arg7[%c0_312, %c0_313], %784 {strides = array<i32>} : memref<1x1xf32, #tpu.memory_space<vmem>>, vector<1x1xf32>,
    return
  }
}

</mosaic_0001>

<llo_original>
// kernel: gradient_regularized_loss.1
$region0: #{gradient_regularized_loss.1}
  #allocation0 [shape = 'u32[]', space=smem, size = 0x4, offset = 0x4, fixed_abs, tag = 'smem constant byte address 0x4 - core index']
  #allocation1 [shape = 'u32[144,128]{1,0:T(1,128)}', space=vmem, size = 0x12000, scoped, tag = 'internal scratch']
  %s0 = inlined_call_operand.vmem [shape: f32[4,2,256], index: 0, kind: input, shape index: {}]
  %s1 = inlined_call_operand.vmem [shape: f32[2,8], index: 1, kind: input, shape index: {}]
  %s2 = inlined_call_operand.vmem [shape: f32[2,8], index: 2, kind: input, shape index: {}]
  %s3 = inlined_call_operand.vmem [shape: bf16[8,8,256], index: 3, kind: input, shape index: {}]
  %s4 = inlined_call_operand.vmem [shape: f32[1,8], index: 4, kind: input, shape index: {}]
  %s5 = inlined_call_operand.vmem [shape: f32[8,4], index: 5, kind: input, shape index: {}]
  %s6 = inlined_call_operand.vmem [shape: f32[8], index: 6, kind: input, shape index: {}]
  %s7 = inlined_call_operand.hbm [shape: f32[1,1], index: 7, kind: output, shape index: {}]
  %s8 = sld [smem:[#allocation0]]
  $region46: #{gradient_regularized_loss.1} parent=0
    _
  %s10 = ssub.s32 1, %s8
  %s11 = scalar_select 0, %s10, %s8
  $region1: #{gradient_regularized_loss.1} parent=0
    #allocation2 [shape = 'u8[4096]{0}', space=smem, size = 0x1000, scoped, tag = 'input window, operand 5, single buffered']
    #allocation3 [shape = 's32[1]{0}', space=sflag, size = 0x4, scoped, tag = 'scoped memory for gradient_regularized_loss.1']
    #allocation4 [shape = 's32[1]{0}', space=sflag, size = 0x4, scoped, tag = 'scoped memory for gradient_regularized_loss.1']
    #allocation5 [shape = 'u8[512]{0}', space=smem, size = 0x200, scoped, tag = 'input window, operand 6, single buffered']
    #allocation6 [shape = 's32[1]{0}', space=sflag, size = 0x4, scoped, tag = 'scoped memory for gradient_regularized_loss.1']
    #allocation7 [shape = 'u8[512]{0}', space=vmem, size = 0x400, scoped, tag = 'output window, operand 0, single buffered']
    %12 = vsyncpa [#allocation4], 0
    %13 = vsyncpa [#allocation6], 0
    %14 = vsyncpa [#allocation3], 0
    // Predicated region
    $region2: #{gradient_regularized_loss.1} parent=1 // pred_check
      _
    $region3: #{gradient_regularized_loss.1} parent=1 // pred_check_branch
      %16 = sbr.rel (0) target = $region5
    $region4: #{gradient_regularized_loss.1} parent=1 // pred_region
      _
    $region5: #{gradient_regularized_loss.1} parent=1 // pred_fallthru
      _
    // Predicated region
    $region6: #{gradient_regularized_loss.1} parent=1 // pred_check
      _
    $region7: #{gradient_regularized_loss.1} parent=1 // pred_check_branch
      %18 = sbr.rel (0) target = $region9
    $region8: #{gradient_regularized_loss.1} parent=1 // pred_region
      _
    $region9: #{gradient_regularized_loss.1} parent=1 // pred_fallthru
      _
    // Predicated region
    $region10: #{gradient_regularized_loss.1} parent=1 // pred_check
      _
    $region11: #{gradient_regularized_loss.1} parent=1 // pred_check_branch
      %20 = sbr.rel (0) target = $region13
    $region12: #{gradient_regularized_loss.1} parent=1 // pred_region
      _
    $region13: #{gradient_regularized_loss.1} parent=1 // pred_fallthru
      _
    // Predicated region
    $region14: #{gradient_regularized_loss.1} parent=1 // pred_check
      _
    $region15: #{gradient_regularized_loss.1} parent=1 // pred_check_branch
      %22 = sbr.rel (0) target = $region17
    $region16: #{gradient_regularized_loss.1} parent=1 // pred_region
      _
    $region17: #{gradient_regularized_loss.1} parent=1 // pred_fallthru
      _
    // Predicated region
    $region18: #{gradient_regularized_loss.1} parent=1 // pred_check
      _
    $region19: #{gradient_regularized_loss.1} parent=1 // pred_check_branch
      %24 = sbr.rel (0) target = $region21
    $region20: #{gradient_regularized_loss.1} parent=1 // pred_region
      _
    $region21: #{gradient_regularized_loss.1} parent=1 // pred_fallthru
      _
    // Predicated region
    $region22: #{gradient_regularized_loss.1} parent=1 // pred_check
      _
    $region23: #{gradient_regularized_loss.1} parent=1 // pred_check_branch
      %26 = sbr.rel (0) target = $region25
    $region24: #{gradient_regularized_loss.1} parent=1 // pred_region
      %s28 = ssub.s32 128, 128
      %29 = vsyncadd [#allocation4], %s28
      %s31 = sshll.u32 %s5, 4
      %s32 = int_to_ptr.vmem [resolvable:$true] %s31
      %34 = dma.vmem_to_smem %s32, 128, [#allocation2], [#allocation4]
    $region25: #{gradient_regularized_loss.1} parent=1 // pred_fallthru
      _
    // Predicated region
    $region26: #{gradient_regularized_loss.1} parent=1 // pred_check
      _
    $region27: #{gradient_regularized_loss.1} parent=1 // pred_check_branch
      %36 = sbr.rel (0) target = $region29
    $region28: #{gradient_regularized_loss.1} parent=1 // pred_region
      %s38 = ssub.s32 16, 16
      %39 = vsyncadd [#allocation6], %s38
      %s41 = sshll.u32 %s6, 4
      %s42 = int_to_ptr.vmem [resolvable:$true] %s41
      %44 = dma.vmem_to_smem %s42, 16, [#allocation5], [#allocation6]
    $region29: #{gradient_regularized_loss.1} parent=1 // pred_fallthru
      _
    // Predicated region
    $region30: #{gradient_regularized_loss.1} parent=1 // pred_check
      _
    $region31: #{gradient_regularized_loss.1} parent=1 // pred_check_branch
      %46 = sbr.rel (0) target = $region33
    $region32: #{gradient_regularized_loss.1} parent=1 // pred_region
      %47 = dma.done [#allocation4], 128
    $region33: #{gradient_regularized_loss.1} parent=1 // pred_fallthru
      _
    // Predicated region
    $region34: #{gradient_regularized_loss.1} parent=1 // pred_check
      _
    $region35: #{gradient_regularized_loss.1} parent=1 // pred_check_branch
      %49 = sbr.rel (0) target = $region37
    $region36: #{gradient_regularized_loss.1} parent=1 // pred_region
      %50 = dma.done [#allocation6], 16
    $region37: #{gradient_regularized_loss.1} parent=1 // pred_fallthru
      _
    %51 = sfence
    %v53 = vld [vmem:[%s1] sm:$0x3]
    %v54 = vld [vmem:[%s2] sm:$0x3]
    %v55 = vand.u32 2147483647, %v53
    %v56 = vsub.f32 0.0, %v55
    %v57 = vmul.f32 %v56, 1.442695
    %v58 = vpow.pop %v57
    %v59 = vmax.f32 %v53, 0.0
    %v60 = vmul.f32 %v53, %v54
    %v61 = vsub.f32 %v59, %v60
    %v62 = vadd.f32 %v58, 1.0
    %v63 = vlog2.pop %v62
    %v64 = vmul.f32 %v63, 0.6931472
    %v65 = vadd.f32 %v61, %v64
    %vm66 = vcmp.ge.f32.partialorder %v53, 0.0
    %v67 = vrcp.pop %v62
    %v68 = vmul.f32 1.0, %v67
    %v69 = vmul.f32 %v58, %v67
    %v70 = vsel %vm66, %v68, %v69
    %vm71 = vcmask 58368
    %v72 = vsel %vm71, %v65, 0.0
    %73 = vadd.xlane.f32.xlu0 %v72
    %v74 = vpop.xlane.xlu0 %73
    %v75 = vrot.slane %v74, 4
    %v76 = vadd.f32 %v74, %v75
    %v77 = vrot.slane %v76, 2
    %v78 = vadd.f32 %v76, %v77
    %v79 = vrot.slane %v78, 1
    %v80 = vadd.f32 %v78, %v79
    %s81 = vtos %v80
    %v82 = vstv %s81
    %v83 = vmul.f32 %v82, 0.0625
    %v84 = vsub.f32 %v70, %v54
    %v85 = vmul.f32 %v84, 0.0625
    %v86 = vpack.c.bf16 %v85, %v85
    %v87 = vld [vmem:[%s0] sm:$0xf]
    %v90 = vunpack.c.l.s4 1983009808
    %v91 = vunpack.c.0.s8 %v90
    %v92 = vlaneseq
    %v93 = vshrl.u32 %v92, 7
    %v94 = vsub.s32 %v91, %v93
    %v95 = vrot.slane %v87, %v94
    %v96 = vcombine.high %v95, %v95
    %vm99 = vcmask 1041408
    %v100 = vsel %vm99, %v95, 0.0
    %v101 = vsel %vm99, %v96, 0.0
    %v102 = vadd.f32 %v100, %v101
    %103 = vadd.xlane.f32.xlu0 %v102
    %v104 = vpop.xlane.xlu0 %103
    %v105 = vmul.f32 %v104, 0.00390625
    %v108 = vunpack.c.l.s4 269488144
    %v109 = vunpack.c.0.s8 %v108
    %v110 = vlaneseq
    %v111 = vshrl.u32 %v110, 7
    %v112 = vsub.s32 %v109, %v111
    %v113 = vrot.slane %v105, %v112
    %v115 = vsub.f32 %v87, %v113
    %v116 = vmul.f32 %v115, %v115
    %v119 = vunpack.c.l.s4 1983009808
    %v120 = vunpack.c.0.s8 %v119
    %v121 = vlaneseq
    %v122 = vshrl.u32 %v121, 7
    %v123 = vsub.s32 %v120, %v122
    %v124 = vrot.slane %v116, %v123
    %v125 = vcombine.high %v124, %v124
    %v128 = vsel %vm99, %v124, 0.0
    %v129 = vsel %vm99, %v125, 0.0
    %v130 = vadd.f32 %v128, %v129
    %131 = vadd.xlane.f32.xlu0 %v130
    %v132 = vpop.xlane.xlu0 %131
    %v133 = vmul.f32 %v132, 0.003921569
    %v134 = vrsqrt.pop %v133
    %v135 = vmul.f32 %v133, %v134
    %vm136 = vcmp.eq.f32.partialorder %v133, inf
    %v137 = vsel %vm136, %v133, %v135
    %vm138 = vcmp.eq.f32.partialorder %v133, 0.0
    %v139 = vand.u32 %v133, 2147483648
    %v140 = vsel %vm138, %v139, %v137
    %v141 = vadd.f32 %v140, 1e-06
    %v142 = vrcp.pop %v141
    %v143 = vmul.f32 1.0, %v142
    %s144 = scalar_lea.vmem %s0, 4
    %v145 = vld [vmem:[%s144] sm:$0xf]
    %v148 = vunpack.c.l.s4 1983009808
    %v149 = vunpack.c.0.s8 %v148
    %v150 = vlaneseq
    %v151 = vshrl.u32 %v150, 7
    %v152 = vsub.s32 %v149, %v151
    %v153 = vrot.slane %v145, %v152
    %v154 = vcombine.high %v153, %v153
    %v157 = vsel %vm99, %v153, 0.0
    %v158 = vsel %vm99, %v154, 0.0
    %v159 = vadd.f32 %v157, %v158
    %160 = vadd.xlane.f32.xlu0 %v159
    %v161 = vpop.xlane.xlu0 %160
    %v162 = vmul.f32 %v161, 0.00390625
    %v165 = vunpack.c.l.s4 269488144
    %v166 = vunpack.c.0.s8 %v165
    %v167 = vlaneseq
    %v168 = vshrl.u32 %v167, 7
    %v169 = vsub.s32 %v166, %v168
    %v170 = vrot.slane %v162, %v169
    %v172 = vsub.f32 %v145, %v170
    %v173 = vmul.f32 %v172, %v172
    %v176 = vunpack.c.l.s4 1983009808
    %v177 = vunpack.c.0.s8 %v176
    %v178 = vlaneseq
    %v179 = vshrl.u32 %v178, 7
    %v180 = vsub.s32 %v177, %v179
    %v181 = vrot.slane %v173, %v180
    %v182 = vcombine.high %v181, %v181
    %v185 = vsel %vm99, %v181, 0.0
    %v186 = vsel %vm99, %v182, 0.0
    %v187 = vadd.f32 %v185, %v186
    %188 = vadd.xlane.f32.xlu0 %v187
    %v189 = vpop.xlane.xlu0 %188
    %v190 = vmul.f32 %v189, 0.003921569
    %v191 = vrsqrt.pop %v190
    %v192 = vmul.f32 %v190, %v191
    %vm193 = vcmp.eq.f32.partialorder %v190, inf
    %v194 = vsel %vm193, %v190, %v192
    %vm195 = vcmp.eq.f32.partialorder %v190, 0.0
    %v196 = vand.u32 %v190, 2147483648
    %v197 = vsel %vm195, %v196, %v194
    %v198 = vadd.f32 %v197, 1e-06
    %v199 = vrcp.pop %v198
    %v200 = vmul.f32 1.0, %v199
    %s201 = scalar_lea.vmem %s0, 8
    %v202 = vld [vmem:[%s201] sm:$0xf]
    %v205 = vunpack.c.l.s4 1983009808
    %v206 = vunpack.c.0.s8 %v205
    %v207 = vlaneseq
    %v208 = vshrl.u32 %v207, 7
    %v209 = vsub.s32 %v206, %v208
    %v210 = vrot.slane %v202, %v209
    %v211 = vcombine.high %v210, %v210
    %v214 = vsel %vm99, %v210, 0.0
    %v215 = vsel %vm99, %v211, 0.0
    %v216 = vadd.f32 %v214, %v215
    %217 = vadd.xlane.f32.xlu0 %v216
    %v218 = vpop.xlane.xlu0 %217
    %v219 = vmul.f32 %v218, 0.00390625
    %v222 = vunpack.c.l.s4 269488144
    %v223 = vunpack.c.0.s8 %v222
    %v224 = vlaneseq
    %v225 = vshrl.u32 %v224, 7
    %v226 = vsub.s32 %v223, %v225
    %v227 = vrot.slane %v219, %v226
    %v229 = vsub.f32 %v202, %v227
    %v230 = vmul.f32 %v229, %v229
    %v233 = vunpack.c.l.s4 1983009808
    %v234 = vunpack.c.0.s8 %v233
    %v235 = vlaneseq
    %v236 = vshrl.u32 %v235, 7
    %v237 = vsub.s32 %v234, %v236
    %v238 = vrot.slane %v230, %v237
    %v239 = vcombine.high %v238, %v238
    %v242 = vsel %vm99, %v238, 0.0
    %v243 = vsel %vm99, %v239, 0.0
    %v244 = vadd.f32 %v242, %v243
    %245 = vadd.xlane.f32.xlu0 %v244
    %v246 = vpop.xlane.xlu0 %245
    %v247 = vmul.f32 %v246, 0.003921569
    %v248 = vrsqrt.pop %v247
    %v249 = vmul.f32 %v247, %v248
    %vm250 = vcmp.eq.f32.partialorder %v247, inf
    %v251 = vsel %vm250, %v247, %v249
    %vm252 = vcmp.eq.f32.partialorder %v247, 0.0
    %v253 = vand.u32 %v247, 2147483648
    %v254 = vsel %vm252, %v253, %v251
    %v255 = vadd.f32 %v254, 1e-06
    %v256 = vrcp.pop %v255
    %v257 = vmul.f32 1.0, %v256
    %s258 = scalar_lea.vmem %s0, 12
    %v259 = vld [vmem:[%s258] sm:$0xf]
    %v262 = vunpack.c.l.s4 1983009808
    %v263 = vunpack.c.0.s8 %v262
    %v264 = vlaneseq
    %v265 = vshrl.u32 %v264, 7
    %v266 = vsub.s32 %v263, %v265
    %v267 = vrot.slane %v259, %v266
    %v268 = vcombine.high %v267, %v267
    %v271 = vsel %vm99, %v267, 0.0
    %v272 = vsel %vm99, %v268, 0.0
    %v273 = vadd.f32 %v271, %v272
    %274 = vadd.xlane.f32.xlu0 %v273
    %v275 = vpop.xlane.xlu0 %274
    %v276 = vmul.f32 %v275, 0.00390625
    %v279 = vunpack.c.l.s4 269488144
    %v280 = vunpack.c.0.s8 %v279
    %v281 = vlaneseq
    %v282 = vshrl.u32 %v281, 7
    %v283 = vsub.s32 %v280, %v282
    %v284 = vrot.slane %v276, %v283
    %v286 = vsub.f32 %v259, %v284
    %v287 = vmul.f32 %v286, %v286
    %v290 = vunpack.c.l.s4 1983009808
    %v291 = vunpack.c.0.s8 %v290
    %v292 = vlaneseq
    %v293 = vshrl.u32 %v292, 7
    %v294 = vsub.s32 %v291, %v293
    %v295 = vrot.slane %v287, %v294
    %v296 = vcombine.high %v295, %v295
    %v299 = vsel %vm99, %v295, 0.0
    %v300 = vsel %vm99, %v296, 0.0
    %v301 = vadd.f32 %v299, %v300
    %302 = vadd.xlane.f32.xlu0 %v301
    %v303 = vpop.xlane.xlu0 %302
    %v304 = vmul.f32 %v303, 0.003921569
    %v305 = vrsqrt.pop %v304
    %v306 = vmul.f32 %v304, %v305
    %vm307 = vcmp.eq.f32.partialorder %v304, inf
    %v308 = vsel %vm307, %v304, %v306
    %vm309 = vcmp.eq.f32.partialorder %v304, 0.0
    %v310 = vand.u32 %v304, 2147483648
    %v311 = vsel %vm309, %v310, %v308
    %v312 = vadd.f32 %v311, 1e-06
    %v313 = vrcp.pop %v312
    %v314 = vmul.f32 1.0, %v313
    %v315 = vld [vmem:[%s3] sm:$0xff]
    %v317 = vunpack.c.l.b16 %v315
    %v318 = vunpack.c.h.b16 %v315
    %v319 = vpack.c.b16 %v317, %v317
    %v320 = vpack.c.b16 %v318, %v318
    %vm321 = vcmask 64512
    %v323 = vsel %vm321, %v86, 0
    %vm325 = vcmask 1043456
    %v327 = vsel %vm325, %v319, 0
    %v330 = vsel %vm325, %v320, 0
    %332 = vmatprep.subr.bf16.mxu0 %v330
    %333 = vmatpush1.bf16.msra.mxu0 %v327
    %334 = vmatprep.subr.bf16.mxu0 0
    %335 = vmatpush1.bf16.msra.mxu0 0
    %336 = vmatprep.subr.bf16.mxu0 0
    %337 = vmatpush1.bf16.msra.mxu0 0
    %338 = vmatprep.subr.bf16.mxu0 0
    %339 = vmatpush1.bf16.msra.mxu0 0
    %340 = vmatprep.subr.bf16.mxu0 0
    %341 = vmatpush1.bf16.msra.mxu0 0
    %342 = vmatprep.subr.bf16.mxu0 0
    %343 = vmatpush1.bf16.msra.mxu0 0
    %344 = vmatprep.subr.bf16.mxu0 0
    %345 = vmatpush1.bf16.msra.mxu0 0
    %346 = vmatprep.subr.bf16.mxu0 0
    %347 = vmatpush1.bf16.msra.mxu0 0
    %348 = vmatprep.subr.bf16.mxu0 0
    %349 = vmatpush1.bf16.msra.mxu0 0
    %350 = vmatprep.subr.bf16.mxu0 0
    %351 = vmatpush1.bf16.msra.mxu0 0
    %352 = vmatprep.subr.bf16.mxu0 0
    %353 = vmatpush1.bf16.msra.mxu0 0
    %354 = vmatprep.subr.bf16.mxu0 0
    %355 = vmatpush1.bf16.msra.mxu0 0
    %356 = vmatprep.subr.bf16.mxu0 0
    %357 = vmatpush1.bf16.msra.mxu0 0
    %358 = vmatprep.subr.bf16.mxu0 0
    %359 = vmatpush1.bf16.msra.mxu0 0
    %360 = vmatprep.subr.bf16.mxu0 0
    %361 = vmatpush1.bf16.msra.mxu0 0
    %362 = vmatprep.subr.bf16.mxu0 0
    %363 = vmatpush1.bf16.msra.mxu0 0
    %364 = vmatprep.mubr.bf16.mxu0 0
    %365 = vmatmul.mubr.bf16.gmra.mrb[0].mxu0 %v323
    %v366 = vpop.f32.mrb[0].mxu0
    %v367 = vadd.f32 0.0, %v366
    %v368 = vpop.f32.mrb[0].mxu0
    %v369 = vadd.f32 0.0, %v368
    %v370 = vpop.f32.mrb[0].mxu0
    %v371 = vpop.f32.mrb[0].mxu0
    %372 = vdwg.mxu0
    %s373 = sld [smem:[#allocation2]]
    %s374 = sld [smem:[#allocation2 + $0x1]]
    %s375 = sld [smem:[#allocation2 + $0x2]]
    %s376 = sld [smem:[#allocation2 + $0x3]]
    %v377 = vstv %s373
    %v378 = vmul.f32 %v377, %v87
    %v379 = vstv %s374
    %v380 = vmul.f32 %v379, %v145
    %v381 = vadd.f32 %v378, %v380
    %v382 = vstv %s375
    %v383 = vmul.f32 %v382, %v202
    %v384 = vadd.f32 %v381, %v383
    %v385 = vstv %s376
    %v386 = vmul.f32 %v385, %v259
    %v387 = vadd.f32 %v384, %v386
    %s388 = sld [smem:[#allocation5]]
    %v389 = vstv %s388
    %v390 = vadd.f32 %v387, %v389
    %vm391 = vcmp.gt.f32.partialorder %v390, 0.0
    %v394 = vcombine.low %v367, %v369
    %v396 = vunpack.c.l.s4 1983009808
    %v397 = vunpack.c.0.s8 %v396
    %v398 = vlaneseq
    %v399 = vshrl.u32 %v398, 7
    %v400 = vsub.s32 %v397, %v399
    %v401 = vrot.slane %v394, %v400
    %v403 = vsel %vm391, %v401, 0.0
    %v404 = vmul.f32 %v377, %v403
    %v405 = vmul.f32 %v379, %v403
    %v406 = vmul.f32 %v382, %v403
    %v407 = vmul.f32 %v385, %v403
    %s408 = scalar_lea.vmem %s3, 8
    %v409 = vld [vmem:[%s408] sm:$0xff]
    %v411 = vunpack.c.l.b16 %v409
    %v412 = vunpack.c.h.b16 %v409
    %v413 = vpack.c.b16 %v411, %v411
    %v414 = vpack.c.b16 %v412, %v412
    %v416 = vsel %vm325, %v413, 0
    %v419 = vsel %vm325, %v414, 0
    %421 = vmatprep.subr.bf16.mxu0 %v419
    %422 = vmatpush1.bf16.msra.mxu0 %v416
    %423 = vmatprep.subr.bf16.mxu0 0
    %424 = vmatpush1.bf16.msra.mxu0 0
    %425 = vmatprep.subr.bf16.mxu0 0
    %426 = vmatpush1.bf16.msra.mxu0 0
    %427 = vmatprep.subr.bf16.mxu0 0
    %428 = vmatpush1.bf16.msra.mxu0 0
    %429 = vmatprep.subr.bf16.mxu0 0
    %430 = vmatpush1.bf16.msra.mxu0 0
    %431 = vmatprep.subr.bf16.mxu0 0
    %432 = vmatpush1.bf16.msra.mxu0 0
    %433 = vmatprep.subr.bf16.mxu0 0
    %434 = vmatpush1.bf16.msra.mxu0 0
    %435 = vmatprep.subr.bf16.mxu0 0
    %436 = vmatpush1.bf16.msra.mxu0 0
    %437 = vmatprep.subr.bf16.mxu0 0
    %438 = vmatpush1.bf16.msra.mxu0 0
    %439 = vmatprep.subr.bf16.mxu0 0
    %440 = vmatpush1.bf16.msra.mxu0 0
    %441 = vmatprep.subr.bf16.mxu0 0
    %442 = vmatpush1.bf16.msra.mxu0 0
    %443 = vmatprep.subr.bf16.mxu0 0
    %444 = vmatpush1.bf16.msra.mxu0 0
    %445 = vmatprep.subr.bf16.mxu0 0
    %446 = vmatpush1.bf16.msra.mxu0 0
    %447 = vmatprep.subr.bf16.mxu0 0
    %448 = vmatpush1.bf16.msra.mxu0 0
    %449 = vmatprep.subr.bf16.mxu0 0
    %450 = vmatpush1.bf16.msra.mxu0 0
    %451 = vmatprep.subr.bf16.mxu0 0
    %452 = vmatpush1.bf16.msra.mxu0 0
    %453 = vmatprep.mubr.bf16.mxu0 0
    %454 = vmatmul.mubr.bf16.gmra.mrb[0].mxu0 %v323
    %v455 = vpop.f32.mrb[0].mxu0
    %v456 = vadd.f32 0.0, %v455
    %v457 = vpop.f32.mrb[0].mxu0
    %v458 = vadd.f32 0.0, %v457
    %v459 = vpop.f32.mrb[0].mxu0
    %v460 = vpop.f32.mrb[0].mxu0
    %461 = vdwg.mxu0
    %s462 = sld [smem:[#allocation2 + $0x80]]
    %s463 = sld [smem:[#allocation2 + $0x81]]
    %s464 = sld [smem:[#allocation2 + $0x82]]
    %s465 = sld [smem:[#allocation2 + $0x83]]
    %v466 = vstv %s462
    %v467 = vmul.f32 %v466, %v87
    %v468 = vstv %s463
    %v469 = vmul.f32 %v468, %v145
    %v470 = vadd.f32 %v467, %v469
    %v471 = vstv %s464
    %v472 = vmul.f32 %v471, %v202
    %v473 = vadd.f32 %v470, %v472
    %v474 = vstv %s465
    %v475 = vmul.f32 %v474, %v259
    %v476 = vadd.f32 %v473, %v475
    %s477 = sld [smem:[#allocation5 + $0x1]]
    %v478 = vstv %s477
    %v479 = vadd.f32 %v476, %v478
    %vm480 = vcmp.gt.f32.partialorder %v479, 0.0
    %v483 = vcombine.low %v456, %v458
    %v485 = vunpack.c.l.s4 1983009808
    %v486 = vunpack.c.0.s8 %v485
    %v487 = vlaneseq
    %v488 = vshrl.u32 %v487, 7
    %v489 = vsub.s32 %v486, %v488
    %v490 = vrot.slane %v483, %v489
    %v492 = vsel %vm480, %v490, 0.0
    %v493 = vmul.f32 %v466, %v492
    %v494 = vadd.f32 %v404, %v493
    %v495 = vmul.f32 %v468, %v492
    %v496 = vadd.f32 %v405, %v495
    %v497 = vmul.f32 %v471, %v492
    %v498 = vadd.f32 %v406, %v497
    %v499 = vmul.f32 %v474, %v492
    %v500 = vadd.f32 %v407, %v499
    %s501 = scalar_lea.vmem %s3, 16
    %v502 = vld [vmem:[%s501] sm:$0xff]
    %v504 = vunpack.c.l.b16 %v502
    %v505 = vunpack.c.h.b16 %v502
    %v506 = vpack.c.b16 %v504, %v504
    %v507 = vpack.c.b16 %v505, %v505
    %v509 = vsel %vm325, %v506, 0
    %v512 = vsel %vm325, %v507, 0
    %514 = vmatprep.subr.bf16.mxu0 %v512
    %515 = vmatpush1.bf16.msra.mxu0 %v509
    %516 = vmatprep.subr.bf16.mxu0 0
    %517 = vmatpush1.bf16.msra.mxu0 0
    %518 = vmatprep.subr.bf16.mxu0 0
    %519 = vmatpush1.bf16.msra.mxu0 0
    %520 = vmatprep.subr.bf16.mxu0 0
    %521 = vmatpush1.bf16.msra.mxu0 0
    %522 = vmatprep.subr.bf16.mxu0 0
    %523 = vmatpush1.bf16.msra.mxu0 0
    %524 = vmatprep.subr.bf16.mxu0 0
    %525 = vmatpush1.bf16.msra.mxu0 0
    %526 = vmatprep.subr.bf16.mxu0 0
    %527 = vmatpush1.bf16.msra.mxu0 0
    %528 = vmatprep.subr.bf16.mxu0 0
    %529 = vmatpush1.bf16.msra.mxu0 0
    %530 = vmatprep.subr.bf16.mxu0 0
    %531 = vmatpush1.bf16.msra.mxu0 0
    %532 = vmatprep.subr.bf16.mxu0 0
    %533 = vmatpush1.bf16.msra.mxu0 0
    %534 = vmatprep.subr.bf16.mxu0 0
    %535 = vmatpush1.bf16.msra.mxu0 0
    %536 = vmatprep.subr.bf16.mxu0 0
    %537 = vmatpush1.bf16.msra.mxu0 0
    %538 = vmatprep.subr.bf16.mxu0 0
    %539 = vmatpush1.bf16.msra.mxu0 0
    %540 = vmatprep.subr.bf16.mxu0 0
    %541 = vmatpush1.bf16.msra.mxu0 0
    %542 = vmatprep.subr.bf16.mxu0 0
    %543 = vmatpush1.bf16.msra.mxu0 0
    %544 = vmatprep.subr.bf16.mxu0 0
    %545 = vmatpush1.bf16.msra.mxu0 0
    %546 = vmatprep.mubr.bf16.mxu0 0
    %547 = vmatmul.mubr.bf16.gmra.mrb[0].mxu0 %v323
    %v548 = vpop.f32.mrb[0].mxu0
    %v549 = vadd.f32 0.0, %v548
    %v550 = vpop.f32.mrb[0].mxu0
    %v551 = vadd.f32 0.0, %v550
    %v552 = vpop.f32.mrb[0].mxu0
    %v553 = vpop.f32.mrb[0].mxu0
    %554 = vdwg.mxu0
    %s555 = sld [smem:[#allocation2 + $0x100]]
    %s556 = sld [smem:[#allocation2 + $0x101]]
    %s557 = sld [smem:[#allocation2 + $0x102]]
    %s558 = sld [smem:[#allocation2 + $0x103]]
    %v559 = vstv %s555
    %v560 = vmul.f32 %v559, %v87
    %v561 = vstv %s556
    %v562 = vmul.f32 %v561, %v145
    %v563 = vadd.f32 %v560, %v562
    %v564 = vstv %s557
    %v565 = vmul.f32 %v564, %v202
    %v566 = vadd.f32 %v563, %v565
    %v567 = vstv %s558
    %v568 = vmul.f32 %v567, %v259
    %v569 = vadd.f32 %v566, %v568
    %s570 = sld [smem:[#allocation5 + $0x2]]
    %v571 = vstv %s570
    %v572 = vadd.f32 %v569, %v571
    %vm573 = vcmp.gt.f32.partialorder %v572, 0.0
    %v576 = vcombine.low %v549, %v551
    %v578 = vunpack.c.l.s4 1983009808
    %v579 = vunpack.c.0.s8 %v578
    %v580 = vlaneseq
    %v581 = vshrl.u32 %v580, 7
    %v582 = vsub.s32 %v579, %v581
    %v583 = vrot.slane %v576, %v582
    %v585 = vsel %vm573, %v583, 0.0
    %v586 = vmul.f32 %v559, %v585
    %v587 = vadd.f32 %v494, %v586
    %v588 = vmul.f32 %v561, %v585
    %v589 = vadd.f32 %v496, %v588
    %v590 = vmul.f32 %v564, %v585
    %v591 = vadd.f32 %v498, %v590
    %v592 = vmul.f32 %v567, %v585
    %v593 = vadd.f32 %v500, %v592
    %s594 = scalar_lea.vmem %s3, 24
    %v595 = vld [vmem:[%s594] sm:$0xff]
    %v597 = vunpack.c.l.b16 %v595
    %v598 = vunpack.c.h.b16 %v595
    %v599 = vpack.c.b16 %v597, %v597
    %v600 = vpack.c.b16 %v598, %v598
    %v602 = vsel %vm325, %v599, 0
    %v605 = vsel %vm325, %v600, 0
    %607 = vmatprep.subr.bf16.mxu0 %v605
    %608 = vmatpush1.bf16.msra.mxu0 %v602
    %609 = vmatprep.subr.bf16.mxu0 0
    %610 = vmatpush1.bf16.msra.mxu0 0
    %611 = vmatprep.subr.bf16.mxu0 0
    %612 = vmatpush1.bf16.msra.mxu0 0
    %613 = vmatprep.subr.bf16.mxu0 0
    %614 = vmatpush1.bf16.msra.mxu0 0
    %615 = vmatprep.subr.bf16.mxu0 0
    %616 = vmatpush1.bf16.msra.mxu0 0
    %617 = vmatprep.subr.bf16.mxu0 0
    %618 = vmatpush1.bf16.msra.mxu0 0
    %619 = vmatprep.subr.bf16.mxu0 0
    %620 = vmatpush1.bf16.msra.mxu0 0
    %621 = vmatprep.subr.bf16.mxu0 0
    %622 = vmatpush1.bf16.msra.mxu0 0
    %623 = vmatprep.subr.bf16.mxu0 0
    %624 = vmatpush1.bf16.msra.mxu0 0
    %625 = vmatprep.subr.bf16.mxu0 0
    %626 = vmatpush1.bf16.msra.mxu0 0
    %627 = vmatprep.subr.bf16.mxu0 0
    %628 = vmatpush1.bf16.msra.mxu0 0
    %629 = vmatprep.subr.bf16.mxu0 0
    %630 = vmatpush1.bf16.msra.mxu0 0
    %631 = vmatprep.subr.bf16.mxu0 0
    %632 = vmatpush1.bf16.msra.mxu0 0
    %633 = vmatprep.subr.bf16.mxu0 0
    %634 = vmatpush1.bf16.msra.mxu0 0
    %635 = vmatprep.subr.bf16.mxu0 0
    %636 = vmatpush1.bf16.msra.mxu0 0
    %637 = vmatprep.subr.bf16.mxu0 0
    %638 = vmatpush1.bf16.msra.mxu0 0
    %639 = vmatprep.mubr.bf16.mxu0 0
    %640 = vmatmul.mubr.bf16.gmra.mrb[0].mxu0 %v323
    %v641 = vpop.f32.mrb[0].mxu0
    %v642 = vadd.f32 0.0, %v641
    %v643 = vpop.f32.mrb[0].mxu0
    %v644 = vadd.f32 0.0, %v643
    %v645 = vpop.f32.mrb[0].mxu0
    %v646 = vpop.f32.mrb[0].mxu0
    %647 = vdwg.mxu0
    %s648 = sld [smem:[#allocation2 + $0x180]]
    %s649 = sld [smem:[#allocation2 + $0x181]]
    %s650 = sld [smem:[#allocation2 + $0x182]]
    %s651 = sld [smem:[#allocation2 + $0x183]]
    %v652 = vstv %s648
    %v653 = vmul.f32 %v652, %v87
    %v654 = vstv %s649
    %v655 = vmul.f32 %v654, %v145
    %v656 = vadd.f32 %v653, %v655
    %v657 = vstv %s650
    %v658 = vmul.f32 %v657, %v202
    %v659 = vadd.f32 %v656, %v658
    %v660 = vstv %s651
    %v661 = vmul.f32 %v660, %v259
    %v662 = vadd.f32 %v659, %v661
    %s663 = sld [smem:[#allocation5 + $0x3]]
    %v664 = vstv %s663
    %v665 = vadd.f32 %v662, %v664
    %vm666 = vcmp.gt.f32.partialorder %v665, 0.0
    %v669 = vcombine.low %v642, %v644
    %v671 = vunpack.c.l.s4 1983009808
    %v672 = vunpack.c.0.s8 %v671
    %v673 = vlaneseq
    %v674 = vshrl.u32 %v673, 7
    %v675 = vsub.s32 %v672, %v674
    %v676 = vrot.slane %v669, %v675
    %v678 = vsel %vm666, %v676, 0.0
    %v679 = vmul.f32 %v652, %v678
    %v680 = vadd.f32 %v587, %v679
    %v681 = vmul.f32 %v654, %v678
    %v682 = vadd.f32 %v589, %v681
    %v683 = vmul.f32 %v657, %v678
    %v684 = vadd.f32 %v591, %v683
    %v685 = vmul.f32 %v660, %v678
    %v686 = vadd.f32 %v593, %v685
    %s687 = scalar_lea.vmem %s3, 32
    %v688 = vld [vmem:[%s687] sm:$0xff]
    %v690 = vunpack.c.l.b16 %v688
    %v691 = vunpack.c.h.b16 %v688
    %v692 = vpack.c.b16 %v690, %v690
    %v693 = vpack.c.b16 %v691, %v691
    %v695 = vsel %vm325, %v692, 0
    %v698 = vsel %vm325, %v693, 0
    %700 = vmatprep.subr.bf16.mxu0 %v698
    %701 = vmatpush1.bf16.msra.mxu0 %v695
    %702 = vmatprep.subr.bf16.mxu0 0
    %703 = vmatpush1.bf16.msra.mxu0 0
    %704 = vmatprep.subr.bf16.mxu0 0
    %705 = vmatpush1.bf16.msra.mxu0 0
    %706 = vmatprep.subr.bf16.mxu0 0
    %707 = vmatpush1.bf16.msra.mxu0 0
    %708 = vmatprep.subr.bf16.mxu0 0
    %709 = vmatpush1.bf16.msra.mxu0 0
    %710 = vmatprep.subr.bf16.mxu0 0
    %711 = vmatpush1.bf16.msra.mxu0 0
    %712 = vmatprep.subr.bf16.mxu0 0
    %713 = vmatpush1.bf16.msra.mxu0 0
    %714 = vmatprep.subr.bf16.mxu0 0
    %715 = vmatpush1.bf16.msra.mxu0 0
    %716 = vmatprep.subr.bf16.mxu0 0
    %717 = vmatpush1.bf16.msra.mxu0 0
    %718 = vmatprep.subr.bf16.mxu0 0
    %719 = vmatpush1.bf16.msra.mxu0 0
    %720 = vmatprep.subr.bf16.mxu0 0
    %721 = vmatpush1.bf16.msra.mxu0 0
    %722 = vmatprep.subr.bf16.mxu0 0
    %723 = vmatpush1.bf16.msra.mxu0 0
    %724 = vmatprep.subr.bf16.mxu0 0
    %725 = vmatpush1.bf16.msra.mxu0 0
    %726 = vmatprep.subr.bf16.mxu0 0
    %727 = vmatpush1.bf16.msra.mxu0 0
    %728 = vmatprep.subr.bf16.mxu0 0
    %729 = vmatpush1.bf16.msra.mxu0 0
    %730 = vmatprep.subr.bf16.mxu0 0
    %731 = vmatpush1.bf16.msra.mxu0 0
    %732 = vmatprep.mubr.bf16.mxu0 0
    %733 = vmatmul.mubr.bf16.gmra.mrb[0].mxu0 %v323
    %v734 = vpop.f32.mrb[0].mxu0
    %v735 = vadd.f32 0.0, %v734
    %v736 = vpop.f32.mrb[0].mxu0
    %v737 = vadd.f32 0.0, %v736
    %v738 = vpop.f32.mrb[0].mxu0
    %v739 = vpop.f32.mrb[0].mxu0
    %740 = vdwg.mxu0
    %s741 = sld [smem:[#allocation2 + $0x200]]
    %s742 = sld [smem:[#allocation2 + $0x201]]
    %s743 = sld [smem:[#allocation2 + $0x202]]
    %s744 = sld [smem:[#allocation2 + $0x203]]
    %v745 = vstv %s741
    %v746 = vmul.f32 %v745, %v87
    %v747 = vstv %s742
    %v748 = vmul.f32 %v747, %v145
    %v749 = vadd.f32 %v746, %v748
    %v750 = vstv %s743
    %v751 = vmul.f32 %v750, %v202
    %v752 = vadd.f32 %v749, %v751
    %v753 = vstv %s744
    %v754 = vmul.f32 %v753, %v259
    %v755 = vadd.f32 %v752, %v754
    %s756 = sld [smem:[#allocation5 + $0x4]]
    %v757 = vstv %s756
    %v758 = vadd.f32 %v755, %v757
    %vm759 = vcmp.gt.f32.partialorder %v758, 0.0
    %v762 = vcombine.low %v735, %v737
    %v764 = vunpack.c.l.s4 1983009808
    %v765 = vunpack.c.0.s8 %v764
    %v766 = vlaneseq
    %v767 = vshrl.u32 %v766, 7
    %v768 = vsub.s32 %v765, %v767
    %v769 = vrot.slane %v762, %v768
    %v771 = vsel %vm759, %v769, 0.0
    %v772 = vmul.f32 %v745, %v771
    %v773 = vadd.f32 %v680, %v772
    %v774 = vmul.f32 %v747, %v771
    %v775 = vadd.f32 %v682, %v774
    %v776 = vmul.f32 %v750, %v771
    %v777 = vadd.f32 %v684, %v776
    %v778 = vmul.f32 %v753, %v771
    %v779 = vadd.f32 %v686, %v778
    %s780 = scalar_lea.vmem %s3, 40
    %v781 = vld [vmem:[%s780] sm:$0xff]
    %v783 = vunpack.c.l.b16 %v781
    %v784 = vunpack.c.h.b16 %v781
    %v785 = vpack.c.b16 %v783, %v783
    %v786 = vpack.c.b16 %v784, %v784
    %v788 = vsel %vm325, %v785, 0
    %v791 = vsel %vm325, %v786, 0
    %793 = vmatprep.subr.bf16.mxu0 %v791
    %794 = vmatpush1.bf16.msra.mxu0 %v788
    %795 = vmatprep.subr.bf16.mxu0 0
    %796 = vmatpush1.bf16.msra.mxu0 0
    %797 = vmatprep.subr.bf16.mxu0 0
    %798 = vmatpush1.bf16.msra.mxu0 0
    %799 = vmatprep.subr.bf16.mxu0 0
    %800 = vmatpush1.bf16.msra.mxu0 0
    %801 = vmatprep.subr.bf16.mxu0 0
    %802 = vmatpush1.bf16.msra.mxu0 0
    %803 = vmatprep.subr.bf16.mxu0 0
    %804 = vmatpush1.bf16.msra.mxu0 0
    %805 = vmatprep.subr.bf16.mxu0 0
    %806 = vmatpush1.bf16.msra.mxu0 0
    %807 = vmatprep.subr.bf16.mxu0 0
    %808 = vmatpush1.bf16.msra.mxu0 0
    %809 = vmatprep.subr.bf16.mxu0 0
    %810 = vmatpush1.bf16.msra.mxu0 0
    %811 = vmatprep.subr.bf16.mxu0 0
    %812 = vmatpush1.bf16.msra.mxu0 0
    %813 = vmatprep.subr.bf16.mxu0 0
    %814 = vmatpush1.bf16.msra.mxu0 0
    %815 = vmatprep.subr.bf16.mxu0 0
    %816 = vmatpush1.bf16.msra.mxu0 0
    %817 = vmatprep.subr.bf16.mxu0 0
    %818 = vmatpush1.bf16.msra.mxu0 0
    %819 = vmatprep.subr.bf16.mxu0 0
    %820 = vmatpush1.bf16.msra.mxu0 0
    %821 = vmatprep.subr.bf16.mxu0 0
    %822 = vmatpush1.bf16.msra.mxu0 0
    %823 = vmatprep.subr.bf16.mxu0 0
    %824 = vmatpush1.bf16.msra.mxu0 0
    %825 = vmatprep.mubr.bf16.mxu0 0
    %826 = vmatmul.mubr.bf16.gmra.mrb[0].mxu0 %v323
    %v827 = vpop.f32.mrb[0].mxu0
    %v828 = vadd.f32 0.0, %v827
    %v829 = vpop.f32.mrb[0].mxu0
    %v830 = vadd.f32 0.0, %v829
    %v831 = vpop.f32.mrb[0].mxu0
    %v832 = vpop.f32.mrb[0].mxu0
    %833 = vdwg.mxu0
    %s834 = sld [smem:[#allocation2 + $0x280]]
    %s835 = sld [smem:[#allocation2 + $0x281]]
    %s836 = sld [smem:[#allocation2 + $0x282]]
    %s837 = sld [smem:[#allocation2 + $0x283]]
    %v838 = vstv %s834
    %v839 = vmul.f32 %v838, %v87
    %v840 = vstv %s835
    %v841 = vmul.f32 %v840, %v145
    %v842 = vadd.f32 %v839, %v841
    %v843 = vstv %s836
    %v844 = vmul.f32 %v843, %v202
    %v845 = vadd.f32 %v842, %v844
    %v846 = vstv %s837
    %v847 = vmul.f32 %v846, %v259
    %v848 = vadd.f32 %v845, %v847
    %s849 = sld [smem:[#allocation5 + $0x5]]
    %v850 = vstv %s849
    %v851 = vadd.f32 %v848, %v850
    %vm852 = vcmp.gt.f32.partialorder %v851, 0.0
    %v855 = vcombine.low %v828, %v830
    %v857 = vunpack.c.l.s4 1983009808
    %v858 = vunpack.c.0.s8 %v857
    %v859 = vlaneseq
    %v860 = vshrl.u32 %v859, 7
    %v861 = vsub.s32 %v858, %v860
    %v862 = vrot.slane %v855, %v861
    %v864 = vsel %vm852, %v862, 0.0
    %v865 = vmul.f32 %v838, %v864
    %v866 = vadd.f32 %v773, %v865
    %v867 = vmul.f32 %v840, %v864
    %v868 = vadd.f32 %v775, %v867
    %v869 = vmul.f32 %v843, %v864
    %v870 = vadd.f32 %v777, %v869
    %v871 = vmul.f32 %v846, %v864
    %v872 = vadd.f32 %v779, %v871
    %s873 = scalar_lea.vmem %s3, 48
    %v874 = vld [vmem:[%s873] sm:$0xff]
    %v876 = vunpack.c.l.b16 %v874
    %v877 = vunpack.c.h.b16 %v874
    %v878 = vpack.c.b16 %v876, %v876
    %v879 = vpack.c.b16 %v877, %v877
    %v881 = vsel %vm325, %v878, 0
    %v884 = vsel %vm325, %v879, 0
    %886 = vmatprep.subr.bf16.mxu0 %v884
    %887 = vmatpush1.bf16.msra.mxu0 %v881
    %888 = vmatprep.subr.bf16.mxu0 0
    %889 = vmatpush1.bf16.msra.mxu0 0
    %890 = vmatprep.subr.bf16.mxu0 0
    %891 = vmatpush1.bf16.msra.mxu0 0
    %892 = vmatprep.subr.bf16.mxu0 0
    %893 = vmatpush1.bf16.msra.mxu0 0
    %894 = vmatprep.subr.bf16.mxu0 0
    %895 = vmatpush1.bf16.msra.mxu0 0
    %896 = vmatprep.subr.bf16.mxu0 0
    %897 = vmatpush1.bf16.msra.mxu0 0
    %898 = vmatprep.subr.bf16.mxu0 0
    %899 = vmatpush1.bf16.msra.mxu0 0
    %900 = vmatprep.subr.bf16.mxu0 0
    %901 = vmatpush1.bf16.msra.mxu0 0
    %902 = vmatprep.subr.bf16.mxu0 0
    %903 = vmatpush1.bf16.msra.mxu0 0
    %904 = vmatprep.subr.bf16.mxu0 0
    %905 = vmatpush1.bf16.msra.mxu0 0
    %906 = vmatprep.subr.bf16.mxu0 0
    %907 = vmatpush1.bf16.msra.mxu0 0
    %908 = vmatprep.subr.bf16.mxu0 0
    %909 = vmatpush1.bf16.msra.mxu0 0
    %910 = vmatprep.subr.bf16.mxu0 0
    %911 = vmatpush1.bf16.msra.mxu0 0
    %912 = vmatprep.subr.bf16.mxu0 0
    %913 = vmatpush1.bf16.msra.mxu0 0
    %914 = vmatprep.subr.bf16.mxu0 0
    %915 = vmatpush1.bf16.msra.mxu0 0
    %916 = vmatprep.subr.bf16.mxu0 0
    %917 = vmatpush1.bf16.msra.mxu0 0
    %918 = vmatprep.mubr.bf16.mxu0 0
    %919 = vmatmul.mubr.bf16.gmra.mrb[0].mxu0 %v323
    %v920 = vpop.f32.mrb[0].mxu0
    %v921 = vadd.f32 0.0, %v920
    %v922 = vpop.f32.mrb[0].mxu0
    %v923 = vadd.f32 0.0, %v922
    %v924 = vpop.f32.mrb[0].mxu0
    %v925 = vpop.f32.mrb[0].mxu0
    %926 = vdwg.mxu0
    %s927 = sld [smem:[#allocation2 + $0x300]]
    %s928 = sld [smem:[#allocation2 + $0x301]]
    %s929 = sld [smem:[#allocation2 + $0x302]]
    %s930 = sld [smem:[#allocation2 + $0x303]]
    %v931 = vstv %s927
    %v932 = vmul.f32 %v931, %v87
    %v933 = vstv %s928
    %v934 = vmul.f32 %v933, %v145
    %v935 = vadd.f32 %v932, %v934
    %v936 = vstv %s929
    %v937 = vmul.f32 %v936, %v202
    %v938 = vadd.f32 %v935, %v937
    %v939 = vstv %s930
    %v940 = vmul.f32 %v939, %v259
    %v941 = vadd.f32 %v938, %v940
    %s942 = sld [smem:[#allocation5 + $0x6]]
    %v943 = vstv %s942
    %v944 = vadd.f32 %v941, %v943
    %vm945 = vcmp.gt.f32.partialorder %v944, 0.0
    %v948 = vcombine.low %v921, %v923
    %v950 = vunpack.c.l.s4 1983009808
    %v951 = vunpack.c.0.s8 %v950
    %v952 = vlaneseq
    %v953 = vshrl.u32 %v952, 7
    %v954 = vsub.s32 %v951, %v953
    %v955 = vrot.slane %v948, %v954
    %v957 = vsel %vm945, %v955, 0.0
    %v958 = vmul.f32 %v931, %v957
    %v959 = vadd.f32 %v866, %v958
    %v960 = vmul.f32 %v933, %v957
    %v961 = vadd.f32 %v868, %v960
    %v962 = vmul.f32 %v936, %v957
    %v963 = vadd.f32 %v870, %v962
    %v964 = vmul.f32 %v939, %v957
    %v965 = vadd.f32 %v872, %v964
    %s966 = scalar_lea.vmem %s3, 56
    %v967 = vld [vmem:[%s966] sm:$0xff]
    %v969 = vunpack.c.l.b16 %v967
    %v970 = vunpack.c.h.b16 %v967
    %v971 = vpack.c.b16 %v969, %v969
    %v972 = vpack.c.b16 %v970, %v970
    %v974 = vsel %vm325, %v971, 0
    %v977 = vsel %vm325, %v972, 0
    %979 = vmatprep.subr.bf16.mxu0 %v977
    %980 = vmatpush1.bf16.msra.mxu0 %v974
    %981 = vmatprep.subr.bf16.mxu0 0
    %982 = vmatpush1.bf16.msra.mxu0 0
    %983 = vmatprep.subr.bf16.mxu0 0
    %984 = vmatpush1.bf16.msra.mxu0 0
    %985 = vmatprep.subr.bf16.mxu0 0
    %986 = vmatpush1.bf16.msra.mxu0 0
    %987 = vmatprep.subr.bf16.mxu0 0
    %988 = vmatpush1.bf16.msra.mxu0 0
    %989 = vmatprep.subr.bf16.mxu0 0
    %990 = vmatpush1.bf16.msra.mxu0 0
    %991 = vmatprep.subr.bf16.mxu0 0
    %992 = vmatpush1.bf16.msra.mxu0 0
    %993 = vmatprep.subr.bf16.mxu0 0
    %994 = vmatpush1.bf16.msra.mxu0 0
    %995 = vmatprep.subr.bf16.mxu0 0
    %996 = vmatpush1.bf16.msra.mxu0 0
    %997 = vmatprep.subr.bf16.mxu0 0
    %998 = vmatpush1.bf16.msra.mxu0 0
    %999 = vmatprep.subr.bf16.mxu0 0
    %1000 = vmatpush1.bf16.msra.mxu0 0
    %1001 = vmatprep.subr.bf16.mxu0 0
    %1002 = vmatpush1.bf16.msra.mxu0 0
    %1003 = vmatprep.subr.bf16.mxu0 0
    %1004 = vmatpush1.bf16.msra.mxu0 0
    %1005 = vmatprep.subr.bf16.mxu0 0
    %1006 = vmatpush1.bf16.msra.mxu0 0
    %1007 = vmatprep.subr.bf16.mxu0 0
    %1008 = vmatpush1.bf16.msra.mxu0 0
    %1009 = vmatprep.subr.bf16.mxu0 0
    %1010 = vmatpush1.bf16.msra.mxu0 0
    %1011 = vmatprep.mubr.bf16.mxu0 0
    %1012 = vmatmul.mubr.bf16.gmra.mrb[0].mxu0 %v323
    %v1013 = vpop.f32.mrb[0].mxu0
    %v1014 = vadd.f32 0.0, %v1013
    %v1015 = vpop.f32.mrb[0].mxu0
    %v1016 = vadd.f32 0.0, %v1015
    %v1017 = vpop.f32.mrb[0].mxu0
    %v1018 = vpop.f32.mrb[0].mxu0
    %1019 = vdwg.mxu0
    %s1020 = sld [smem:[#allocation2 + $0x380]]
    %s1021 = sld [smem:[#allocation2 + $0x381]]
    %s1022 = sld [smem:[#allocation2 + $0x382]]
    %s1023 = sld [smem:[#allocation2 + $0x383]]
    %v1024 = vstv %s1020
    %v1025 = vmul.f32 %v1024, %v87
    %v1026 = vstv %s1021
    %v1027 = vmul.f32 %v1026, %v145
    %v1028 = vadd.f32 %v1025, %v1027
    %v1029 = vstv %s1022
    %v1030 = vmul.f32 %v1029, %v202
    %v1031 = vadd.f32 %v1028, %v1030
    %v1032 = vstv %s1023
    %v1033 = vmul.f32 %v1032, %v259
    %v1034 = vadd.f32 %v1031, %v1033
    %s1035 = sld [smem:[#allocation5 + $0x7]]
    %v1036 = vstv %s1035
    %v1037 = vadd.f32 %v1034, %v1036
    %vm1038 = vcmp.gt.f32.partialorder %v1037, 0.0
    %v1041 = vcombine.low %v1014, %v1016
    %v1043 = vunpack.c.l.s4 1983009808
    %v1044 = vunpack.c.0.s8 %v1043
    %v1045 = vlaneseq
    %v1046 = vshrl.u32 %v1045, 7
    %v1047 = vsub.s32 %v1044, %v1046
    %v1048 = vrot.slane %v1041, %v1047
    %v1050 = vsel %vm1038, %v1048, 0.0
    %v1051 = vmul.f32 %v1024, %v1050
    %v1052 = vadd.f32 %v959, %v1051
    %v1053 = vmul.f32 %v1026, %v1050
    %v1054 = vadd.f32 %v961, %v1053
    %v1055 = vmul.f32 %v1029, %v1050
    %v1056 = vadd.f32 %v963, %v1055
    %v1057 = vmul.f32 %v1032, %v1050
    %v1058 = vadd.f32 %v965, %v1057
    %v1061 = vunpack.c.l.s4 1983009808
    %v1062 = vunpack.c.0.s8 %v1061
    %v1063 = vlaneseq
    %v1064 = vshrl.u32 %v1063, 7
    %v1065 = vsub.s32 %v1062, %v1064
    %v1066 = vrot.slane %v1052, %v1065
    %v1067 = vcombine.high %v1066, %v1066
    %v1070 = vsel %vm99, %v1066, 0.0
    %v1071 = vsel %vm99, %v1067, 0.0
    %v1072 = vadd.f32 %v1070, %v1071
    %1073 = vadd.xlane.f32.xlu0 %v1072
    %v1074 = vpop.xlane.xlu0 %1073
    %v1075 = vmul.f32 %v1052, %v87
    %v1078 = vunpack.c.l.s4 1983009808
    %v1079 = vunpack.c.0.s8 %v1078
    %v1080 = vlaneseq
    %v1081 = vshrl.u32 %v1080, 7
    %v1082 = vsub.s32 %v1079, %v1081
    %v1083 = vrot.slane %v1075, %v1082
    %v1084 = vcombine.high %v1083, %v1083
    %v1087 = vsel %vm99, %v1083, 0.0
    %v1088 = vsel %vm99, %v1084, 0.0
    %v1089 = vadd.f32 %v1087, %v1088
    %1090 = vadd.xlane.f32.xlu0 %v1089
    %v1091 = vpop.xlane.xlu0 %1090
    %v1092 = vmul.f32 %v105, %v1074
    %v1093 = vsub.f32 %v1091, %v1092
    %v1094 = vmul.f32 %v1093, %v143
    %v1095 = vmul.f32 %v1074, %v1074
    %vm1096 = vcmask 1024
    %v1097 = vsel %vm1096, %v1095, 0.0
    %1098 = vadd.xlane.f32.xlu0 %v1097
    %v1099 = vpop.xlane.xlu0 %1098
    %v1100 = vrot.slane %v1099, 4
    %v1101 = vadd.f32 %v1099, %v1100
    %v1102 = vrot.slane %v1101, 2
    %v1103 = vadd.f32 %v1101, %v1102
    %v1104 = vrot.slane %v1103, 1
    %v1105 = vadd.f32 %v1103, %v1104
    %s1106 = vtos %v1105
    %v1107 = vstv %s1106
    %v1108 = vadd.f32 %v1107, 0.0
    %v1109 = vmul.f32 %v1094, %v1094
    %v1110 = vsel %vm1096, %v1109, 0.0
    %1111 = vadd.xlane.f32.xlu0 %v1110
    %v1112 = vpop.xlane.xlu0 %1111
    %v1113 = vrot.slane %v1112, 4
    %v1114 = vadd.f32 %v1112, %v1113
    %v1115 = vrot.slane %v1114, 2
    %v1116 = vadd.f32 %v1114, %v1115
    %v1117 = vrot.slane %v1116, 1
    %v1118 = vadd.f32 %v1116, %v1117
    %s1119 = vtos %v1118
    %v1120 = vstv %s1119
    %v1121 = vadd.f32 %v1120, 0.0
    %v1124 = vunpack.c.l.s4 1983009808
    %v1125 = vunpack.c.0.s8 %v1124
    %v1126 = vlaneseq
    %v1127 = vshrl.u32 %v1126, 7
    %v1128 = vsub.s32 %v1125, %v1127
    %v1129 = vrot.slane %v1054, %v1128
    %v1130 = vcombine.high %v1129, %v1129
    %v1133 = vsel %vm99, %v1129, 0.0
    %v1134 = vsel %vm99, %v1130, 0.0
    %v1135 = vadd.f32 %v1133, %v1134
    %1136 = vadd.xlane.f32.xlu0 %v1135
    %v1137 = vpop.xlane.xlu0 %1136
    %v1138 = vmul.f32 %v1054, %v145
    %v1141 = vunpack.c.l.s4 1983009808
    %v1142 = vunpack.c.0.s8 %v1141
    %v1143 = vlaneseq
    %v1144 = vshrl.u32 %v1143, 7
    %v1145 = vsub.s32 %v1142, %v1144
    %v1146 = vrot.slane %v1138, %v1145
    %v1147 = vcombine.high %v1146, %v1146
    %v1150 = vsel %vm99, %v1146, 0.0
    %v1151 = vsel %vm99, %v1147, 0.0
    %v1152 = vadd.f32 %v1150, %v1151
    %1153 = vadd.xlane.f32.xlu0 %v1152
    %v1154 = vpop.xlane.xlu0 %1153
    %v1155 = vmul.f32 %v162, %v1137
    %v1156 = vsub.f32 %v1154, %v1155
    %v1157 = vmul.f32 %v1156, %v200
    %v1158 = vmul.f32 %v1137, %v1137
    %v1159 = vsel %vm1096, %v1158, 0.0
    %1160 = vadd.xlane.f32.xlu0 %v1159
    %v1161 = vpop.xlane.xlu0 %1160
    %v1162 = vrot.slane %v1161, 4
    %v1163 = vadd.f32 %v1161, %v1162
    %v1164 = vrot.slane %v1163, 2
    %v1165 = vadd.f32 %v1163, %v1164
    %v1166 = vrot.slane %v1165, 1
    %v1167 = vadd.f32 %v1165, %v1166
    %s1168 = vtos %v1167
    %v1169 = vstv %s1168
    %v1170 = vadd.f32 %v1108, %v1169
    %v1171 = vmul.f32 %v1157, %v1157
    %v1172 = vsel %vm1096, %v1171, 0.0
    %1173 = vadd.xlane.f32.xlu0 %v1172
    %v1174 = vpop.xlane.xlu0 %1173
    %v1175 = vrot.slane %v1174, 4
    %v1176 = vadd.f32 %v1174, %v1175
    %v1177 = vrot.slane %v1176, 2
    %v1178 = vadd.f32 %v1176, %v1177
    %v1179 = vrot.slane %v1178, 1
    %v1180 = vadd.f32 %v1178, %v1179
    %s1181 = vtos %v1180
    %v1182 = vstv %s1181
    %v1183 = vadd.f32 %v1121, %v1182
    %v1186 = vunpack.c.l.s4 1983009808
    %v1187 = vunpack.c.0.s8 %v1186
    %v1188 = vlaneseq
    %v1189 = vshrl.u32 %v1188, 7
    %v1190 = vsub.s32 %v1187, %v1189
    %v1191 = vrot.slane %v1056, %v1190
    %v1192 = vcombine.high %v1191, %v1191
    %v1195 = vsel %vm99, %v1191, 0.0
    %v1196 = vsel %vm99, %v1192, 0.0
    %v1197 = vadd.f32 %v1195, %v1196
    %1198 = vadd.xlane.f32.xlu0 %v1197
    %v1199 = vpop.xlane.xlu0 %1198
    %v1200 = vmul.f32 %v1056, %v202
    %v1203 = vunpack.c.l.s4 1983009808
    %v1204 = vunpack.c.0.s8 %v1203
    %v1205 = vlaneseq
    %v1206 = vshrl.u32 %v1205, 7
    %v1207 = vsub.s32 %v1204, %v1206
    %v1208 = vrot.slane %v1200, %v1207
    %v1209 = vcombine.high %v1208, %v1208
    %v1212 = vsel %vm99, %v1208, 0.0
    %v1213 = vsel %vm99, %v1209, 0.0
    %v1214 = vadd.f32 %v1212, %v1213
    %1215 = vadd.xlane.f32.xlu0 %v1214
    %v1216 = vpop.xlane.xlu0 %1215
    %v1217 = vmul.f32 %v219, %v1199
    %v1218 = vsub.f32 %v1216, %v1217
    %v1219 = vmul.f32 %v1218, %v257
    %v1220 = vmul.f32 %v1199, %v1199
    %v1221 = vsel %vm1096, %v1220, 0.0
    %1222 = vadd.xlane.f32.xlu0 %v1221
    %v1223 = vpop.xlane.xlu0 %1222
    %v1224 = vrot.slane %v1223, 4
    %v1225 = vadd.f32 %v1223, %v1224
    %v1226 = vrot.slane %v1225, 2
    %v1227 = vadd.f32 %v1225, %v1226
    %v1228 = vrot.slane %v1227, 1
    %v1229 = vadd.f32 %v1227, %v1228
    %s1230 = vtos %v1229
    %v1231 = vstv %s1230
    %v1232 = vadd.f32 %v1170, %v1231
    %v1233 = vmul.f32 %v1219, %v1219
    %v1234 = vsel %vm1096, %v1233, 0.0
    %1235 = vadd.xlane.f32.xlu0 %v1234
    %v1236 = vpop.xlane.xlu0 %1235
    %v1237 = vrot.slane %v1236, 4
    %v1238 = vadd.f32 %v1236, %v1237
    %v1239 = vrot.slane %v1238, 2
    %v1240 = vadd.f32 %v1238, %v1239
    %v1241 = vrot.slane %v1240, 1
    %v1242 = vadd.f32 %v1240, %v1241
    %s1243 = vtos %v1242
    %v1244 = vstv %s1243
    %v1245 = vadd.f32 %v1183, %v1244
    %v1248 = vunpack.c.l.s4 1983009808
    %v1249 = vunpack.c.0.s8 %v1248
    %v1250 = vlaneseq
    %v1251 = vshrl.u32 %v1250, 7
    %v1252 = vsub.s32 %v1249, %v1251
    %v1253 = vrot.slane %v1058, %v1252
    %v1254 = vcombine.high %v1253, %v1253
    %v1257 = vsel %vm99, %v1253, 0.0
    %v1258 = vsel %vm99, %v1254, 0.0
    %v1259 = vadd.f32 %v1257, %v1258
    %1260 = vadd.xlane.f32.xlu0 %v1259
    %v1261 = vpop.xlane.xlu0 %1260
    %v1262 = vmul.f32 %v1058, %v259
    %v1265 = vunpack.c.l.s4 1983009808
    %v1266 = vunpack.c.0.s8 %v1265
    %v1267 = vlaneseq
    %v1268 = vshrl.u32 %v1267, 7
    %v1269 = vsub.s32 %v1266, %v1268
    %v1270 = vrot.slane %v1262, %v1269
    %v1271 = vcombine.high %v1270, %v1270
    %v1274 = vsel %vm99, %v1270, 0.0
    %v1275 = vsel %vm99, %v1271, 0.0
    %v1276 = vadd.f32 %v1274, %v1275
    %1277 = vadd.xlane.f32.xlu0 %v1276
    %v1278 = vpop.xlane.xlu0 %1277
    %v1279 = vmul.f32 %v276, %v1261
    %v1280 = vsub.f32 %v1278, %v1279
    %v1281 = vmul.f32 %v1280, %v314
    %v1282 = vmul.f32 %v1261, %v1261
    %v1283 = vsel %vm1096, %v1282, 0.0
    %1284 = vadd.xlane.f32.xlu0 %v1283
    %v1285 = vpop.xlane.xlu0 %1284
    %v1286 = vrot.slane %v1285, 4
    %v1287 = vadd.f32 %v1285, %v1286
    %v1288 = vrot.slane %v1287, 2
    %v1289 = vadd.f32 %v1287, %v1288
    %v1290 = vrot.slane %v1289, 1
    %v1291 = vadd.f32 %v1289, %v1290
    %s1292 = vtos %v1291
    %v1293 = vstv %s1292
    %v1294 = vadd.f32 %v1232, %v1293
    %v1295 = vmul.f32 %v1281, %v1281
    %v1296 = vsel %vm1096, %v1295, 0.0
    %1297 = vadd.xlane.f32.xlu0 %v1296
    %v1298 = vpop.xlane.xlu0 %1297
    %v1299 = vrot.slane %v1298, 4
    %v1300 = vadd.f32 %v1298, %v1299
    %v1301 = vrot.slane %v1300, 2
    %v1302 = vadd.f32 %v1300, %v1301
    %v1303 = vrot.slane %v1302, 1
    %v1304 = vadd.f32 %v1302, %v1303
    %s1305 = vtos %v1304
    %v1306 = vstv %s1305
    %v1307 = vadd.f32 %v1245, %v1306
    %v1308 = vrsqrt.pop %v1294
    %v1309 = vmul.f32 %v1294, %v1308
    %vm1310 = vcmp.eq.f32.partialorder %v1294, inf
    %v1311 = vsel %vm1310, %v1294, %v1309
    %vm1312 = vcmp.eq.f32.partialorder %v1294, 0.0
    %v1313 = vand.u32 %v1294, 2147483648
    %v1314 = vsel %vm1312, %v1313, %v1311
    %v1315 = vadd.f32 %v1314, 1e-08
    %v1316 = vrcp.pop %v1315
    %v1317 = vmul.f32 0.5, %v1316
    %v1318 = vrsqrt.pop %v1307
    %v1319 = vmul.f32 %v1307, %v1318
    %vm1320 = vcmp.eq.f32.partialorder %v1307, inf
    %v1321 = vsel %vm1320, %v1307, %v1319
    %vm1322 = vcmp.eq.f32.partialorder %v1307, 0.0
    %v1323 = vand.u32 %v1307, 2147483648
    %v1324 = vsel %vm1322, %v1323, %v1321
    %v1325 = vadd.f32 %v1324, 1e-08
    %v1326 = vrcp.pop %v1325
    %v1327 = vmul.f32 0.5, %v1326
    %v1328 = vmul.f32 %v1327, %v1094
    %v1329 = vmul.f32 %v1328, %v143
    %v1330 = vadd.f32 %v1329, 1.0
    %v1331 = vmul.f32 %v1317, %v1074
    %v1332 = vsub.f32 1.0, %v1330
    %v1333 = vmul.f32 %v105, %v1332
    %v1334 = vadd.f32 %v1331, %v1333
    %v1337 = vunpack.c.l.s4 269488144
    %v1338 = vunpack.c.0.s8 %v1337
    %v1339 = vlaneseq
    %v1340 = vshrl.u32 %v1339, 7
    %v1341 = vsub.s32 %v1338, %v1340
    %v1342 = vrot.slane %v1330, %v1341
    %v1344 = vmul.f32 %v87, %v1342
    %v1347 = vunpack.c.l.s4 269488144
    %v1348 = vunpack.c.0.s8 %v1347
    %v1349 = vlaneseq
    %v1350 = vshrl.u32 %v1349, 7
    %v1351 = vsub.s32 %v1348, %v1350
    %v1352 = vrot.slane %v1334, %v1351
    %v1354 = vadd.f32 %v1344, %v1352
    %v1355 = vmul.f32 %v1327, %v1157
    %v1356 = vmul.f32 %v1355, %v200
    %v1357 = vadd.f32 %v1356, 1.0
    %v1358 = vmul.f32 %v1317, %v1137
    %v1359 = vsub.f32 1.0, %v1357
    %v1360 = vmul.f32 %v162, %v1359
    %v1361 = vadd.f32 %v1358, %v1360
    %v1364 = vunpack.c.l.s4 269488144
    %v1365 = vunpack.c.0.s8 %v1364
    %v1366 = vlaneseq
    %v1367 = vshrl.u32 %v1366, 7
    %v1368 = vsub.s32 %v1365, %v1367
    %v1369 = vrot.slane %v1357, %v1368
    %v1371 = vmul.f32 %v145, %v1369
    %v1374 = vunpack.c.l.s4 269488144
    %v1375 = vunpack.c.0.s8 %v1374
    %v1376 = vlaneseq
    %v1377 = vshrl.u32 %v1376, 7
    %v1378 = vsub.s32 %v1375, %v1377
    %v1379 = vrot.slane %v1361, %v1378
    %v1381 = vadd.f32 %v1371, %v1379
    %v1382 = vmul.f32 %v1327, %v1219
    %v1383 = vmul.f32 %v1382, %v257
    %v1384 = vadd.f32 %v1383, 1.0
    %v1385 = vmul.f32 %v1317, %v1199
    %v1386 = vsub.f32 1.0, %v1384
    %v1387 = vmul.f32 %v219, %v1386
    %v1388 = vadd.f32 %v1385, %v1387
    %v1391 = vunpack.c.l.s4 269488144
    %v1392 = vunpack.c.0.s8 %v1391
    %v1393 = vlaneseq
    %v1394 = vshrl.u32 %v1393, 7
    %v1395 = vsub.s32 %v1392, %v1394
    %v1396 = vrot.slane %v1384, %v1395
    %v1398 = vmul.f32 %v202, %v1396
    %v1401 = vunpack.c.l.s4 269488144
    %v1402 = vunpack.c.0.s8 %v1401
    %v1403 = vlaneseq
    %v1404 = vshrl.u32 %v1403, 7
    %v1405 = vsub.s32 %v1402, %v1404
    %v1406 = vrot.slane %v1388, %v1405
    %v1408 = vadd.f32 %v1398, %v1406
    %v1409 = vmul.f32 %v1327, %v1281
    %v1410 = vmul.f32 %v1409, %v314
    %v1411 = vadd.f32 %v1410, 1.0
    %v1412 = vmul.f32 %v1317, %v1261
    %v1413 = vsub.f32 1.0, %v1411
    %v1414 = vmul.f32 %v276, %v1413
    %v1415 = vadd.f32 %v1412, %v1414
    %v1418 = vunpack.c.l.s4 269488144
    %v1419 = vunpack.c.0.s8 %v1418
    %v1420 = vlaneseq
    %v1421 = vshrl.u32 %v1420, 7
    %v1422 = vsub.s32 %v1419, %v1421
    %v1423 = vrot.slane %v1411, %v1422
    %v1425 = vmul.f32 %v259, %v1423
    %v1428 = vunpack.c.l.s4 269488144
    %v1429 = vunpack.c.0.s8 %v1428
    %v1430 = vlaneseq
    %v1431 = vshrl.u32 %v1430, 7
    %v1432 = vsub.s32 %v1429, %v1431
    %v1433 = vrot.slane %v1415, %v1432
    %v1435 = vadd.f32 %v1425, %v1433
    %v1436 = vmul.f32 %v377, %v1354
    %v1437 = vmul.f32 %v379, %v1381
    %v1438 = vadd.f32 %v1436, %v1437
    %v1439 = vmul.f32 %v382, %v1408
    %v1440 = vadd.f32 %v1438, %v1439
    %v1441 = vmul.f32 %v385, %v1435
    %v1442 = vadd.f32 %v1440, %v1441
    %v1443 = vadd.f32 %v1442, %v389
    %v1444 = vmax.f32 %v1443, 0.0
    %v1447 = vunpack.c.l.s4 1983009808
    %v1448 = vunpack.c.0.s8 %v1447
    %v1449 = vlaneseq
    %v1450 = vshrl.u32 %v1449, 7
    %v1451 = vsub.s32 %v1448, %v1450
    %v1452 = vrot.slane %v1444, %v1451
    %v1453 = vcombine.high %v1452, %v1452
    %v1456 = vpack.c.bf16 %v1452, %v1452
    %v1457 = vpack.c.bf16 %v1453, %v1453
    %v1458 = vmul.f32 %v466, %v1354
    %v1459 = vmul.f32 %v468, %v1381
    %v1460 = vadd.f32 %v1458, %v1459
    %v1461 = vmul.f32 %v471, %v1408
    %v1462 = vadd.f32 %v1460, %v1461
    %v1463 = vmul.f32 %v474, %v1435
    %v1464 = vadd.f32 %v1462, %v1463
    %v1465 = vadd.f32 %v1464, %v478
    %v1466 = vmax.f32 %v1465, 0.0
    %v1469 = vunpack.c.l.s4 1983009808
    %v1470 = vunpack.c.0.s8 %v1469
    %v1471 = vlaneseq
    %v1472 = vshrl.u32 %v1471, 7
    %v1473 = vsub.s32 %v1470, %v1472
    %v1474 = vrot.slane %v1466, %v1473
    %v1475 = vcombine.high %v1474, %v1474
    %v1478 = vpack.c.bf16 %v1474, %v1474
    %v1479 = vpack.c.bf16 %v1475, %v1475
    %1482 = vmatprep.subr.bf16.mxu0 %v414
    %1483 = vmatpush1.bf16.xpose.msra.mxu0 %v413
    %1484 = vmatprep.subr.bf16.mxu0 0
    %1485 = vmatpush1.bf16.xpose.msra.mxu0 0
    %1486 = vmatprep.subr.bf16.mxu0 0
    %1487 = vmatpush1.bf16.xpose.msra.mxu0 0
    %1488 = vmatprep.subr.bf16.mxu0 0
    %1489 = vmatpush1.bf16.xpose.msra.mxu0 0
    %1490 = vmatprep.subr.bf16.mxu0 0
    %1491 = vmatpush1.bf16.xpose.msra.mxu0 0
    %1492 = vmatprep.subr.bf16.mxu0 0
    %1493 = vmatpush1.bf16.xpose.msra.mxu0 0
    %1494 = vmatprep.subr.bf16.mxu0 0
    %1495 = vmatpush1.bf16.xpose.msra.mxu0 0
    %1496 = vmatprep.subr.bf16.mxu0 0
    %1497 = vmatpush1.bf16.xpose.msra.mxu0 0
    %1498 = vmatprep.subr.bf16.mxu0 0
    %1499 = vmatpush1.bf16.xpose.msra.mxu0 0
    %1500 = vmatprep.subr.bf16.mxu0 0
    %1501 = vmatpush1.bf16.xpose.msra.mxu0 0
    %1502 = vmatprep.subr.bf16.mxu0 0
    %1503 = vmatpush1.bf16.xpose.msra.mxu0 0
    %1504 = vmatprep.subr.bf16.mxu0 0
    %1505 = vmatpush1.bf16.xpose.msra.mxu0 0
    %1506 = vmatprep.subr.bf16.mxu0 0
    %1507 = vmatpush1.bf16.xpose.msra.mxu0 0
    %1508 = vmatprep.subr.bf16.mxu0 0
    %1509 = vmatpush1.bf16.xpose.msra.mxu0 0
    %1510 = vmatprep.subr.bf16.mxu0 0
    %1511 = vmatpush1.bf16.xpose.msra.mxu0 0
    %1512 = vmatprep.subr.bf16.mxu0 0
    %1513 = vmatpush1.bf16.xpose.msra.mxu0 0
    %1514 = vmatprep.mubr.bf16.mxu0 %v1479
    %1515 = vmatmul.mubr.bf16.gmra.mrb[0].mxu0 %v1478
    %v1516 = vpop.f32.mrb[0].mxu0
    %v1517 = vadd.f32 0.0, %v1516
    %v1518 = vpop.f32.mrb[0].mxu0
    %v1519 = vpop.f32.mrb[0].mxu0
    %v1520 = vpop.f32.mrb[0].mxu0
    %1521 = vdwg.mxu0
    %1524 = vmatprep.subr.bf16.mxu0 %v320
    %1525 = vmatpush1.bf16.xpose.msra.mxu0 %v319
    %1526 = vmatprep.subr.bf16.mxu0 0
    %1527 = vmatpush1.bf16.xpose.msra.mxu0 0
    %1528 = vmatprep.subr.bf16.mxu0 0
    %1529 = vmatpush1.bf16.xpose.msra.mxu0 0
    %1530 = vmatprep.subr.bf16.mxu0 0
    %1531 = vmatpush1.bf16.xpose.msra.mxu0 0
    %1532 = vmatprep.subr.bf16.mxu0 0
    %1533 = vmatpush1.bf16.xpose.msra.mxu0 0
    %1534 = vmatprep.subr.bf16.mxu0 0
    %1535 = vmatpush1.bf16.xpose.msra.mxu0 0
    %1536 = vmatprep.subr.bf16.mxu0 0
    %1537 = vmatpush1.bf16.xpose.msra.mxu0 0
    %1538 = vmatprep.subr.bf16.mxu0 0
    %1539 = vmatpush1.bf16.xpose.msra.mxu0 0
    %1540 = vmatprep.subr.bf16.mxu0 0
    %1541 = vmatpush1.bf16.xpose.msra.mxu0 0
    %1542 = vmatprep.subr.bf16.mxu0 0
    %1543 = vmatpush1.bf16.xpose.msra.mxu0 0
    %1544 = vmatprep.subr.bf16.mxu0 0
    %1545 = vmatpush1.bf16.xpose.msra.mxu0 0
    %1546 = vmatprep.subr.bf16.mxu0 0
    %1547 = vmatpush1.bf16.xpose.msra.mxu0 0
    %1548 = vmatprep.subr.bf16.mxu0 0
    %1549 = vmatpush1.bf16.xpose.msra.mxu0 0
    %1550 = vmatprep.subr.bf16.mxu0 0
    %1551 = vmatpush1.bf16.xpose.msra.mxu0 0
    %1552 = vmatprep.subr.bf16.mxu0 0
    %1553 = vmatpush1.bf16.xpose.msra.mxu0 0
    %1554 = vmatprep.subr.bf16.mxu0 0
    %1555 = vmatpush1.bf16.xpose.msra.mxu0 0
    %1556 = vmatprep.mubr.bf16.mxu0 %v1457
    %1557 = vmatmul.mubr.bf16.gmra.mrb[0].mxu0 %v1456
    %v1558 = vpop.f32.mrb[0].mxu0
    %v1559 = vadd.f32 %v1517, %v1558
    %v1560 = vpop.f32.mrb[0].mxu0
    %v1561 = vpop.f32.mrb[0].mxu0
    %v1562 = vpop.f32.mrb[0].mxu0
    %1563 = vdwg.mxu0
    %v1564 = vmul.f32 %v559, %v1354
    %v1565 = vmul.f32 %v561, %v1381
    %v1566 = vadd.f32 %v1564, %v1565
    %v1567 = vmul.f32 %v564, %v1408
    %v1568 = vadd.f32 %v1566, %v1567
    %v1569 = vmul.f32 %v567, %v1435
    %v1570 = vadd.f32 %v1568, %v1569
    %v1571 = vadd.f32 %v1570, %v571
    %v1572 = vmax.f32 %v1571, 0.0
    %v1575 = vunpack.c.l.s4 1983009808
    %v1576 = vunpack.c.0.s8 %v1575
    %v1577 = vlaneseq
    %v1578 = vshrl.u32 %v1577, 7
    %v1579 = vsub.s32 %v1576, %v1578
    %v1580 = vrot.slane %v1572, %v1579
    %v1581 = vcombine.high %v1580, %v1580
    %v1584 = vpack.c.bf16 %v1580, %v1580
    %v1585 = vpack.c.bf16 %v1581, %v1581
    %1588 = vmatprep.subr.bf16.mxu0 %v507
    %1589 = vmatpush1.bf16.xpose.msra.mxu0 %v506
    %1590 = vmatprep.subr.bf16.mxu0 0
    %1591 = vmatpush1.bf16.xpose.msra.mxu0 0
    %1592 = vmatprep.subr.bf16.mxu0 0
    %1593 = vmatpush1.bf16.xpose.msra.mxu0 0
    %1594 = vmatprep.subr.bf16.mxu0 0
    %1595 = vmatpush1.bf16.xpose.msra.mxu0 0
    %1596 = vmatprep.subr.bf16.mxu0 0
    %1597 = vmatpush1.bf16.xpose.msra.mxu0 0
    %1598 = vmatprep.subr.bf16.mxu0 0
    %1599 = vmatpush1.bf16.xpose.msra.mxu0 0
    %1600 = vmatprep.subr.bf16.mxu0 0
    %1601 = vmatpush1.bf16.xpose.msra.mxu0 0
    %1602 = vmatprep.subr.bf16.mxu0 0
    %1603 = vmatpush1.bf16.xpose.msra.mxu0 0
    %1604 = vmatprep.subr.bf16.mxu0 0
    %1605 = vmatpush1.bf16.xpose.msra.mxu0 0
    %1606 = vmatprep.subr.bf16.mxu0 0
    %1607 = vmatpush1.bf16.xpose.msra.mxu0 0
    %1608 = vmatprep.subr.bf16.mxu0 0
    %1609 = vmatpush1.bf16.xpose.msra.mxu0 0
    %1610 = vmatprep.subr.bf16.mxu0 0
    %1611 = vmatpush1.bf16.xpose.msra.mxu0 0
    %1612 = vmatprep.subr.bf16.mxu0 0
    %1613 = vmatpush1.bf16.xpose.msra.mxu0 0
    %1614 = vmatprep.subr.bf16.mxu0 0
    %1615 = vmatpush1.bf16.xpose.msra.mxu0 0
    %1616 = vmatprep.subr.bf16.mxu0 0
    %1617 = vmatpush1.bf16.xpose.msra.mxu0 0
    %1618 = vmatprep.subr.bf16.mxu0 0
    %1619 = vmatpush1.bf16.xpose.msra.mxu0 0
    %1620 = vmatprep.mubr.bf16.mxu0 %v1585
    %1621 = vmatmul.mubr.bf16.gmra.mrb[0].mxu0 %v1584
    %v1622 = vpop.f32.mrb[0].mxu0
    %v1623 = vadd.f32 0.0, %v1622
    %v1624 = vpop.f32.mrb[0].mxu0
    %v1625 = vpop.f32.mrb[0].mxu0
    %v1626 = vpop.f32.mrb[0].mxu0
    %1627 = vdwg.mxu0
    %v1628 = vadd.f32 %v1559, %v1623
    %v1629 = vmul.f32 %v652, %v1354
    %v1630 = vmul.f32 %v654, %v1381
    %v1631 = vadd.f32 %v1629, %v1630
    %v1632 = vmul.f32 %v657, %v1408
    %v1633 = vadd.f32 %v1631, %v1632
    %v1634 = vmul.f32 %v660, %v1435
    %v1635 = vadd.f32 %v1633, %v1634
    %v1636 = vadd.f32 %v1635, %v664
    %v1637 = vmax.f32 %v1636, 0.0
    %v1640 = vunpack.c.l.s4 1983009808
    %v1641 = vunpack.c.0.s8 %v1640
    %v1642 = vlaneseq
    %v1643 = vshrl.u32 %v1642, 7
    %v1644 = vsub.s32 %v1641, %v1643
    %v1645 = vrot.slane %v1637, %v1644
    %v1646 = vcombine.high %v1645, %v1645
    %v1649 = vpack.c.bf16 %v1645, %v1645
    %v1650 = vpack.c.bf16 %v1646, %v1646
    %1653 = vmatprep.subr.bf16.mxu0 %v600
    %1654 = vmatpush1.bf16.xpose.msra.mxu0 %v599
    %1655 = vmatprep.subr.bf16.mxu0 0
    %1656 = vmatpush1.bf16.xpose.msra.mxu0 0
    %1657 = vmatprep.subr.bf16.mxu0 0
    %1658 = vmatpush1.bf16.xpose.msra.mxu0 0
    %1659 = vmatprep.subr.bf16.mxu0 0
    %1660 = vmatpush1.bf16.xpose.msra.mxu0 0
    %1661 = vmatprep.subr.bf16.mxu0 0
    %1662 = vmatpush1.bf16.xpose.msra.mxu0 0
    %1663 = vmatprep.subr.bf16.mxu0 0
    %1664 = vmatpush1.bf16.xpose.msra.mxu0 0
    %1665 = vmatprep.subr.bf16.mxu0 0
    %1666 = vmatpush1.bf16.xpose.msra.mxu0 0
    %1667 = vmatprep.subr.bf16.mxu0 0
    %1668 = vmatpush1.bf16.xpose.msra.mxu0 0
    %1669 = vmatprep.subr.bf16.mxu0 0
    %1670 = vmatpush1.bf16.xpose.msra.mxu0 0
    %1671 = vmatprep.subr.bf16.mxu0 0
    %1672 = vmatpush1.bf16.xpose.msra.mxu0 0
    %1673 = vmatprep.subr.bf16.mxu0 0
    %1674 = vmatpush1.bf16.xpose.msra.mxu0 0
    %1675 = vmatprep.subr.bf16.mxu0 0
    %1676 = vmatpush1.bf16.xpose.msra.mxu0 0
    %1677 = vmatprep.subr.bf16.mxu0 0
    %1678 = vmatpush1.bf16.xpose.msra.mxu0 0
    %1679 = vmatprep.subr.bf16.mxu0 0
    %1680 = vmatpush1.bf16.xpose.msra.mxu0 0
    %1681 = vmatprep.subr.bf16.mxu0 0
    %1682 = vmatpush1.bf16.xpose.msra.mxu0 0
    %1683 = vmatprep.subr.bf16.mxu0 0
    %1684 = vmatpush1.bf16.xpose.msra.mxu0 0
    %1685 = vmatprep.mubr.bf16.mxu0 %v1650
    %1686 = vmatmul.mubr.bf16.gmra.mrb[0].mxu0 %v1649
    %v1687 = vpop.f32.mrb[0].mxu0
    %v1688 = vadd.f32 0.0, %v1687
    %v1689 = vpop.f32.mrb[0].mxu0
    %v1690 = vpop.f32.mrb[0].mxu0
    %v1691 = vpop.f32.mrb[0].mxu0
    %1692 = vdwg.mxu0
    %v1693 = vadd.f32 %v1628, %v1688
    %v1694 = vmul.f32 %v745, %v1354
    %v1695 = vmul.f32 %v747, %v1381
    %v1696 = vadd.f32 %v1694, %v1695
    %v1697 = vmul.f32 %v750, %v1408
    %v1698 = vadd.f32 %v1696, %v1697
    %v1699 = vmul.f32 %v753, %v1435
    %v1700 = vadd.f32 %v1698, %v1699
    %v1701 = vadd.f32 %v1700, %v757
    %v1702 = vmax.f32 %v1701, 0.0
    %v1705 = vunpack.c.l.s4 1983009808
    %v1706 = vunpack.c.0.s8 %v1705
    %v1707 = vlaneseq
    %v1708 = vshrl.u32 %v1707, 7
    %v1709 = vsub.s32 %v1706, %v1708
    %v1710 = vrot.slane %v1702, %v1709
    %v1711 = vcombine.high %v1710, %v1710
    %v1714 = vpack.c.bf16 %v1710, %v1710
    %v1715 = vpack.c.bf16 %v1711, %v1711
    %1718 = vmatprep.subr.bf16.mxu0 %v693
    %1719 = vmatpush1.bf16.xpose.msra.mxu0 %v692
    %1720 = vmatprep.subr.bf16.mxu0 0
    %1721 = vmatpush1.bf16.xpose.msra.mxu0 0
    %1722 = vmatprep.subr.bf16.mxu0 0
    %1723 = vmatpush1.bf16.xpose.msra.mxu0 0
    %1724 = vmatprep.subr.bf16.mxu0 0
    %1725 = vmatpush1.bf16.xpose.msra.mxu0 0
    %1726 = vmatprep.subr.bf16.mxu0 0
    %1727 = vmatpush1.bf16.xpose.msra.mxu0 0
    %1728 = vmatprep.subr.bf16.mxu0 0
    %1729 = vmatpush1.bf16.xpose.msra.mxu0 0
    %1730 = vmatprep.subr.bf16.mxu0 0
    %1731 = vmatpush1.bf16.xpose.msra.mxu0 0
    %1732 = vmatprep.subr.bf16.mxu0 0
    %1733 = vmatpush1.bf16.xpose.msra.mxu0 0
    %1734 = vmatprep.subr.bf16.mxu0 0
    %1735 = vmatpush1.bf16.xpose.msra.mxu0 0
    %1736 = vmatprep.subr.bf16.mxu0 0
    %1737 = vmatpush1.bf16.xpose.msra.mxu0 0
    %1738 = vmatprep.subr.bf16.mxu0 0
    %1739 = vmatpush1.bf16.xpose.msra.mxu0 0
    %1740 = vmatprep.subr.bf16.mxu0 0
    %1741 = vmatpush1.bf16.xpose.msra.mxu0 0
    %1742 = vmatprep.subr.bf16.mxu0 0
    %1743 = vmatpush1.bf16.xpose.msra.mxu0 0
    %1744 = vmatprep.subr.bf16.mxu0 0
    %1745 = vmatpush1.bf16.xpose.msra.mxu0 0
    %1746 = vmatprep.subr.bf16.mxu0 0
    %1747 = vmatpush1.bf16.xpose.msra.mxu0 0
    %1748 = vmatprep.subr.bf16.mxu0 0
    %1749 = vmatpush1.bf16.xpose.msra.mxu0 0
    %1750 = vmatprep.mubr.bf16.mxu0 %v1715
    %1751 = vmatmul.mubr.bf16.gmra.mrb[0].mxu0 %v1714
    %v1752 = vpop.f32.mrb[0].mxu0
    %v1753 = vadd.f32 0.0, %v1752
    %v1754 = vpop.f32.mrb[0].mxu0
    %v1755 = vpop.f32.mrb[0].mxu0
    %v1756 = vpop.f32.mrb[0].mxu0
    %1757 = vdwg.mxu0
    %v1758 = vadd.f32 %v1693, %v1753
    %v1759 = vmul.f32 %v838, %v1354
    %v1760 = vmul.f32 %v840, %v1381
    %v1761 = vadd.f32 %v1759, %v1760
    %v1762 = vmul.f32 %v843, %v1408
    %v1763 = vadd.f32 %v1761, %v1762
    %v1764 = vmul.f32 %v846, %v1435
    %v1765 = vadd.f32 %v1763, %v1764
    %v1766 = vadd.f32 %v1765, %v850
    %v1767 = vmax.f32 %v1766, 0.0
    %v1770 = vunpack.c.l.s4 1983009808
    %v1771 = vunpack.c.0.s8 %v1770
    %v1772 = vlaneseq
    %v1773 = vshrl.u32 %v1772, 7
    %v1774 = vsub.s32 %v1771, %v1773
    %v1775 = vrot.slane %v1767, %v1774
    %v1776 = vcombine.high %v1775, %v1775
    %v1779 = vpack.c.bf16 %v1775, %v1775
    %v1780 = vpack.c.bf16 %v1776, %v1776
    %1783 = vmatprep.subr.bf16.mxu0 %v786
    %1784 = vmatpush1.bf16.xpose.msra.mxu0 %v785
    %1785 = vmatprep.subr.bf16.mxu0 0
    %1786 = vmatpush1.bf16.xpose.msra.mxu0 0
    %1787 = vmatprep.subr.bf16.mxu0 0
    %1788 = vmatpush1.bf16.xpose.msra.mxu0 0
    %1789 = vmatprep.subr.bf16.mxu0 0
    %1790 = vmatpush1.bf16.xpose.msra.mxu0 0
    %1791 = vmatprep.subr.bf16.mxu0 0
    %1792 = vmatpush1.bf16.xpose.msra.mxu0 0
    %1793 = vmatprep.subr.bf16.mxu0 0
    %1794 = vmatpush1.bf16.xpose.msra.mxu0 0
    %1795 = vmatprep.subr.bf16.mxu0 0
    %1796 = vmatpush1.bf16.xpose.msra.mxu0 0
    %1797 = vmatprep.subr.bf16.mxu0 0
    %1798 = vmatpush1.bf16.xpose.msra.mxu0 0
    %1799 = vmatprep.subr.bf16.mxu0 0
    %1800 = vmatpush1.bf16.xpose.msra.mxu0 0
    %1801 = vmatprep.subr.bf16.mxu0 0
    %1802 = vmatpush1.bf16.xpose.msra.mxu0 0
    %1803 = vmatprep.subr.bf16.mxu0 0
    %1804 = vmatpush1.bf16.xpose.msra.mxu0 0
    %1805 = vmatprep.subr.bf16.mxu0 0
    %1806 = vmatpush1.bf16.xpose.msra.mxu0 0
    %1807 = vmatprep.subr.bf16.mxu0 0
    %1808 = vmatpush1.bf16.xpose.msra.mxu0 0
    %1809 = vmatprep.subr.bf16.mxu0 0
    %1810 = vmatpush1.bf16.xpose.msra.mxu0 0
    %1811 = vmatprep.subr.bf16.mxu0 0
    %1812 = vmatpush1.bf16.xpose.msra.mxu0 0
    %1813 = vmatprep.subr.bf16.mxu0 0
    %1814 = vmatpush1.bf16.xpose.msra.mxu0 0
    %1815 = vmatprep.mubr.bf16.mxu0 %v1780
    %1816 = vmatmul.mubr.bf16.gmra.mrb[0].mxu0 %v1779
    %v1817 = vpop.f32.mrb[0].mxu0
    %v1818 = vadd.f32 0.0, %v1817
    %v1819 = vpop.f32.mrb[0].mxu0
    %v1820 = vpop.f32.mrb[0].mxu0
    %v1821 = vpop.f32.mrb[0].mxu0
    %1822 = vdwg.mxu0
    %v1823 = vadd.f32 %v1758, %v1818
    %v1824 = vmul.f32 %v931, %v1354
    %v1825 = vmul.f32 %v933, %v1381
    %v1826 = vadd.f32 %v1824, %v1825
    %v1827 = vmul.f32 %v936, %v1408
    %v1828 = vadd.f32 %v1826, %v1827
    %v1829 = vmul.f32 %v939, %v1435
    %v1830 = vadd.f32 %v1828, %v1829
    %v1831 = vadd.f32 %v1830, %v943
    %v1832 = vmax.f32 %v1831, 0.0
    %v1835 = vunpack.c.l.s4 1983009808
    %v1836 = vunpack.c.0.s8 %v1835
    %v1837 = vlaneseq
    %v1838 = vshrl.u32 %v1837, 7
    %v1839 = vsub.s32 %v1836, %v1838
    %v1840 = vrot.slane %v1832, %v1839
    %v1841 = vcombine.high %v1840, %v1840
    %v1844 = vpack.c.bf16 %v1840, %v1840
    %v1845 = vpack.c.bf16 %v1841, %v1841
    %1848 = vmatprep.subr.bf16.mxu0 %v879
    %1849 = vmatpush1.bf16.xpose.msra.mxu0 %v878
    %1850 = vmatprep.subr.bf16.mxu0 0
    %1851 = vmatpush1.bf16.xpose.msra.mxu0 0
    %1852 = vmatprep.subr.bf16.mxu0 0
    %1853 = vmatpush1.bf16.xpose.msra.mxu0 0
    %1854 = vmatprep.subr.bf16.mxu0 0
    %1855 = vmatpush1.bf16.xpose.msra.mxu0 0
    %1856 = vmatprep.subr.bf16.mxu0 0
    %1857 = vmatpush1.bf16.xpose.msra.mxu0 0
    %1858 = vmatprep.subr.bf16.mxu0 0
    %1859 = vmatpush1.bf16.xpose.msra.mxu0 0
    %1860 = vmatprep.subr.bf16.mxu0 0
    %1861 = vmatpush1.bf16.xpose.msra.mxu0 0
    %1862 = vmatprep.subr.bf16.mxu0 0
    %1863 = vmatpush1.bf16.xpose.msra.mxu0 0
    %1864 = vmatprep.subr.bf16.mxu0 0
    %1865 = vmatpush1.bf16.xpose.msra.mxu0 0
    %1866 = vmatprep.subr.bf16.mxu0 0
    %1867 = vmatpush1.bf16.xpose.msra.mxu0 0
    %1868 = vmatprep.subr.bf16.mxu0 0
    %1869 = vmatpush1.bf16.xpose.msra.mxu0 0
    %1870 = vmatprep.subr.bf16.mxu0 0
    %1871 = vmatpush1.bf16.xpose.msra.mxu0 0
    %1872 = vmatprep.subr.bf16.mxu0 0
    %1873 = vmatpush1.bf16.xpose.msra.mxu0 0
    %1874 = vmatprep.subr.bf16.mxu0 0
    %1875 = vmatpush1.bf16.xpose.msra.mxu0 0
    %1876 = vmatprep.subr.bf16.mxu0 0
    %1877 = vmatpush1.bf16.xpose.msra.mxu0 0
    %1878 = vmatprep.subr.bf16.mxu0 0
    %1879 = vmatpush1.bf16.xpose.msra.mxu0 0
    %1880 = vmatprep.mubr.bf16.mxu0 %v1845
    %1881 = vmatmul.mubr.bf16.gmra.mrb[0].mxu0 %v1844
    %v1882 = vpop.f32.mrb[0].mxu0
    %v1883 = vadd.f32 0.0, %v1882
    %v1884 = vpop.f32.mrb[0].mxu0
    %v1885 = vpop.f32.mrb[0].mxu0
    %v1886 = vpop.f32.mrb[0].mxu0
    %1887 = vdwg.mxu0
    %v1888 = vadd.f32 %v1823, %v1883
    %v1889 = vmul.f32 %v1024, %v1354
    %v1890 = vmul.f32 %v1026, %v1381
    %v1891 = vadd.f32 %v1889, %v1890
    %v1892 = vmul.f32 %v1029, %v1408
    %v1893 = vadd.f32 %v1891, %v1892
    %v1894 = vmul.f32 %v1032, %v1435
    %v1895 = vadd.f32 %v1893, %v1894
    %v1896 = vadd.f32 %v1895, %v1036
    %v1897 = vmax.f32 %v1896, 0.0
    %v1900 = vunpack.c.l.s4 1983009808
    %v1901 = vunpack.c.0.s8 %v1900
    %v1902 = vlaneseq
    %v1903 = vshrl.u32 %v1902, 7
    %v1904 = vsub.s32 %v1901, %v1903
    %v1905 = vrot.slane %v1897, %v1904
    %v1906 = vcombine.high %v1905, %v1905
    %v1909 = vpack.c.bf16 %v1905, %v1905
    %v1910 = vpack.c.bf16 %v1906, %v1906
    %1913 = vmatprep.subr.bf16.mxu0 %v972
    %1914 = vmatpush1.bf16.xpose.msra.mxu0 %v971
    %1915 = vmatprep.subr.bf16.mxu0 0
    %1916 = vmatpush1.bf16.xpose.msra.mxu0 0
    %1917 = vmatprep.subr.bf16.mxu0 0
    %1918 = vmatpush1.bf16.xpose.msra.mxu0 0
    %1919 = vmatprep.subr.bf16.mxu0 0
    %1920 = vmatpush1.bf16.xpose.msra.mxu0 0
    %1921 = vmatprep.subr.bf16.mxu0 0
    %1922 = vmatpush1.bf16.xpose.msra.mxu0 0
    %1923 = vmatprep.subr.bf16.mxu0 0
    %1924 = vmatpush1.bf16.xpose.msra.mxu0 0
    %1925 = vmatprep.subr.bf16.mxu0 0
    %1926 = vmatpush1.bf16.xpose.msra.mxu0 0
    %1927 = vmatprep.subr.bf16.mxu0 0
    %1928 = vmatpush1.bf16.xpose.msra.mxu0 0
    %1929 = vmatprep.subr.bf16.mxu0 0
    %1930 = vmatpush1.bf16.xpose.msra.mxu0 0
    %1931 = vmatprep.subr.bf16.mxu0 0
    %1932 = vmatpush1.bf16.xpose.msra.mxu0 0
    %1933 = vmatprep.subr.bf16.mxu0 0
    %1934 = vmatpush1.bf16.xpose.msra.mxu0 0
    %1935 = vmatprep.subr.bf16.mxu0 0
    %1936 = vmatpush1.bf16.xpose.msra.mxu0 0
    %1937 = vmatprep.subr.bf16.mxu0 0
    %1938 = vmatpush1.bf16.xpose.msra.mxu0 0
    %1939 = vmatprep.subr.bf16.mxu0 0
    %1940 = vmatpush1.bf16.xpose.msra.mxu0 0
    %1941 = vmatprep.subr.bf16.mxu0 0
    %1942 = vmatpush1.bf16.xpose.msra.mxu0 0
    %1943 = vmatprep.subr.bf16.mxu0 0
    %1944 = vmatpush1.bf16.xpose.msra.mxu0 0
    %1945 = vmatprep.mubr.bf16.mxu0 %v1910
    %1946 = vmatmul.mubr.bf16.gmra.mrb[0].mxu0 %v1909
    %v1947 = vpop.f32.mrb[0].mxu0
    %v1948 = vadd.f32 0.0, %v1947
    %v1949 = vpop.f32.mrb[0].mxu0
    %v1950 = vpop.f32.mrb[0].mxu0
    %v1951 = vpop.f32.mrb[0].mxu0
    %1952 = vdwg.mxu0
    %v1953 = vadd.f32 %v1888, %v1948
    %v1954 = vld [vmem:[%s4] sm:$0x1]
    %v1956 = vlaneseq
    %v1957 = vshrl.u32 %v1956, 7
    %v1958 = vsub.s32 0, %v1957
    %v1959 = vrot.slane %v1954, %v1958
    %v1961 = vadd.f32 %v1953, %v1959
    %v1962 = vand.u32 2147483647, %v1961
    %v1963 = vsub.f32 0.0, %v1962
    %v1964 = vmul.f32 %v1963, 1.442695
    %v1965 = vpow.pop %v1964
    %v1966 = vmax.f32 %v1961, 0.0
    %v1967 = vmul.f32 %v1961, %v54
    %v1968 = vsub.f32 %v1966, %v1967
    %v1969 = vadd.f32 %v1965, 1.0
    %v1970 = vlog2.pop %v1969
    %v1971 = vmul.f32 %v1970, 0.6931472
    %v1972 = vadd.f32 %v1968, %v1971
    %v1973 = vsel %vm71, %v1972, 0.0
    %1974 = vadd.xlane.f32.xlu0 %v1973
    %v1975 = vpop.xlane.xlu0 %1974
    %v1976 = vrot.slane %v1975, 4
    %v1977 = vadd.f32 %v1975, %v1976
    %v1978 = vrot.slane %v1977, 2
    %v1979 = vadd.f32 %v1977, %v1978
    %v1980 = vrot.slane %v1979, 1
    %v1981 = vadd.f32 %v1979, %v1980
    %s1982 = vtos %v1981
    %v1983 = vstv %s1982
    %v1984 = vmul.f32 %v1983, 0.0625
    %v1985 = vmul.f32 %v83, 0.5
    %v1986 = vmul.f32 %v1984, 0.5
    %v1987 = vadd.f32 %v1985, %v1986
    %vm1988 = vcmask 0
    %1989 = vst.msk [vmem:[#allocation7] sm:$0x1] %vm1988, %v1987
    // Predicated region
    $region38: #{gradient_regularized_loss.1} parent=1 // pred_check
      _
    $region39: #{gradient_regularized_loss.1} parent=1 // pred_check_branch
      %1991 = sbr.rel (0) target = $region41
    $region40: #{gradient_regularized_loss.1} parent=1 // pred_region
      %s1993 = ssub.s32 16, 16
      %1994 = vsyncadd [#allocation3], %s1993
      %s1996 = sshll.u32 [#allocation7], 4
      %s1997 = int_to_ptr.vmem [resolvable:$true] %s1996
      %1999 = dma.vmem_to_hbm [thread:$0]  %s1997, 16, %s7, [#allocation3]
    $region41: #{gradient_regularized_loss.1} parent=1 // pred_fallthru
      _
    // Predicated region
    $region42: #{gradient_regularized_loss.1} parent=1 // pred_check
      _
    $region43: #{gradient_regularized_loss.1} parent=1 // pred_check_branch
      %2001 = sbr.rel (0) target = $region45
    $region44: #{gradient_regularized_loss.1} parent=1 // pred_region
      %2002 = dma.done [#allocation3], 16
    $region45: #{gradient_regularized_loss.1} parent=1 // pred_fallthru
      _
    %2003 = vsyncpa [#allocation3], 1
    %2004 = vsyncpa [#allocation4], 1
    %2005 = vsyncpa [#allocation6], 1

</llo_original>
